<compile_context>
chip_gen: v5e
topology: v5e:2x2
jax: 0.10.0
libtpu: 0.0.40
codegen_flags: <defaults>
</compile_context>

<pallas_src>
import functools

import jax
import jax.numpy as jnp
from jax.experimental import pallas as pl
from jax.experimental.pallas import tpu as pltpu

OUT_FEATURES = 28 * 28          # 784
OUT_PADDED = 896                # next multiple of 128 >= 784 (lane dense for MXU)


def _round_up(x, m):
    return ((x + m - 1) // m) * m


def generator_kernel(x_ref,
                     w1_ref, b1_ref,
                     w2_ref, b2_ref,
                     w3_ref, b3_ref,
                     w4_ref, b4_ref,
                     w5_ref, b5_ref,
                     out_ref,
                     *, bf16_epilogue):
    """One batch tile through the 5-layer MLP. Weights are (in, out) bf16."""

    def epilogue(acc_f32, b_ref, relu):
        # Bias add (+ optional ReLU); result feeds the next matmul in bf16.
        if bf16_epilogue:
            h = acc_f32.astype(jnp.bfloat16) + b_ref[...]       # bf16 VALU
        else:
            h = acc_f32 + b_ref[...]                            # f32 VALU (v5e)
        if relu:
            h = jnp.maximum(h, 0)
        return h.astype(jnp.bfloat16)

    x = x_ref[...].astype(jnp.bfloat16)

    # Layer 1: Linear(in_feature, 1024) + ReLU   (bf16 MXU, f32 accumulate)
    h = jnp.dot(x, w1_ref[...], preferred_element_type=jnp.float32)
    h = epilogue(h, b1_ref, relu=True)

    # Layer 2: Linear(1024, 512) + ReLU
    h = jnp.dot(h, w2_ref[...], preferred_element_type=jnp.float32)
    h = epilogue(h, b2_ref, relu=True)

    # Layer 3: Linear(512, 256) + ReLU
    h = jnp.dot(h, w3_ref[...], preferred_element_type=jnp.float32)
    h = epilogue(h, b3_ref, relu=True)

    # Layer 4: Linear(256, 128)  (Dropout(0.5) is identity in eval mode)
    h = jnp.dot(h, w4_ref[...], preferred_element_type=jnp.float32)
    h = epilogue(h, b4_ref, relu=False)

    # Layer 5: Linear(128, 896 lane-padded) + Tanh
    y = jnp.dot(h, w5_ref[...], preferred_element_type=jnp.float32)
    if bf16_epilogue:
        y = jnp.tanh(y.astype(jnp.bfloat16) + b5_ref[...])      # bf16 EUP
    else:
        y = jnp.tanh(y + b5_ref[...])

    # Store only the real 784 columns: no post-kernel crop pass over HBM.
    out_ref[...] = y[:, :OUT_FEATURES].astype(out_ref.dtype)


def generator_forward(x, params, *, tm_max=None, bf16_epilogue=None):
    """x: (N, in_feature) float32. params: list of (W (in,out), b (1,out)).
    Returns (N, 1, 28, 28) float32."""
    n, in_feature = x.shape

    # --- generation-dependent tuning ---------------------------------------
    kind = jax.devices()[0].device_kind.lower()
    is_v6_plus = any(tag in kind for tag in ("v6", "v7", "7x"))
    if bf16_epilogue is None:
        bf16_epilogue = is_v6_plus            # v5e has no bf16 VPU/EUP
    if tm_max is None:
        tm_max = 512 if is_v6_plus else 256   # v5e is MXU-bound already at 256

    bias_dt = jnp.bfloat16 if bf16_epilogue else jnp.float32

    # --- weights: (in, out) bf16; pad K of layer 1 and N of layer 5 --------
    k_pad = _round_up(in_feature, 128)        # lane-align the first contraction
    ws, bs = [], []
    for li, (w, b) in enumerate(params):
        w = w.astype(jnp.bfloat16)
        b = b.reshape(1, -1).astype(bias_dt)
        if li == 0 and k_pad != in_feature:
            w = jnp.pad(w, ((0, k_pad - in_feature), (0, 0)))
        if li == len(params) - 1:             # final layer: 784 -> 896 lanes
            pad = OUT_PADDED - w.shape[1]
            w = jnp.pad(w, ((0, 0), (0, pad)))
            b = jnp.pad(b, ((0, 0), (0, pad)))
        ws.append(w)
        bs.append(b)

    if k_pad != in_feature:
        x = jnp.pad(x, ((0, 0), (0, k_pad - in_feature)))

    # --- batch tiling: TM rows per grid step (multiple of 8 sublanes) ------
    tm = min(tm_max, _round_up(n, 8))
    if n >= 256:
        # Keep >= 2 grid steps so the "parallel" batch axis can be sharded
        # across v7x's two TensorCores (harmless on v5e/v6e).
        tm = min(tm, _round_up((n + 1) // 2, 8))
    n_pad = _round_up(n, tm)
    if n_pad != n:
        x = jnp.pad(x, ((0, n_pad - n), (0, 0)))
    grid = (n_pad // tm,)

    # Activations move with the grid; weights/biases use constant index_maps
    # so they are DMA'd into VMEM once and stay resident for the whole call.
    x_spec = pl.BlockSpec((tm, k_pad), lambda i: (i, 0))
    out_spec = pl.BlockSpec((tm, OUT_FEATURES), lambda i: (i, 0))

    flat_params, wb_specs = [], []
    for w, b in zip(ws, bs):
        flat_params += [w, b]
        wb_specs += [pl.BlockSpec(w.shape, lambda i: (0, 0)),
                     pl.BlockSpec(b.shape, lambda i: (0, 0))]

    y = pl.pallas_call(
        functools.partial(generator_kernel, bf16_epilogue=bf16_epilogue),
        out_shape=jax.ShapeDtypeStruct((n_pad, OUT_FEATURES), jnp.float32),
        grid=grid,
        in_specs=[x_spec] + wb_specs,
        out_specs=out_spec,
        compiler_params=pltpu.CompilerParams(
            dimension_semantics=("parallel",),
            vmem_limit_bytes=32 << 20,
        ),
    )(x, *flat_params)

    if n_pad != n:
        y = y[:n]
    return y.reshape(n, 1, 28, 28)   # x.view(N, 1, 28, 28)


def generator_reference(x, params):
    """Pure-JAX f32 reference (eval-mode dropout)."""
    h = x
    for li, (w, b) in enumerate(params):
        h = h @ w + b.reshape(1, -1)
        if li < 3:
            h = jnp.maximum(h, 0.0)
    return jnp.tanh(h).reshape(x.shape[0], 1, 28, 28)


def init_params(key, in_feature):
    """Deterministic init mimicking PyTorch nn.Linear default:
    U(-1/sqrt(fan_in), 1/sqrt(fan_in)). Weights stored as (in, out)."""
    dims = [(in_feature, 1024), (1024, 512), (512, 256), (256, 128),
            (128, OUT_FEATURES)]
    params = []
    for fan_in, fan_out in dims:
        key, kw, kb = jax.random.split(key, 3)
        bound = 1.0 / jnp.sqrt(jnp.float32(fan_in))
        w = jax.random.uniform(kw, (fan_in, fan_out), jnp.float32, -bound, bound)
        b = jax.random.uniform(kb, (1, fan_out), jnp.float32, -bound, bound)
        params.append((w, b))
    return params


if __name__ == "__main__":
    in_feature = 100   # typical GAN_MNIST latent dim (exercises K padding)
    batch = 8

    key = jax.random.PRNGKey(0)
    key, kx = jax.random.split(key)
    x = jax.random.normal(kx, (batch, in_feature), jnp.float32)

    params = init_params(key, in_feature)

    out = generator_forward(x, params)
    out = jax.block_until_ready(out)

    assert out.shape == (batch, 1, 28, 28), out.shape
    assert out.dtype == jnp.float32
    # tanh output range sanity check
    assert bool(jnp.all(jnp.abs(out) <= 1.0 + 1e-6))

    # Loose check vs. f32 reference (bf16 weights/epilogue => ~1e-2 deviation).
    ref = jax.block_until_ready(generator_reference(x, params))
    max_err = float(jnp.max(jnp.abs(out - ref)))
    assert max_err < 5e-2, f"max abs err vs f32 reference: {max_err}"

    print("KERNEL_OK")
</pallas_src>

<mosaic_0001>
module attributes {stable_mosaic.version = 11 : i64} {
  func.func @generator_kernel(%arg0: i32, %arg1: memref<8x128xf32, #tpu.memory_space<vmem>>, %arg2: memref<128x1024xbf16, #tpu.memory_space<vmem>>, %arg3: memref<1x1024xf32, #tpu.memory_space<vmem>>, %arg4: memref<1024x512xbf16, #tpu.memory_space<vmem>>, %arg5: memref<1x512xf32, #tpu.memory_space<vmem>>, %arg6: memref<512x256xbf16, #tpu.memory_space<vmem>>, %arg7: memref<1x256xf32, #tpu.memory_space<vmem>>, %arg8: memref<256x128xbf16, #tpu.memory_space<vmem>>, %arg9: memref<1x128xf32, #tpu.memory_space<vmem>>, %arg10: memref<128x896xbf16, #tpu.memory_space<vmem>>, %arg11: memref<1x896xf32, #tpu.memory_space<vmem>>, %arg12: memref<8x784xf32, #tpu.memory_space<vmem>>) attributes {dimension_semantics = [#tpu.dimension_semantics<parallel>], iteration_bounds = array<i64: 1>, scalar_prefetch = 0 : i64, scratch_operands = 0 : i64, tpu.core_type = #tpu.core_type<tc>, window_params = [{transform_indices = @transform_0, window_bounds = array<i64: 8, 128>}, {pipeline_mode = #tpu.pipeline_mode<synchronous>, transform_indices = @transform_1, window_bounds = array<i64: 128, 1024>}, {pipeline_mode = #tpu.pipeline_mode<synchronous>, transform_indices = @transform_2, window_bounds = array<i64: 1, 1024>}, {pipeline_mode = #tpu.pipeline_mode<synchronous>, transform_indices = @transform_3, window_bounds = array<i64: 1024, 512>}, {pipeline_mode = #tpu.pipeline_mode<synchronous>, transform_indices = @transform_4, window_bounds = array<i64: 1, 512>}, {pipeline_mode = #tpu.pipeline_mode<synchronous>, transform_indices = @transform_5, window_bounds = array<i64: 512, 256>}, {pipeline_mode = #tpu.pipeline_mode<synchronous>, transform_indices = @transform_6, window_bounds = array<i64: 1, 256>}, {pipeline_mode = #tpu.pipeline_mode<synchronous>, transform_indices = @transform_7, window_bounds = array<i64: 256, 128>}, {pipeline_mode = #tpu.pipeline_mode<synchronous>, transform_indices = @transform_8, window_bounds = array<i64: 1, 128>}, {pipeline_mode = #tpu.pipeline_mode<synchronous>, transform_indices = @transform_9, window_bounds = array<i64: 128, 896>}, {pipeline_mode = #tpu.pipeline_mode<synchronous>, transform_indices = @transform_10, window_bounds = array<i64: 1, 896>}, {transform_indices = @transform_11, window_bounds = array<i64: 8, 784>}]} {
    %c0 = arith.constant 0 : index
    %c0_0 = arith.constant 0 : index
    %0 = vector.load %arg1[%c0, %c0_0] : memref<8x128xf32, #tpu.memory_space<vmem>>, vector<8x128xf32>
    %1 = arith.truncf %0 : vector<8x128xf32> to vector<8x128xbf16>
    %c0_1 = arith.constant 0 : index
    %c0_2 = arith.constant 0 : index
    %2 = vector.load %arg2[%c0_1, %c0_2] : memref<128x1024xbf16, #tpu.memory_space<vmem>>, vector<128x1024xbf16>
    %cst = arith.constant dense<0.000000e+00> : vector<8x1024xf32>
    %3 = tpu.matmul %1, %2, %cst {dimension_numbers = #tpu.dot_dimension_numbers<[1], [0], [0], [1], [0, 0, 1, 1], [], []>} : vector<8x128xbf16>, vector<128x1024xbf16>, vector<8x1024xf32> -> vector<8x1024xf32>
    %c0_3 = arith.constant 0 : index
    %c0_4 = arith.constant 0 : index
    %4 = vector.load %arg3[%c0_3, %c0_4] : memref<1x1024xf32, #tpu.memory_space<vmem>>, vector<1x1024xf32>
    %5 = vector.broadcast %4 : vector<1x1024xf32> to vector<8x1024xf32>
    %6 = arith.addf %3, %5 : vector<8x1024xf32>
    %cst_5 = arith.constant 0.000000e+00 : f32
    %7 = vector.broadcast %cst_5 : f32 to vector<8x1024xf32>
    %8 = arith.maximumf %6, %7 : vector<8x1024xf32>
    %9 = arith.truncf %8 : vector<8x1024xf32> to vector<8x1024xbf16>
    %c0_6 = arith.constant 0 : index
    %c0_7 = arith.constant 0 : index
    %10 = vector.load %arg4[%c0_6, %c0_7] : memref<1024x512xbf16, #tpu.memory_space<vmem>>, vector<1024x512xbf16>
    %cst_8 = arith.constant dense<0.000000e+00> : vector<8x512xf32>
    %11 = tpu.matmul %9, %10, %cst_8 {dimension_numbers = #tpu.dot_dimension_numbers<[1], [0], [0], [1], [0, 0, 1, 1], [], []>} : vector<8x1024xbf16>, vector<1024x512xbf16>, vector<8x512xf32> -> vector<8x512xf32>
    %c0_9 = arith.constant 0 : index
    %c0_10 = arith.constant 0 : index
    %12 = vector.load %arg5[%c0_9, %c0_10] : memref<1x512xf32, #tpu.memory_space<vmem>>, vector<1x512xf32>
    %13 = vector.broadcast %12 : vector<1x512xf32> to vector<8x512xf32>
    %14 = arith.addf %11, %13 : vector<8x512xf32>
    %cst_11 = arith.constant 0.000000e+00 : f32
    %15 = vector.broadcast %cst_11 : f32 to vector<8x512xf32>
    %16 = arith.maximumf %14, %15 : vector<8x512xf32>
    %17 = arith.truncf %16 : vector<8x512xf32> to vector<8x512xbf16>
    %c0_12 = arith.constant 0 : index
    %c0_13 = arith.constant 0 : index
    %18 = vector.load %arg6[%c0_12, %c0_13] : memref<512x256xbf16, #tpu.memory_space<vmem>>, vector<512x256xbf16>
    %cst_14 = arith.constant dense<0.000000e+00> : vector<8x256xf32>
    %19 = tpu.matmul %17, %18, %cst_14 {dimension_numbers = #tpu.dot_dimension_numbers<[1], [0], [0], [1], [0, 0, 1, 1], [], []>} : vector<8x512xbf16>, vector<512x256xbf16>, vector<8x256xf32> -> vector<8x256xf32>
    %c0_15 = arith.constant 0 : index
    %c0_16 = arith.constant 0 : index
    %20 = vector.load %arg7[%c0_15, %c0_16] : memref<1x256xf32, #tpu.memory_space<vmem>>, vector<1x256xf32>
    %21 = vector.broadcast %20 : vector<1x256xf32> to vector<8x256xf32>
    %22 = arith.addf %19, %21 : vector<8x256xf32>
    %cst_17 = arith.constant 0.000000e+00 : f32
    %23 = vector.broadcast %cst_17 : f32 to vector<8x256xf32>
    %24 = arith.maximumf %22, %23 : vector<8x256xf32>
    %25 = arith.truncf %24 : vector<8x256xf32> to vector<8x256xbf16>
    %c0_18 = arith.constant 0 : index
    %c0_19 = arith.constant 0 : index
    %26 = vector.load %arg8[%c0_18, %c0_19] : memref<256x128xbf16, #tpu.memory_space<vmem>>, vector<256x128xbf16>
    %cst_20 = arith.constant dense<0.000000e+00> : vector<8x128xf32>
    %27 = tpu.matmul %25, %26, %cst_20 {dimension_numbers = #tpu.dot_dimension_numbers<[1], [0], [0], [1], [0, 0, 1, 1], [], []>} : vector<8x256xbf16>, vector<256x128xbf16>, vector<8x128xf32> -> vector<8x128xf32>
    %c0_21 = arith.constant 0 : index
    %c0_22 = arith.constant 0 : index
    %28 = vector.load %arg9[%c0_21, %c0_22] : memref<1x128xf32, #tpu.memory_space<vmem>>, vector<1x128xf32>
    %29 = vector.broadcast %28 : vector<1x128xf32> to vector<8x128xf32>
    %30 = arith.addf %27, %29 : vector<8x128xf32>
    %31 = arith.truncf %30 : vector<8x128xf32> to vector<8x128xbf16>
    %c0_23 = arith.constant 0 : index
    %c0_24 = arith.constant 0 : index
    %32 = vector.load %arg10[%c0_23, %c0_24] : memref<128x896xbf16, #tpu.memory_space<vmem>>, vector<128x896xbf16>
    %cst_25 = arith.constant dense<0.000000e+00> : vector<8x896xf32>
    %33 = tpu.matmul %31, %32, %cst_25 {dimension_numbers = #tpu.dot_dimension_numbers<[1], [0], [0], [1], [0, 0, 1, 1], [], []>} : vector<8x128xbf16>, vector<128x896xbf16>, vector<8x896xf32> -> vector<8x896xf32>
    %c0_26 = arith.constant 0 : index
    %c0_27 = arith.constant 0 : index
    %34 = vector.load %arg11[%c0_26, %c0_27] : memref<1x896xf32, #tpu.memory_space<vmem>>, vector<1x896xf32>
    %35 = vector.broadcast %34 : vector<1x896xf32> to vector<8x896xf32>
    %36 = arith.addf %33, %35 : vector<8x896xf32>
    %37 = math.tanh %36 : vector<8x896xf32>
    %38 = vector.extract_strided_slice %37 {offsets = [0, 0], sizes = [8, 784], strides = [1, 1]} : vector<8x896xf32> to vector<8x784xf32>
    %c0_28 = arith.constant 0 : index
    %c0_29 = arith.constant 0 : index
    %39 = vector.load %arg12[%c0_28, %c0_29] : memref<8x784xf32, #tpu.memory_space<vmem>>, vector<8x784xf32>
    tpu.vector_store %arg12[%c0_28, %c0_29], %38 {strides = array<i32>} : memref<8x784xf32, #tpu.memory_space<vmem>>, vector<8x784xf32>,
    return
  }
  func.func @transform_0(%arg0: i32) -> (i32, i32) {
    %c0_i32 = arith.constant 0 : i32
    %c0_i32_0 = arith.constant 0 : i32
    return %arg0, %c0_i32 : i32, i32
  }
  func.func @transform_1(%arg0: i32) -> (i32, i32) {
    %c0_i32 = arith.constant 0 : i32
    %c0_i32_0 = arith.constant 0 : i32
    %c0_i32_1 = arith.constant 0 : i32
    return %c0_i32, %c0_i32_0 : i32, i32
  }
  func.func @transform_2(%arg0: i32) -> (i32, i32) {
    %c0_i32 = arith.constant 0 : i32
    %c0_i32_0 = arith.constant 0 : i32
    %c0_i32_1 = arith.constant 0 : i32
    return %c0_i32, %c0_i32_0 : i32, i32
  }
  func.func @transform_3(%arg0: i32) -> (i32, i32) {
    %c0_i32 = arith.constant 0 : i32
    %c0_i32_0 = arith.constant 0 : i32
    %c0_i32_1 = arith.constant 0 : i32
    return %c0_i32, %c0_i32_0 : i32, i32
  }
  func.func @transform_4(%arg0: i32) -> (i32, i32) {
    %c0_i32 = arith.constant 0 : i32
    %c0_i32_0 = arith.constant 0 : i32
    %c0_i32_1 = arith.constant 0 : i32
    return %c0_i32, %c0_i32_0 : i32, i32
  }
  func.func @transform_5(%arg0: i32) -> (i32, i32) {
    %c0_i32 = arith.constant 0 : i32
    %c0_i32_0 = arith.constant 0 : i32
    %c0_i32_1 = arith.constant 0 : i32
    return %c0_i32, %c0_i32_0 : i32, i32
  }
  func.func @transform_6(%arg0: i32) -> (i32, i32) {
    %c0_i32 = arith.constant 0 : i32
    %c0_i32_0 = arith.constant 0 : i32
    %c0_i32_1 = arith.constant 0 : i32
    return %c0_i32, %c0_i32_0 : i32, i32
  }
  func.func @transform_7(%arg0: i32) -> (i32, i32) {
    %c0_i32 = arith.constant 0 : i32
    %c0_i32_0 = arith.constant 0 : i32
    %c0_i32_1 = arith.constant 0 : i32
    return %c0_i32, %c0_i32_0 : i32, i32
  }
  func.func @transform_8(%arg0: i32) -> (i32, i32) {
    %c0_i32 = arith.constant 0 : i32
    %c0_i32_0 = arith.constant 0 : i32
    %c0_i32_1 = arith.constant 0 : i32
    return %c0_i32, %c0_i32_0 : i32, i32
  }
  func.func @transform_9(%arg0: i32) -> (i32, i32) {
    %c0_i32 = arith.constant 0 : i32
    %c0_i32_0 = arith.constant 0 : i32
    %c0_i32_1 = arith.constant 0 : i32
    return %c0_i32, %c0_i32_0 : i32, i32
  }
  func.func @transform_10(%arg0: i32) -> (i32, i32) {
    %c0_i32 = arith.constant 0 : i32
    %c0_i32_0 = arith.constant 0 : i32
    %c0_i32_1 = arith.constant 0 : i32
    return %c0_i32, %c0_i32_0 : i32, i32
  }
  func.func @transform_11(%arg0: i32) -> (i32, i32) {
    %c0_i32 = arith.constant 0 : i32
    %c0_i32_0 = arith.constant 0 : i32
    return %arg0, %c0_i32 : i32, i32
  }
}

</mosaic_0001>

<llo_original>
// kernel: tpu_custom_call.1
$region0: #{tpu_custom_call.1}
  #allocation0 [shape = 'u32[]', space=smem, size = 0x4, offset = 0x4, fixed_abs, tag = 'smem constant byte address 0x4 - core index']
  #allocation1 [shape = 'u32[72,128]{1,0:T(1,128)}', space=vmem, size = 0x9000, scoped, tag = 'internal scratch']
  %s0 = inlined_call_operand.hbm [shape: f32[8,128], index: 0, kind: input, shape index: {}]
  %s1 = inlined_call_operand.hbm [shape: bf16[128,1024], index: 1, kind: input, shape index: {}]
  %s2 = inlined_call_operand.hbm [shape: f32[1,1024], index: 2, kind: input, shape index: {}]
  %s3 = inlined_call_operand.hbm [shape: bf16[1024,512], index: 3, kind: input, shape index: {}]
  %s4 = inlined_call_operand.hbm [shape: f32[1,512], index: 4, kind: input, shape index: {}]
  %s5 = inlined_call_operand.hbm [shape: bf16[512,256], index: 5, kind: input, shape index: {}]
  %s6 = inlined_call_operand.vmem [shape: f32[1,256], index: 6, kind: input, shape index: {}]
  %s7 = inlined_call_operand.hbm [shape: bf16[256,128], index: 7, kind: input, shape index: {}]
  %s8 = inlined_call_operand.hbm [shape: f32[1,128], index: 8, kind: input, shape index: {}]
  %s9 = inlined_call_operand.hbm [shape: bf16[128,896], index: 9, kind: input, shape index: {}]
  %s10 = inlined_call_operand.vmem [shape: f32[1,896], index: 10, kind: input, shape index: {}]
  %s11 = inlined_call_operand.hbm [shape: f32[8,784], index: 11, kind: output, shape index: {}]
  %s12 = sld [smem:[#allocation0]]
  $region90: #{tpu_custom_call.1} parent=0
    _
  %s14 = ssub.s32 1, %s12
  %s15 = scalar_select 0, %s14, %s12
  $region1: #{tpu_custom_call.1} parent=0
    #allocation2 [shape = 'u8[4096]{0}', space=vmem, size = 0x1000, scoped, tag = 'input window, operand 0, single buffered']
    #allocation3 [shape = 's32[1]{0}', space=sflag, size = 0x4, scoped, tag = 'scoped memory for tpu_custom_call.1']
    #allocation4 [shape = 's32[1]{0}', space=sflag, size = 0x4, scoped, tag = 'scoped memory for tpu_custom_call.1']
    #allocation5 [shape = 'u8[262144]{0}', space=vmem, size = 0x40000, scoped, tag = 'input window, operand 1, single buffered']
    #allocation6 [shape = 's32[1]{0}', space=sflag, size = 0x4, scoped, tag = 'scoped memory for tpu_custom_call.1']
    #allocation7 [shape = 'u8[4096]{0}', space=vmem, size = 0x1000, scoped, tag = 'input window, operand 2, single buffered']
    #allocation8 [shape = 'u8[1048576]{0}', space=vmem, size = 0x100000, scoped, tag = 'input window, operand 3, single buffered']
    #allocation9 [shape = 's32[1]{0}', space=sflag, size = 0x4, scoped, tag = 'scoped memory for tpu_custom_call.1']
    #allocation10 [shape = 'u8[2048]{0}', space=vmem, size = 0x800, scoped, tag = 'input window, operand 4, single buffered']
    #allocation11 [shape = 'u8[262144]{0}', space=vmem, size = 0x40000, scoped, tag = 'input window, operand 5, single buffered']
    #allocation12 [shape = 's32[1]{0}', space=sflag, size = 0x4, scoped, tag = 'scoped memory for tpu_custom_call.1']
    #allocation13 [shape = 'u8[65536]{0}', space=vmem, size = 0x10000, scoped, tag = 'input window, operand 7, single buffered']
    #allocation14 [shape = 'u8[512]{0}', space=vmem, size = 0x400, scoped, tag = 'input window, operand 8, single buffered']
    #allocation15 [shape = 's32[1]{0}', space=sflag, size = 0x4, scoped, tag = 'scoped memory for tpu_custom_call.1']
    #allocation16 [shape = 'u8[229376]{0}', space=vmem, size = 0x38000, scoped, tag = 'input window, operand 9, single buffered']
    #allocation17 [shape = 'u8[28672]{0}', space=vmem, size = 0x7000, scoped, tag = 'output window, operand 0, single buffered']
    %16 = vsyncpa [#allocation3], 0
    %17 = vsyncpa [#allocation6], 0
    %18 = vsyncpa [#allocation9], 0
    %19 = vsyncpa [#allocation12], 0
    %20 = vsyncpa [#allocation15], 0
    %21 = vsyncpa [#allocation4], 0
    // Predicated region
    $region2: #{tpu_custom_call.1} parent=1 // pred_check
      _
    $region3: #{tpu_custom_call.1} parent=1 // pred_check_branch
      %23 = sbr.rel (0) target = $region5
    $region4: #{tpu_custom_call.1} parent=1 // pred_region
      %25 = vsyncadd [#allocation3], 0
      %s27 = sshll.u32 %s0, 4
      %s28 = int_to_ptr.hbm [resolvable:$true] %s27
      %s29 = sshll.u32 [#allocation2], 4
      %s30 = int_to_ptr.vmem [resolvable:$true] %s29
      %32 = dma.hbm_to_vmem [thread:$0]  %s28, 128, %s30, [#allocation3]
    $region5: #{tpu_custom_call.1} parent=1 // pred_fallthru
      _
    // Predicated region
    $region6: #{tpu_custom_call.1} parent=1 // pred_check
      _
    $region7: #{tpu_custom_call.1} parent=1 // pred_check_branch
      %34 = sbr.rel (0) target = $region9
    $region8: #{tpu_custom_call.1} parent=1 // pred_region
      %36 = vsyncadd [#allocation6], 0
      %s37 = sshll.u32 %s1, 4
      %s38 = int_to_ptr.hbm [resolvable:$true] %s37
      %s39 = sshll.u32 [#allocation5], 4
      %s40 = int_to_ptr.vmem [resolvable:$true] %s39
      %45 = dma.hbm_to_vmem [thread:$0]  %s38, 8192, %s40, [#allocation6], 512, 512, 32
    $region9: #{tpu_custom_call.1} parent=1 // pred_fallthru
      _
    // Predicated region
    $region10: #{tpu_custom_call.1} parent=1 // pred_check
      _
    $region11: #{tpu_custom_call.1} parent=1 // pred_check_branch
      %47 = sbr.rel (0) target = $region13
    $region12: #{tpu_custom_call.1} parent=1 // pred_region
      %49 = vsyncadd [#allocation6], 0
      %s51 = sshll.u32 %s2, 4
      %s52 = int_to_ptr.hbm [resolvable:$true] %s51
      %s53 = sshll.u32 [#allocation7], 4
      %s54 = int_to_ptr.vmem [resolvable:$true] %s53
      %56 = dma.hbm_to_vmem [thread:$0]  %s52, 128, %s54, [#allocation6]
    $region13: #{tpu_custom_call.1} parent=1 // pred_fallthru
      _
    // Predicated region
    $region14: #{tpu_custom_call.1} parent=1 // pred_check
      _
    $region15: #{tpu_custom_call.1} parent=1 // pred_check_branch
      %58 = sbr.rel (0) target = $region17
    $region16: #{tpu_custom_call.1} parent=1 // pred_region
      %60 = vsyncadd [#allocation9], 0
      %s61 = sshll.u32 %s3, 4
      %s62 = int_to_ptr.hbm [resolvable:$true] %s61
      %s63 = sshll.u32 [#allocation8], 4
      %s64 = int_to_ptr.vmem [resolvable:$true] %s63
      %69 = dma.hbm_to_vmem [thread:$0]  %s62, 32768, %s64, [#allocation9], 256, 256, 16
    $region17: #{tpu_custom_call.1} parent=1 // pred_fallthru
      _
    // Predicated region
    $region18: #{tpu_custom_call.1} parent=1 // pred_check
      _
    $region19: #{tpu_custom_call.1} parent=1 // pred_check_branch
      %71 = sbr.rel (0) target = $region21
    $region20: #{tpu_custom_call.1} parent=1 // pred_region
      %73 = vsyncadd [#allocation9], 0
      %s75 = sshll.u32 %s4, 4
      %s76 = int_to_ptr.hbm [resolvable:$true] %s75
      %s77 = sshll.u32 [#allocation10], 4
      %s78 = int_to_ptr.vmem [resolvable:$true] %s77
      %80 = dma.hbm_to_vmem [thread:$0]  %s76, 64, %s78, [#allocation9]
    $region21: #{tpu_custom_call.1} parent=1 // pred_fallthru
      _
    // Predicated region
    $region22: #{tpu_custom_call.1} parent=1 // pred_check
      _
    $region23: #{tpu_custom_call.1} parent=1 // pred_check_branch
      %82 = sbr.rel (0) target = $region25
    $region24: #{tpu_custom_call.1} parent=1 // pred_region
      %84 = vsyncadd [#allocation12], 0
      %s85 = sshll.u32 %s5, 4
      %s86 = int_to_ptr.hbm [resolvable:$true] %s85
      %s87 = sshll.u32 [#allocation11], 4
      %s88 = int_to_ptr.vmem [resolvable:$true] %s87
      %93 = dma.hbm_to_vmem [thread:$0]  %s86, 8192, %s88, [#allocation12], 128, 128, 8
    $region25: #{tpu_custom_call.1} parent=1 // pred_fallthru
      _
    // Predicated region
    $region26: #{tpu_custom_call.1} parent=1 // pred_check
      _
    $region27: #{tpu_custom_call.1} parent=1 // pred_check_branch
      %95 = sbr.rel (0) target = $region29
    $region28: #{tpu_custom_call.1} parent=1 // pred_region
      _
    $region29: #{tpu_custom_call.1} parent=1 // pred_fallthru
      _
    // Predicated region
    $region30: #{tpu_custom_call.1} parent=1 // pred_check
      _
    $region31: #{tpu_custom_call.1} parent=1 // pred_check_branch
      %97 = sbr.rel (0) target = $region33
    $region32: #{tpu_custom_call.1} parent=1 // pred_region
      %99 = vsyncadd [#allocation12], 0
      %s100 = sshll.u32 %s7, 4
      %s101 = int_to_ptr.hbm [resolvable:$true] %s100
      %s102 = sshll.u32 [#allocation13], 4
      %s103 = int_to_ptr.vmem [resolvable:$true] %s102
      %108 = dma.hbm_to_vmem [thread:$0]  %s101, 2048, %s103, [#allocation12], 64, 64, 4
    $region33: #{tpu_custom_call.1} parent=1 // pred_fallthru
      _
    // Predicated region
    $region34: #{tpu_custom_call.1} parent=1 // pred_check
      _
    $region35: #{tpu_custom_call.1} parent=1 // pred_check_branch
      %110 = sbr.rel (0) target = $region37
    $region36: #{tpu_custom_call.1} parent=1 // pred_region
      %112 = vsyncadd [#allocation15], 0
      %s114 = sshll.u32 %s8, 4
      %s115 = int_to_ptr.hbm [resolvable:$true] %s114
      %s116 = sshll.u32 [#allocation14], 4
      %s117 = int_to_ptr.vmem [resolvable:$true] %s116
      %119 = dma.hbm_to_vmem [thread:$0]  %s115, 16, %s117, [#allocation15]
    $region37: #{tpu_custom_call.1} parent=1 // pred_fallthru
      _
    // Predicated region
    $region38: #{tpu_custom_call.1} parent=1 // pred_check
      _
    $region39: #{tpu_custom_call.1} parent=1 // pred_check_branch
      %121 = sbr.rel (0) target = $region41
    $region40: #{tpu_custom_call.1} parent=1 // pred_region
      %123 = vsyncadd [#allocation15], 0
      %s124 = sshll.u32 %s9, 4
      %s125 = int_to_ptr.hbm [resolvable:$true] %s124
      %s126 = sshll.u32 [#allocation16], 4
      %s127 = int_to_ptr.vmem [resolvable:$true] %s126
      %132 = dma.hbm_to_vmem [thread:$0]  %s125, 7168, %s127, [#allocation15], 448, 448, 28
    $region41: #{tpu_custom_call.1} parent=1 // pred_fallthru
      _
    // Predicated region
    $region42: #{tpu_custom_call.1} parent=1 // pred_check
      _
    $region43: #{tpu_custom_call.1} parent=1 // pred_check_branch
      %134 = sbr.rel (0) target = $region45
    $region44: #{tpu_custom_call.1} parent=1 // pred_region
      _
    $region45: #{tpu_custom_call.1} parent=1 // pred_fallthru
      _
    // Predicated region
    $region46: #{tpu_custom_call.1} parent=1 // pred_check
      _
    $region47: #{tpu_custom_call.1} parent=1 // pred_check_branch
      %136 = sbr.rel (0) target = $region49
    $region48: #{tpu_custom_call.1} parent=1 // pred_region
      %138 = dma.done [#allocation3], 128
    $region49: #{tpu_custom_call.1} parent=1 // pred_fallthru
      _
    // Predicated region
    $region50: #{tpu_custom_call.1} parent=1 // pred_check
      _
    $region51: #{tpu_custom_call.1} parent=1 // pred_check_branch
      %140 = sbr.rel (0) target = $region53
    $region52: #{tpu_custom_call.1} parent=1 // pred_region
      %142 = dma.done [#allocation6], 8192
    $region53: #{tpu_custom_call.1} parent=1 // pred_fallthru
      _
    // Predicated region
    $region54: #{tpu_custom_call.1} parent=1 // pred_check
      _
    $region55: #{tpu_custom_call.1} parent=1 // pred_check_branch
      %144 = sbr.rel (0) target = $region57
    $region56: #{tpu_custom_call.1} parent=1 // pred_region
      %146 = dma.done [#allocation6], 128
    $region57: #{tpu_custom_call.1} parent=1 // pred_fallthru
      _
    // Predicated region
    $region58: #{tpu_custom_call.1} parent=1 // pred_check
      _
    $region59: #{tpu_custom_call.1} parent=1 // pred_check_branch
      %148 = sbr.rel (0) target = $region61
    $region60: #{tpu_custom_call.1} parent=1 // pred_region
      %150 = dma.done [#allocation9], 32768
    $region61: #{tpu_custom_call.1} parent=1 // pred_fallthru
      _
    // Predicated region
    $region62: #{tpu_custom_call.1} parent=1 // pred_check
      _
    $region63: #{tpu_custom_call.1} parent=1 // pred_check_branch
      %152 = sbr.rel (0) target = $region65
    $region64: #{tpu_custom_call.1} parent=1 // pred_region
      %154 = dma.done [#allocation9], 64
    $region65: #{tpu_custom_call.1} parent=1 // pred_fallthru
      _
    // Predicated region
    $region66: #{tpu_custom_call.1} parent=1 // pred_check
      _
    $region67: #{tpu_custom_call.1} parent=1 // pred_check_branch
      %156 = sbr.rel (0) target = $region69
    $region68: #{tpu_custom_call.1} parent=1 // pred_region
      %158 = dma.done [#allocation12], 8192
    $region69: #{tpu_custom_call.1} parent=1 // pred_fallthru
      _
    // Predicated region
    $region70: #{tpu_custom_call.1} parent=1 // pred_check
      _
    $region71: #{tpu_custom_call.1} parent=1 // pred_check_branch
      %160 = sbr.rel (0) target = $region73
    $region72: #{tpu_custom_call.1} parent=1 // pred_region
      %162 = dma.done [#allocation12], 2048
    $region73: #{tpu_custom_call.1} parent=1 // pred_fallthru
      _
    // Predicated region
    $region74: #{tpu_custom_call.1} parent=1 // pred_check
      _
    $region75: #{tpu_custom_call.1} parent=1 // pred_check_branch
      %164 = sbr.rel (0) target = $region77
    $region76: #{tpu_custom_call.1} parent=1 // pred_region
      %166 = dma.done [#allocation15], 16
    $region77: #{tpu_custom_call.1} parent=1 // pred_fallthru
      _
    // Predicated region
    $region78: #{tpu_custom_call.1} parent=1 // pred_check
      _
    $region79: #{tpu_custom_call.1} parent=1 // pred_check_branch
      %168 = sbr.rel (0) target = $region81
    $region80: #{tpu_custom_call.1} parent=1 // pred_region
      %170 = dma.done [#allocation15], 7168
    $region81: #{tpu_custom_call.1} parent=1 // pred_fallthru
      _
    %v171 = vld [vmem:[#allocation2] sm:$0xff]
    %v172 = vpack.c.bf16 %v171, %v171
    %v173 = vld [vmem:[#allocation5] sm:$0xff]
    %v174 = vld [vmem:[#allocation5 + $0x8] sm:$0xff]
    %v175 = vld [vmem:[#allocation5 + $0x10] sm:$0xff]
    %v176 = vld [vmem:[#allocation5 + $0x18] sm:$0xff]
    %v177 = vld [vmem:[#allocation5 + $0x20] sm:$0xff]
    %v178 = vld [vmem:[#allocation5 + $0x28] sm:$0xff]
    %v179 = vld [vmem:[#allocation5 + $0x30] sm:$0xff]
    %v180 = vld [vmem:[#allocation5 + $0x38] sm:$0xff]
    %v181 = vld [vmem:[#allocation5 + $0x40] sm:$0xff]
    %v182 = vld [vmem:[#allocation5 + $0x48] sm:$0xff]
    %v183 = vld [vmem:[#allocation5 + $0x50] sm:$0xff]
    %v184 = vld [vmem:[#allocation5 + $0x58] sm:$0xff]
    %v185 = vld [vmem:[#allocation5 + $0x60] sm:$0xff]
    %v186 = vld [vmem:[#allocation5 + $0x68] sm:$0xff]
    %v187 = vld [vmem:[#allocation5 + $0x70] sm:$0xff]
    %v188 = vld [vmem:[#allocation5 + $0x78] sm:$0xff]
    %v189 = vld [vmem:[#allocation5 + $0x80] sm:$0xff]
    %v190 = vld [vmem:[#allocation5 + $0x88] sm:$0xff]
    %v191 = vld [vmem:[#allocation5 + $0x90] sm:$0xff]
    %v192 = vld [vmem:[#allocation5 + $0x98] sm:$0xff]
    %v193 = vld [vmem:[#allocation5 + $0xa0] sm:$0xff]
    %v194 = vld [vmem:[#allocation5 + $0xa8] sm:$0xff]
    %v195 = vld [vmem:[#allocation5 + $0xb0] sm:$0xff]
    %v196 = vld [vmem:[#allocation5 + $0xb8] sm:$0xff]
    %v197 = vld [vmem:[#allocation5 + $0xc0] sm:$0xff]
    %v198 = vld [vmem:[#allocation5 + $0xc8] sm:$0xff]
    %v199 = vld [vmem:[#allocation5 + $0xd0] sm:$0xff]
    %v200 = vld [vmem:[#allocation5 + $0xd8] sm:$0xff]
    %v201 = vld [vmem:[#allocation5 + $0xe0] sm:$0xff]
    %v202 = vld [vmem:[#allocation5 + $0xe8] sm:$0xff]
    %v203 = vld [vmem:[#allocation5 + $0xf0] sm:$0xff]
    %v204 = vld [vmem:[#allocation5 + $0xf8] sm:$0xff]
    %v205 = vld [vmem:[#allocation5 + $0x100] sm:$0xff]
    %v206 = vld [vmem:[#allocation5 + $0x108] sm:$0xff]
    %v207 = vld [vmem:[#allocation5 + $0x110] sm:$0xff]
    %v208 = vld [vmem:[#allocation5 + $0x118] sm:$0xff]
    %v209 = vld [vmem:[#allocation5 + $0x120] sm:$0xff]
    %v210 = vld [vmem:[#allocation5 + $0x128] sm:$0xff]
    %v211 = vld [vmem:[#allocation5 + $0x130] sm:$0xff]
    %v212 = vld [vmem:[#allocation5 + $0x138] sm:$0xff]
    %v213 = vld [vmem:[#allocation5 + $0x140] sm:$0xff]
    %v214 = vld [vmem:[#allocation5 + $0x148] sm:$0xff]
    %v215 = vld [vmem:[#allocation5 + $0x150] sm:$0xff]
    %v216 = vld [vmem:[#allocation5 + $0x158] sm:$0xff]
    %v217 = vld [vmem:[#allocation5 + $0x160] sm:$0xff]
    %v218 = vld [vmem:[#allocation5 + $0x168] sm:$0xff]
    %v219 = vld [vmem:[#allocation5 + $0x170] sm:$0xff]
    %v220 = vld [vmem:[#allocation5 + $0x178] sm:$0xff]
    %v221 = vld [vmem:[#allocation5 + $0x180] sm:$0xff]
    %v222 = vld [vmem:[#allocation5 + $0x188] sm:$0xff]
    %v223 = vld [vmem:[#allocation5 + $0x190] sm:$0xff]
    %v224 = vld [vmem:[#allocation5 + $0x198] sm:$0xff]
    %v225 = vld [vmem:[#allocation5 + $0x1a0] sm:$0xff]
    %v226 = vld [vmem:[#allocation5 + $0x1a8] sm:$0xff]
    %v227 = vld [vmem:[#allocation5 + $0x1b0] sm:$0xff]
    %v228 = vld [vmem:[#allocation5 + $0x1b8] sm:$0xff]
    %v229 = vld [vmem:[#allocation5 + $0x1c0] sm:$0xff]
    %v230 = vld [vmem:[#allocation5 + $0x1c8] sm:$0xff]
    %v231 = vld [vmem:[#allocation5 + $0x1d0] sm:$0xff]
    %v232 = vld [vmem:[#allocation5 + $0x1d8] sm:$0xff]
    %v233 = vld [vmem:[#allocation5 + $0x1e0] sm:$0xff]
    %v234 = vld [vmem:[#allocation5 + $0x1e8] sm:$0xff]
    %v235 = vld [vmem:[#allocation5 + $0x1f0] sm:$0xff]
    %v236 = vld [vmem:[#allocation5 + $0x1f8] sm:$0xff]
    %v237 = vld [vmem:[#allocation7] sm:$0xff]
    %v239 = vperm.slane %v237, 0
    %v240 = vperm.slane %v237, 1
    %v241 = vperm.slane %v237, 2
    %v242 = vperm.slane %v237, 3
    %v243 = vperm.slane %v237, 4
    %v244 = vperm.slane %v237, 5
    %v245 = vperm.slane %v237, 6
    %v246 = vperm.slane %v237, 7
    %v319 = vunpack.c.l.b16 %v173
    %v320 = vunpack.c.h.b16 %v173
    %v321 = vunpack.c.l.b16 %v174
    %v322 = vunpack.c.h.b16 %v174
    %v323 = vunpack.c.l.b16 %v175
    %v324 = vunpack.c.h.b16 %v175
    %v325 = vunpack.c.l.b16 %v176
    %v326 = vunpack.c.h.b16 %v176
    %v327 = vunpack.c.l.b16 %v177
    %v328 = vunpack.c.h.b16 %v177
    %v329 = vunpack.c.l.b16 %v178
    %v330 = vunpack.c.h.b16 %v178
    %v331 = vunpack.c.l.b16 %v179
    %v332 = vunpack.c.h.b16 %v179
    %v333 = vunpack.c.l.b16 %v180
    %v334 = vunpack.c.h.b16 %v180
    %v335 = vunpack.c.l.b16 %v181
    %v336 = vunpack.c.h.b16 %v181
    %v337 = vunpack.c.l.b16 %v182
    %v338 = vunpack.c.h.b16 %v182
    %v339 = vunpack.c.l.b16 %v183
    %v340 = vunpack.c.h.b16 %v183
    %v341 = vunpack.c.l.b16 %v184
    %v342 = vunpack.c.h.b16 %v184
    %v343 = vunpack.c.l.b16 %v185
    %v344 = vunpack.c.h.b16 %v185
    %v345 = vunpack.c.l.b16 %v186
    %v346 = vunpack.c.h.b16 %v186
    %v347 = vunpack.c.l.b16 %v187
    %v348 = vunpack.c.h.b16 %v187
    %v349 = vunpack.c.l.b16 %v188
    %v350 = vunpack.c.h.b16 %v188
    %v351 = vunpack.c.l.b16 %v189
    %v352 = vunpack.c.h.b16 %v189
    %v353 = vunpack.c.l.b16 %v190
    %v354 = vunpack.c.h.b16 %v190
    %v355 = vunpack.c.l.b16 %v191
    %v356 = vunpack.c.h.b16 %v191
    %v357 = vunpack.c.l.b16 %v192
    %v358 = vunpack.c.h.b16 %v192
    %v359 = vunpack.c.l.b16 %v193
    %v360 = vunpack.c.h.b16 %v193
    %v361 = vunpack.c.l.b16 %v194
    %v362 = vunpack.c.h.b16 %v194
    %v363 = vunpack.c.l.b16 %v195
    %v364 = vunpack.c.h.b16 %v195
    %v365 = vunpack.c.l.b16 %v196
    %v366 = vunpack.c.h.b16 %v196
    %v367 = vunpack.c.l.b16 %v197
    %v368 = vunpack.c.h.b16 %v197
    %v369 = vunpack.c.l.b16 %v198
    %v370 = vunpack.c.h.b16 %v198
    %v371 = vunpack.c.l.b16 %v199
    %v372 = vunpack.c.h.b16 %v199
    %v373 = vunpack.c.l.b16 %v200
    %v374 = vunpack.c.h.b16 %v200
    %v375 = vunpack.c.l.b16 %v201
    %v376 = vunpack.c.h.b16 %v201
    %v377 = vunpack.c.l.b16 %v202
    %v378 = vunpack.c.h.b16 %v202
    %v379 = vunpack.c.l.b16 %v203
    %v380 = vunpack.c.h.b16 %v203
    %v381 = vunpack.c.l.b16 %v204
    %v382 = vunpack.c.h.b16 %v204
    %v383 = vunpack.c.l.b16 %v205
    %v384 = vunpack.c.h.b16 %v205
    %v385 = vunpack.c.l.b16 %v206
    %v386 = vunpack.c.h.b16 %v206
    %v387 = vunpack.c.l.b16 %v207
    %v388 = vunpack.c.h.b16 %v207
    %v389 = vunpack.c.l.b16 %v208
    %v390 = vunpack.c.h.b16 %v208
    %v391 = vunpack.c.l.b16 %v209
    %v392 = vunpack.c.h.b16 %v209
    %v393 = vunpack.c.l.b16 %v210
    %v394 = vunpack.c.h.b16 %v210
    %v395 = vunpack.c.l.b16 %v211
    %v396 = vunpack.c.h.b16 %v211
    %v397 = vunpack.c.l.b16 %v212
    %v398 = vunpack.c.h.b16 %v212
    %v399 = vunpack.c.l.b16 %v213
    %v400 = vunpack.c.h.b16 %v213
    %v401 = vunpack.c.l.b16 %v214
    %v402 = vunpack.c.h.b16 %v214
    %v403 = vunpack.c.l.b16 %v215
    %v404 = vunpack.c.h.b16 %v215
    %v405 = vunpack.c.l.b16 %v216
    %v406 = vunpack.c.h.b16 %v216
    %v407 = vunpack.c.l.b16 %v217
    %v408 = vunpack.c.h.b16 %v217
    %v409 = vunpack.c.l.b16 %v218
    %v410 = vunpack.c.h.b16 %v218
    %v411 = vunpack.c.l.b16 %v219
    %v412 = vunpack.c.h.b16 %v219
    %v413 = vunpack.c.l.b16 %v220
    %v414 = vunpack.c.h.b16 %v220
    %v415 = vunpack.c.l.b16 %v221
    %v416 = vunpack.c.h.b16 %v221
    %v417 = vunpack.c.l.b16 %v222
    %v418 = vunpack.c.h.b16 %v222
    %v419 = vunpack.c.l.b16 %v223
    %v420 = vunpack.c.h.b16 %v223
    %v421 = vunpack.c.l.b16 %v224
    %v422 = vunpack.c.h.b16 %v224
    %v423 = vunpack.c.l.b16 %v225
    %v424 = vunpack.c.h.b16 %v225
    %v425 = vunpack.c.l.b16 %v226
    %v426 = vunpack.c.h.b16 %v226
    %v427 = vunpack.c.l.b16 %v227
    %v428 = vunpack.c.h.b16 %v227
    %v429 = vunpack.c.l.b16 %v228
    %v430 = vunpack.c.h.b16 %v228
    %v431 = vunpack.c.l.b16 %v229
    %v432 = vunpack.c.h.b16 %v229
    %v433 = vunpack.c.l.b16 %v230
    %v434 = vunpack.c.h.b16 %v230
    %v435 = vunpack.c.l.b16 %v231
    %v436 = vunpack.c.h.b16 %v231
    %v437 = vunpack.c.l.b16 %v232
    %v438 = vunpack.c.h.b16 %v232
    %v439 = vunpack.c.l.b16 %v233
    %v440 = vunpack.c.h.b16 %v233
    %v441 = vunpack.c.l.b16 %v234
    %v442 = vunpack.c.h.b16 %v234
    %v443 = vunpack.c.l.b16 %v235
    %v444 = vunpack.c.h.b16 %v235
    %v445 = vunpack.c.l.b16 %v236
    %v446 = vunpack.c.h.b16 %v236
    %v447 = vpack.c.b16 %v327, %v319
    %v448 = vpack.c.b16 %v328, %v320
    %v449 = vpack.c.b16 %v329, %v321
    %v450 = vpack.c.b16 %v330, %v322
    %v451 = vpack.c.b16 %v331, %v323
    %v452 = vpack.c.b16 %v332, %v324
    %v453 = vpack.c.b16 %v333, %v325
    %v454 = vpack.c.b16 %v334, %v326
    %v455 = vpack.c.b16 %v343, %v335
    %v456 = vpack.c.b16 %v344, %v336
    %v457 = vpack.c.b16 %v345, %v337
    %v458 = vpack.c.b16 %v346, %v338
    %v459 = vpack.c.b16 %v347, %v339
    %v460 = vpack.c.b16 %v348, %v340
    %v461 = vpack.c.b16 %v349, %v341
    %v462 = vpack.c.b16 %v350, %v342
    %v463 = vpack.c.b16 %v359, %v351
    %v464 = vpack.c.b16 %v360, %v352
    %v465 = vpack.c.b16 %v361, %v353
    %v466 = vpack.c.b16 %v362, %v354
    %v467 = vpack.c.b16 %v363, %v355
    %v468 = vpack.c.b16 %v364, %v356
    %v469 = vpack.c.b16 %v365, %v357
    %v470 = vpack.c.b16 %v366, %v358
    %v471 = vpack.c.b16 %v375, %v367
    %v472 = vpack.c.b16 %v376, %v368
    %v473 = vpack.c.b16 %v377, %v369
    %v474 = vpack.c.b16 %v378, %v370
    %v475 = vpack.c.b16 %v379, %v371
    %v476 = vpack.c.b16 %v380, %v372
    %v477 = vpack.c.b16 %v381, %v373
    %v478 = vpack.c.b16 %v382, %v374
    %v479 = vpack.c.b16 %v391, %v383
    %v480 = vpack.c.b16 %v392, %v384
    %v481 = vpack.c.b16 %v393, %v385
    %v482 = vpack.c.b16 %v394, %v386
    %v483 = vpack.c.b16 %v395, %v387
    %v484 = vpack.c.b16 %v396, %v388
    %v485 = vpack.c.b16 %v397, %v389
    %v486 = vpack.c.b16 %v398, %v390
    %v487 = vpack.c.b16 %v407, %v399
    %v488 = vpack.c.b16 %v408, %v400
    %v489 = vpack.c.b16 %v409, %v401
    %v490 = vpack.c.b16 %v410, %v402
    %v491 = vpack.c.b16 %v411, %v403
    %v492 = vpack.c.b16 %v412, %v404
    %v493 = vpack.c.b16 %v413, %v405
    %v494 = vpack.c.b16 %v414, %v406
    %v495 = vpack.c.b16 %v423, %v415
    %v496 = vpack.c.b16 %v424, %v416
    %v497 = vpack.c.b16 %v425, %v417
    %v498 = vpack.c.b16 %v426, %v418
    %v499 = vpack.c.b16 %v427, %v419
    %v500 = vpack.c.b16 %v428, %v420
    %v501 = vpack.c.b16 %v429, %v421
    %v502 = vpack.c.b16 %v430, %v422
    %v503 = vpack.c.b16 %v439, %v431
    %v504 = vpack.c.b16 %v440, %v432
    %v505 = vpack.c.b16 %v441, %v433
    %v506 = vpack.c.b16 %v442, %v434
    %v507 = vpack.c.b16 %v443, %v435
    %v508 = vpack.c.b16 %v444, %v436
    %v509 = vpack.c.b16 %v445, %v437
    %v510 = vpack.c.b16 %v446, %v438
    %575 = vmatpush.bf16.msra.mxu0 %v503
    %576 = vmatpush.bf16.msra.mxu0 %v495
    %577 = vmatpush.bf16.msra.mxu0 %v487
    %578 = vmatpush.bf16.msra.mxu0 %v479
    %579 = vmatpush.bf16.msra.mxu0 %v471
    %580 = vmatpush.bf16.msra.mxu0 %v463
    %581 = vmatpush.bf16.msra.mxu0 %v455
    %582 = vmatpush.bf16.msra.mxu0 %v447
    %583 = vmatmul.bf16.gmra.mxu0 %v172
    %v584 = vpop.f32.mrf.mxu0
    %v585 = vadd.f32 %v239, %v584
    %v586 = vpop.f32.mrf.mxu0
    %587 = vdwg.mxu0
    %588 = vmatpush.bf16.msra.mxu0 %v504
    %589 = vmatpush.bf16.msra.mxu0 %v496
    %590 = vmatpush.bf16.msra.mxu0 %v488
    %591 = vmatpush.bf16.msra.mxu0 %v480
    %592 = vmatpush.bf16.msra.mxu0 %v472
    %593 = vmatpush.bf16.msra.mxu0 %v464
    %594 = vmatpush.bf16.msra.mxu0 %v456
    %595 = vmatpush.bf16.msra.mxu0 %v448
    %596 = vmatmul.bf16.gmra.mxu0 %v172
    %v597 = vpop.f32.mrf.mxu0
    %v598 = vadd.f32 %v240, %v597
    %v599 = vpop.f32.mrf.mxu0
    %600 = vdwg.mxu0
    %601 = vmatpush.bf16.msra.mxu0 %v505
    %602 = vmatpush.bf16.msra.mxu0 %v497
    %603 = vmatpush.bf16.msra.mxu0 %v489
    %604 = vmatpush.bf16.msra.mxu0 %v481
    %605 = vmatpush.bf16.msra.mxu0 %v473
    %606 = vmatpush.bf16.msra.mxu0 %v465
    %607 = vmatpush.bf16.msra.mxu0 %v457
    %608 = vmatpush.bf16.msra.mxu0 %v449
    %609 = vmatmul.bf16.gmra.mxu0 %v172
    %v610 = vpop.f32.mrf.mxu0
    %v611 = vadd.f32 %v241, %v610
    %v612 = vpop.f32.mrf.mxu0
    %613 = vdwg.mxu0
    %614 = vmatpush.bf16.msra.mxu0 %v506
    %615 = vmatpush.bf16.msra.mxu0 %v498
    %616 = vmatpush.bf16.msra.mxu0 %v490
    %617 = vmatpush.bf16.msra.mxu0 %v482
    %618 = vmatpush.bf16.msra.mxu0 %v474
    %619 = vmatpush.bf16.msra.mxu0 %v466
    %620 = vmatpush.bf16.msra.mxu0 %v458
    %621 = vmatpush.bf16.msra.mxu0 %v450
    %622 = vmatmul.bf16.gmra.mxu0 %v172
    %v623 = vpop.f32.mrf.mxu0
    %v624 = vadd.f32 %v242, %v623
    %v625 = vpop.f32.mrf.mxu0
    %626 = vdwg.mxu0
    %627 = vmatpush.bf16.msra.mxu0 %v507
    %628 = vmatpush.bf16.msra.mxu0 %v499
    %629 = vmatpush.bf16.msra.mxu0 %v491
    %630 = vmatpush.bf16.msra.mxu0 %v483
    %631 = vmatpush.bf16.msra.mxu0 %v475
    %632 = vmatpush.bf16.msra.mxu0 %v467
    %633 = vmatpush.bf16.msra.mxu0 %v459
    %634 = vmatpush.bf16.msra.mxu0 %v451
    %635 = vmatmul.bf16.gmra.mxu0 %v172
    %v636 = vpop.f32.mrf.mxu0
    %v637 = vadd.f32 %v243, %v636
    %v638 = vpop.f32.mrf.mxu0
    %639 = vdwg.mxu0
    %640 = vmatpush.bf16.msra.mxu0 %v508
    %641 = vmatpush.bf16.msra.mxu0 %v500
    %642 = vmatpush.bf16.msra.mxu0 %v492
    %643 = vmatpush.bf16.msra.mxu0 %v484
    %644 = vmatpush.bf16.msra.mxu0 %v476
    %645 = vmatpush.bf16.msra.mxu0 %v468
    %646 = vmatpush.bf16.msra.mxu0 %v460
    %647 = vmatpush.bf16.msra.mxu0 %v452
    %648 = vmatmul.bf16.gmra.mxu0 %v172
    %v649 = vpop.f32.mrf.mxu0
    %v650 = vadd.f32 %v244, %v649
    %v651 = vpop.f32.mrf.mxu0
    %652 = vdwg.mxu0
    %653 = vmatpush.bf16.msra.mxu0 %v509
    %654 = vmatpush.bf16.msra.mxu0 %v501
    %655 = vmatpush.bf16.msra.mxu0 %v493
    %656 = vmatpush.bf16.msra.mxu0 %v485
    %657 = vmatpush.bf16.msra.mxu0 %v477
    %658 = vmatpush.bf16.msra.mxu0 %v469
    %659 = vmatpush.bf16.msra.mxu0 %v461
    %660 = vmatpush.bf16.msra.mxu0 %v453
    %661 = vmatmul.bf16.gmra.mxu0 %v172
    %v662 = vpop.f32.mrf.mxu0
    %v663 = vadd.f32 %v245, %v662
    %v664 = vpop.f32.mrf.mxu0
    %665 = vdwg.mxu0
    %666 = vmatpush.bf16.msra.mxu0 %v510
    %667 = vmatpush.bf16.msra.mxu0 %v502
    %668 = vmatpush.bf16.msra.mxu0 %v494
    %669 = vmatpush.bf16.msra.mxu0 %v486
    %670 = vmatpush.bf16.msra.mxu0 %v478
    %671 = vmatpush.bf16.msra.mxu0 %v470
    %672 = vmatpush.bf16.msra.mxu0 %v462
    %673 = vmatpush.bf16.msra.mxu0 %v454
    %674 = vmatmul.bf16.gmra.mxu0 %v172
    %v675 = vpop.f32.mrf.mxu0
    %v676 = vadd.f32 %v246, %v675
    %v677 = vpop.f32.mrf.mxu0
    %678 = vdwg.mxu0
    %v679 = vmax.f32 %v585, 0.0
    %v680 = vmax.f32 %v598, 0.0
    %v681 = vmax.f32 %v611, 0.0
    %v682 = vmax.f32 %v624, 0.0
    %v683 = vmax.f32 %v637, 0.0
    %v684 = vmax.f32 %v650, 0.0
    %v685 = vmax.f32 %v663, 0.0
    %v686 = vmax.f32 %v676, 0.0
    %v687 = vpack.c.bf16 %v679, %v679
    %v688 = vpack.c.bf16 %v680, %v680
    %v689 = vpack.c.bf16 %v681, %v681
    %v690 = vpack.c.bf16 %v682, %v682
    %v691 = vpack.c.bf16 %v683, %v683
    %v692 = vpack.c.bf16 %v684, %v684
    %v693 = vpack.c.bf16 %v685, %v685
    %v694 = vpack.c.bf16 %v686, %v686
    %v695 = vld [vmem:[#allocation8] sm:$0xff]
    %v696 = vld [vmem:[#allocation8 + $0x8] sm:$0xff]
    %v697 = vld [vmem:[#allocation8 + $0x10] sm:$0xff]
    %v698 = vld [vmem:[#allocation8 + $0x18] sm:$0xff]
    %v699 = vld [vmem:[#allocation8 + $0x20] sm:$0xff]
    %v700 = vld [vmem:[#allocation8 + $0x28] sm:$0xff]
    %v701 = vld [vmem:[#allocation8 + $0x30] sm:$0xff]
    %v702 = vld [vmem:[#allocation8 + $0x38] sm:$0xff]
    %v703 = vld [vmem:[#allocation8 + $0x40] sm:$0xff]
    %v704 = vld [vmem:[#allocation8 + $0x48] sm:$0xff]
    %v705 = vld [vmem:[#allocation8 + $0x50] sm:$0xff]
    %v706 = vld [vmem:[#allocation8 + $0x58] sm:$0xff]
    %v707 = vld [vmem:[#allocation8 + $0x60] sm:$0xff]
    %v708 = vld [vmem:[#allocation8 + $0x68] sm:$0xff]
    %v709 = vld [vmem:[#allocation8 + $0x70] sm:$0xff]
    %v710 = vld [vmem:[#allocation8 + $0x78] sm:$0xff]
    %v711 = vld [vmem:[#allocation8 + $0x80] sm:$0xff]
    %v712 = vld [vmem:[#allocation8 + $0x88] sm:$0xff]
    %v713 = vld [vmem:[#allocation8 + $0x90] sm:$0xff]
    %v714 = vld [vmem:[#allocation8 + $0x98] sm:$0xff]
    %v715 = vld [vmem:[#allocation8 + $0xa0] sm:$0xff]
    %v716 = vld [vmem:[#allocation8 + $0xa8] sm:$0xff]
    %v717 = vld [vmem:[#allocation8 + $0xb0] sm:$0xff]
    %v718 = vld [vmem:[#allocation8 + $0xb8] sm:$0xff]
    %v719 = vld [vmem:[#allocation8 + $0xc0] sm:$0xff]
    %v720 = vld [vmem:[#allocation8 + $0xc8] sm:$0xff]
    %v721 = vld [vmem:[#allocation8 + $0xd0] sm:$0xff]
    %v722 = vld [vmem:[#allocation8 + $0xd8] sm:$0xff]
    %v723 = vld [vmem:[#allocation8 + $0xe0] sm:$0xff]
    %v724 = vld [vmem:[#allocation8 + $0xe8] sm:$0xff]
    %v725 = vld [vmem:[#allocation8 + $0xf0] sm:$0xff]
    %v726 = vld [vmem:[#allocation8 + $0xf8] sm:$0xff]
    %v727 = vld [vmem:[#allocation8 + $0x100] sm:$0xff]
    %v728 = vld [vmem:[#allocation8 + $0x108] sm:$0xff]
    %v729 = vld [vmem:[#allocation8 + $0x110] sm:$0xff]
    %v730 = vld [vmem:[#allocation8 + $0x118] sm:$0xff]
    %v731 = vld [vmem:[#allocation8 + $0x120] sm:$0xff]
    %v732 = vld [vmem:[#allocation8 + $0x128] sm:$0xff]
    %v733 = vld [vmem:[#allocation8 + $0x130] sm:$0xff]
    %v734 = vld [vmem:[#allocation8 + $0x138] sm:$0xff]
    %v735 = vld [vmem:[#allocation8 + $0x140] sm:$0xff]
    %v736 = vld [vmem:[#allocation8 + $0x148] sm:$0xff]
    %v737 = vld [vmem:[#allocation8 + $0x150] sm:$0xff]
    %v738 = vld [vmem:[#allocation8 + $0x158] sm:$0xff]
    %v739 = vld [vmem:[#allocation8 + $0x160] sm:$0xff]
    %v740 = vld [vmem:[#allocation8 + $0x168] sm:$0xff]
    %v741 = vld [vmem:[#allocation8 + $0x170] sm:$0xff]
    %v742 = vld [vmem:[#allocation8 + $0x178] sm:$0xff]
    %v743 = vld [vmem:[#allocation8 + $0x180] sm:$0xff]
    %v744 = vld [vmem:[#allocation8 + $0x188] sm:$0xff]
    %v745 = vld [vmem:[#allocation8 + $0x190] sm:$0xff]
    %v746 = vld [vmem:[#allocation8 + $0x198] sm:$0xff]
    %v747 = vld [vmem:[#allocation8 + $0x1a0] sm:$0xff]
    %v748 = vld [vmem:[#allocation8 + $0x1a8] sm:$0xff]
    %v749 = vld [vmem:[#allocation8 + $0x1b0] sm:$0xff]
    %v750 = vld [vmem:[#allocation8 + $0x1b8] sm:$0xff]
    %v751 = vld [vmem:[#allocation8 + $0x1c0] sm:$0xff]
    %v752 = vld [vmem:[#allocation8 + $0x1c8] sm:$0xff]
    %v753 = vld [vmem:[#allocation8 + $0x1d0] sm:$0xff]
    %v754 = vld [vmem:[#allocation8 + $0x1d8] sm:$0xff]
    %v755 = vld [vmem:[#allocation8 + $0x1e0] sm:$0xff]
    %v756 = vld [vmem:[#allocation8 + $0x1e8] sm:$0xff]
    %v757 = vld [vmem:[#allocation8 + $0x1f0] sm:$0xff]
    %v758 = vld [vmem:[#allocation8 + $0x1f8] sm:$0xff]
    %v759 = vld [vmem:[#allocation8 + $0x200] sm:$0xff]
    %v760 = vld [vmem:[#allocation8 + $0x208] sm:$0xff]
    %v761 = vld [vmem:[#allocation8 + $0x210] sm:$0xff]
    %v762 = vld [vmem:[#allocation8 + $0x218] sm:$0xff]
    %v763 = vld [vmem:[#allocation8 + $0x220] sm:$0xff]
    %v764 = vld [vmem:[#allocation8 + $0x228] sm:$0xff]
    %v765 = vld [vmem:[#allocation8 + $0x230] sm:$0xff]
    %v766 = vld [vmem:[#allocation8 + $0x238] sm:$0xff]
    %v767 = vld [vmem:[#allocation8 + $0x240] sm:$0xff]
    %v768 = vld [vmem:[#allocation8 + $0x248] sm:$0xff]
    %v769 = vld [vmem:[#allocation8 + $0x250] sm:$0xff]
    %v770 = vld [vmem:[#allocation8 + $0x258] sm:$0xff]
    %v771 = vld [vmem:[#allocation8 + $0x260] sm:$0xff]
    %v772 = vld [vmem:[#allocation8 + $0x268] sm:$0xff]
    %v773 = vld [vmem:[#allocation8 + $0x270] sm:$0xff]
    %v774 = vld [vmem:[#allocation8 + $0x278] sm:$0xff]
    %v775 = vld [vmem:[#allocation8 + $0x280] sm:$0xff]
    %v776 = vld [vmem:[#allocation8 + $0x288] sm:$0xff]
    %v777 = vld [vmem:[#allocation8 + $0x290] sm:$0xff]
    %v778 = vld [vmem:[#allocation8 + $0x298] sm:$0xff]
    %v779 = vld [vmem:[#allocation8 + $0x2a0] sm:$0xff]
    %v780 = vld [vmem:[#allocation8 + $0x2a8] sm:$0xff]
    %v781 = vld [vmem:[#allocation8 + $0x2b0] sm:$0xff]
    %v782 = vld [vmem:[#allocation8 + $0x2b8] sm:$0xff]
    %v783 = vld [vmem:[#allocation8 + $0x2c0] sm:$0xff]
    %v784 = vld [vmem:[#allocation8 + $0x2c8] sm:$0xff]
    %v785 = vld [vmem:[#allocation8 + $0x2d0] sm:$0xff]
    %v786 = vld [vmem:[#allocation8 + $0x2d8] sm:$0xff]
    %v787 = vld [vmem:[#allocation8 + $0x2e0] sm:$0xff]
    %v788 = vld [vmem:[#allocation8 + $0x2e8] sm:$0xff]
    %v789 = vld [vmem:[#allocation8 + $0x2f0] sm:$0xff]
    %v790 = vld [vmem:[#allocation8 + $0x2f8] sm:$0xff]
    %v791 = vld [vmem:[#allocation8 + $0x300] sm:$0xff]
    %v792 = vld [vmem:[#allocation8 + $0x308] sm:$0xff]
    %v793 = vld [vmem:[#allocation8 + $0x310] sm:$0xff]
    %v794 = vld [vmem:[#allocation8 + $0x318] sm:$0xff]
    %v795 = vld [vmem:[#allocation8 + $0x320] sm:$0xff]
    %v796 = vld [vmem:[#allocation8 + $0x328] sm:$0xff]
    %v797 = vld [vmem:[#allocation8 + $0x330] sm:$0xff]
    %v798 = vld [vmem:[#allocation8 + $0x338] sm:$0xff]
    %v799 = vld [vmem:[#allocation8 + $0x340] sm:$0xff]
    %v800 = vld [vmem:[#allocation8 + $0x348] sm:$0xff]
    %v801 = vld [vmem:[#allocation8 + $0x350] sm:$0xff]
    %v802 = vld [vmem:[#allocation8 + $0x358] sm:$0xff]
    %v803 = vld [vmem:[#allocation8 + $0x360] sm:$0xff]
    %v804 = vld [vmem:[#allocation8 + $0x368] sm:$0xff]
    %v805 = vld [vmem:[#allocation8 + $0x370] sm:$0xff]
    %v806 = vld [vmem:[#allocation8 + $0x378] sm:$0xff]
    %v807 = vld [vmem:[#allocation8 + $0x380] sm:$0xff]
    %v808 = vld [vmem:[#allocation8 + $0x388] sm:$0xff]
    %v809 = vld [vmem:[#allocation8 + $0x390] sm:$0xff]
    %v810 = vld [vmem:[#allocation8 + $0x398] sm:$0xff]
    %v811 = vld [vmem:[#allocation8 + $0x3a0] sm:$0xff]
    %v812 = vld [vmem:[#allocation8 + $0x3a8] sm:$0xff]
    %v813 = vld [vmem:[#allocation8 + $0x3b0] sm:$0xff]
    %v814 = vld [vmem:[#allocation8 + $0x3b8] sm:$0xff]
    %v815 = vld [vmem:[#allocation8 + $0x3c0] sm:$0xff]
    %v816 = vld [vmem:[#allocation8 + $0x3c8] sm:$0xff]
    %v817 = vld [vmem:[#allocation8 + $0x3d0] sm:$0xff]
    %v818 = vld [vmem:[#allocation8 + $0x3d8] sm:$0xff]
    %v819 = vld [vmem:[#allocation8 + $0x3e0] sm:$0xff]
    %v820 = vld [vmem:[#allocation8 + $0x3e8] sm:$0xff]
    %v821 = vld [vmem:[#allocation8 + $0x3f0] sm:$0xff]
    %v822 = vld [vmem:[#allocation8 + $0x3f8] sm:$0xff]
    %v823 = vld [vmem:[#allocation8 + $0x400] sm:$0xff]
    %v824 = vld [vmem:[#allocation8 + $0x408] sm:$0xff]
    %v825 = vld [vmem:[#allocation8 + $0x410] sm:$0xff]
    %v826 = vld [vmem:[#allocation8 + $0x418] sm:$0xff]
    %v827 = vld [vmem:[#allocation8 + $0x420] sm:$0xff]
    %v828 = vld [vmem:[#allocation8 + $0x428] sm:$0xff]
    %v829 = vld [vmem:[#allocation8 + $0x430] sm:$0xff]
    %v830 = vld [vmem:[#allocation8 + $0x438] sm:$0xff]
    %v831 = vld [vmem:[#allocation8 + $0x440] sm:$0xff]
    %v832 = vld [vmem:[#allocation8 + $0x448] sm:$0xff]
    %v833 = vld [vmem:[#allocation8 + $0x450] sm:$0xff]
    %v834 = vld [vmem:[#allocation8 + $0x458] sm:$0xff]
    %v835 = vld [vmem:[#allocation8 + $0x460] sm:$0xff]
    %v836 = vld [vmem:[#allocation8 + $0x468] sm:$0xff]
    %v837 = vld [vmem:[#allocation8 + $0x470] sm:$0xff]
    %v838 = vld [vmem:[#allocation8 + $0x478] sm:$0xff]
    %v839 = vld [vmem:[#allocation8 + $0x480] sm:$0xff]
    %v840 = vld [vmem:[#allocation8 + $0x488] sm:$0xff]
    %v841 = vld [vmem:[#allocation8 + $0x490] sm:$0xff]
    %v842 = vld [vmem:[#allocation8 + $0x498] sm:$0xff]
    %v843 = vld [vmem:[#allocation8 + $0x4a0] sm:$0xff]
    %v844 = vld [vmem:[#allocation8 + $0x4a8] sm:$0xff]
    %v845 = vld [vmem:[#allocation8 + $0x4b0] sm:$0xff]
    %v846 = vld [vmem:[#allocation8 + $0x4b8] sm:$0xff]
    %v847 = vld [vmem:[#allocation8 + $0x4c0] sm:$0xff]
    %v848 = vld [vmem:[#allocation8 + $0x4c8] sm:$0xff]
    %v849 = vld [vmem:[#allocation8 + $0x4d0] sm:$0xff]
    %v850 = vld [vmem:[#allocation8 + $0x4d8] sm:$0xff]
    %v851 = vld [vmem:[#allocation8 + $0x4e0] sm:$0xff]
    %v852 = vld [vmem:[#allocation8 + $0x4e8] sm:$0xff]
    %v853 = vld [vmem:[#allocation8 + $0x4f0] sm:$0xff]
    %v854 = vld [vmem:[#allocation8 + $0x4f8] sm:$0xff]
    %v855 = vld [vmem:[#allocation8 + $0x500] sm:$0xff]
    %v856 = vld [vmem:[#allocation8 + $0x508] sm:$0xff]
    %v857 = vld [vmem:[#allocation8 + $0x510] sm:$0xff]
    %v858 = vld [vmem:[#allocation8 + $0x518] sm:$0xff]
    %v859 = vld [vmem:[#allocation8 + $0x520] sm:$0xff]
    %v860 = vld [vmem:[#allocation8 + $0x528] sm:$0xff]
    %v861 = vld [vmem:[#allocation8 + $0x530] sm:$0xff]
    %v862 = vld [vmem:[#allocation8 + $0x538] sm:$0xff]
    %v863 = vld [vmem:[#allocation8 + $0x540] sm:$0xff]
    %v864 = vld [vmem:[#allocation8 + $0x548] sm:$0xff]
    %v865 = vld [vmem:[#allocation8 + $0x550] sm:$0xff]
    %v866 = vld [vmem:[#allocation8 + $0x558] sm:$0xff]
    %v867 = vld [vmem:[#allocation8 + $0x560] sm:$0xff]
    %v868 = vld [vmem:[#allocation8 + $0x568] sm:$0xff]
    %v869 = vld [vmem:[#allocation8 + $0x570] sm:$0xff]
    %v870 = vld [vmem:[#allocation8 + $0x578] sm:$0xff]
    %v871 = vld [vmem:[#allocation8 + $0x580] sm:$0xff]
    %v872 = vld [vmem:[#allocation8 + $0x588] sm:$0xff]
    %v873 = vld [vmem:[#allocation8 + $0x590] sm:$0xff]
    %v874 = vld [vmem:[#allocation8 + $0x598] sm:$0xff]
    %v875 = vld [vmem:[#allocation8 + $0x5a0] sm:$0xff]
    %v876 = vld [vmem:[#allocation8 + $0x5a8] sm:$0xff]
    %v877 = vld [vmem:[#allocation8 + $0x5b0] sm:$0xff]
    %v878 = vld [vmem:[#allocation8 + $0x5b8] sm:$0xff]
    %v879 = vld [vmem:[#allocation8 + $0x5c0] sm:$0xff]
    %v880 = vld [vmem:[#allocation8 + $0x5c8] sm:$0xff]
    %v881 = vld [vmem:[#allocation8 + $0x5d0] sm:$0xff]
    %v882 = vld [vmem:[#allocation8 + $0x5d8] sm:$0xff]
    %v883 = vld [vmem:[#allocation8 + $0x5e0] sm:$0xff]
    %v884 = vld [vmem:[#allocation8 + $0x5e8] sm:$0xff]
    %v885 = vld [vmem:[#allocation8 + $0x5f0] sm:$0xff]
    %v886 = vld [vmem:[#allocation8 + $0x5f8] sm:$0xff]
    %v887 = vld [vmem:[#allocation8 + $0x600] sm:$0xff]
    %v888 = vld [vmem:[#allocation8 + $0x608] sm:$0xff]
    %v889 = vld [vmem:[#allocation8 + $0x610] sm:$0xff]
    %v890 = vld [vmem:[#allocation8 + $0x618] sm:$0xff]
    %v891 = vld [vmem:[#allocation8 + $0x620] sm:$0xff]
    %v892 = vld [vmem:[#allocation8 + $0x628] sm:$0xff]
    %v893 = vld [vmem:[#allocation8 + $0x630] sm:$0xff]
    %v894 = vld [vmem:[#allocation8 + $0x638] sm:$0xff]
    %v895 = vld [vmem:[#allocation8 + $0x640] sm:$0xff]
    %v896 = vld [vmem:[#allocation8 + $0x648] sm:$0xff]
    %v897 = vld [vmem:[#allocation8 + $0x650] sm:$0xff]
    %v898 = vld [vmem:[#allocation8 + $0x658] sm:$0xff]
    %v899 = vld [vmem:[#allocation8 + $0x660] sm:$0xff]
    %v900 = vld [vmem:[#allocation8 + $0x668] sm:$0xff]
    %v901 = vld [vmem:[#allocation8 + $0x670] sm:$0xff]
    %v902 = vld [vmem:[#allocation8 + $0x678] sm:$0xff]
    %v903 = vld [vmem:[#allocation8 + $0x680] sm:$0xff]
    %v904 = vld [vmem:[#allocation8 + $0x688] sm:$0xff]
    %v905 = vld [vmem:[#allocation8 + $0x690] sm:$0xff]
    %v906 = vld [vmem:[#allocation8 + $0x698] sm:$0xff]
    %v907 = vld [vmem:[#allocation8 + $0x6a0] sm:$0xff]
    %v908 = vld [vmem:[#allocation8 + $0x6a8] sm:$0xff]
    %v909 = vld [vmem:[#allocation8 + $0x6b0] sm:$0xff]
    %v910 = vld [vmem:[#allocation8 + $0x6b8] sm:$0xff]
    %v911 = vld [vmem:[#allocation8 + $0x6c0] sm:$0xff]
    %v912 = vld [vmem:[#allocation8 + $0x6c8] sm:$0xff]
    %v913 = vld [vmem:[#allocation8 + $0x6d0] sm:$0xff]
    %v914 = vld [vmem:[#allocation8 + $0x6d8] sm:$0xff]
    %v915 = vld [vmem:[#allocation8 + $0x6e0] sm:$0xff]
    %v916 = vld [vmem:[#allocation8 + $0x6e8] sm:$0xff]
    %v917 = vld [vmem:[#allocation8 + $0x6f0] sm:$0xff]
    %v918 = vld [vmem:[#allocation8 + $0x6f8] sm:$0xff]
    %v919 = vld [vmem:[#allocation8 + $0x700] sm:$0xff]
    %v920 = vld [vmem:[#allocation8 + $0x708] sm:$0xff]
    %v921 = vld [vmem:[#allocation8 + $0x710] sm:$0xff]
    %v922 = vld [vmem:[#allocation8 + $0x718] sm:$0xff]
    %v923 = vld [vmem:[#allocation8 + $0x720] sm:$0xff]
    %v924 = vld [vmem:[#allocation8 + $0x728] sm:$0xff]
    %v925 = vld [vmem:[#allocation8 + $0x730] sm:$0xff]
    %v926 = vld [vmem:[#allocation8 + $0x738] sm:$0xff]
    %v927 = vld [vmem:[#allocation8 + $0x740] sm:$0xff]
    %v928 = vld [vmem:[#allocation8 + $0x748] sm:$0xff]
    %v929 = vld [vmem:[#allocation8 + $0x750] sm:$0xff]
    %v930 = vld [vmem:[#allocation8 + $0x758] sm:$0xff]
    %v931 = vld [vmem:[#allocation8 + $0x760] sm:$0xff]
    %v932 = vld [vmem:[#allocation8 + $0x768] sm:$0xff]
    %v933 = vld [vmem:[#allocation8 + $0x770] sm:$0xff]
    %v934 = vld [vmem:[#allocation8 + $0x778] sm:$0xff]
    %v935 = vld [vmem:[#allocation8 + $0x780] sm:$0xff]
    %v936 = vld [vmem:[#allocation8 + $0x788] sm:$0xff]
    %v937 = vld [vmem:[#allocation8 + $0x790] sm:$0xff]
    %v938 = vld [vmem:[#allocation8 + $0x798] sm:$0xff]
    %v939 = vld [vmem:[#allocation8 + $0x7a0] sm:$0xff]
    %v940 = vld [vmem:[#allocation8 + $0x7a8] sm:$0xff]
    %v941 = vld [vmem:[#allocation8 + $0x7b0] sm:$0xff]
    %v942 = vld [vmem:[#allocation8 + $0x7b8] sm:$0xff]
    %v943 = vld [vmem:[#allocation8 + $0x7c0] sm:$0xff]
    %v944 = vld [vmem:[#allocation8 + $0x7c8] sm:$0xff]
    %v945 = vld [vmem:[#allocation8 + $0x7d0] sm:$0xff]
    %v946 = vld [vmem:[#allocation8 + $0x7d8] sm:$0xff]
    %v947 = vld [vmem:[#allocation8 + $0x7e0] sm:$0xff]
    %v948 = vld [vmem:[#allocation8 + $0x7e8] sm:$0xff]
    %v949 = vld [vmem:[#allocation8 + $0x7f0] sm:$0xff]
    %v950 = vld [vmem:[#allocation8 + $0x7f8] sm:$0xff]
    %v951 = vld [vmem:[#allocation10] sm:$0xf]
    %v953 = vperm.slane %v951, 0
    %v954 = vperm.slane %v951, 1
    %v955 = vperm.slane %v951, 2
    %v956 = vperm.slane %v951, 3
    %v1217 = vunpack.c.l.b16 %v695
    %v1218 = vunpack.c.h.b16 %v695
    %v1219 = vunpack.c.l.b16 %v696
    %v1220 = vunpack.c.h.b16 %v696
    %v1221 = vunpack.c.l.b16 %v697
    %v1222 = vunpack.c.h.b16 %v697
    %v1223 = vunpack.c.l.b16 %v698
    %v1224 = vunpack.c.h.b16 %v698
    %v1225 = vunpack.c.l.b16 %v699
    %v1226 = vunpack.c.h.b16 %v699
    %v1227 = vunpack.c.l.b16 %v700
    %v1228 = vunpack.c.h.b16 %v700
    %v1229 = vunpack.c.l.b16 %v701
    %v1230 = vunpack.c.h.b16 %v701
    %v1231 = vunpack.c.l.b16 %v702
    %v1232 = vunpack.c.h.b16 %v702
    %v1233 = vunpack.c.l.b16 %v703
    %v1234 = vunpack.c.h.b16 %v703
    %v1235 = vunpack.c.l.b16 %v704
    %v1236 = vunpack.c.h.b16 %v704
    %v1237 = vunpack.c.l.b16 %v705
    %v1238 = vunpack.c.h.b16 %v705
    %v1239 = vunpack.c.l.b16 %v706
    %v1240 = vunpack.c.h.b16 %v706
    %v1241 = vunpack.c.l.b16 %v707
    %v1242 = vunpack.c.h.b16 %v707
    %v1243 = vunpack.c.l.b16 %v708
    %v1244 = vunpack.c.h.b16 %v708
    %v1245 = vunpack.c.l.b16 %v709
    %v1246 = vunpack.c.h.b16 %v709
    %v1247 = vunpack.c.l.b16 %v710
    %v1248 = vunpack.c.h.b16 %v710
    %v1249 = vunpack.c.l.b16 %v711
    %v1250 = vunpack.c.h.b16 %v711
    %v1251 = vunpack.c.l.b16 %v712
    %v1252 = vunpack.c.h.b16 %v712
    %v1253 = vunpack.c.l.b16 %v713
    %v1254 = vunpack.c.h.b16 %v713
    %v1255 = vunpack.c.l.b16 %v714
    %v1256 = vunpack.c.h.b16 %v714
    %v1257 = vunpack.c.l.b16 %v715
    %v1258 = vunpack.c.h.b16 %v715
    %v1259 = vunpack.c.l.b16 %v716
    %v1260 = vunpack.c.h.b16 %v716
    %v1261 = vunpack.c.l.b16 %v717
    %v1262 = vunpack.c.h.b16 %v717
    %v1263 = vunpack.c.l.b16 %v718
    %v1264 = vunpack.c.h.b16 %v718
    %v1265 = vunpack.c.l.b16 %v719
    %v1266 = vunpack.c.h.b16 %v719
    %v1267 = vunpack.c.l.b16 %v720
    %v1268 = vunpack.c.h.b16 %v720
    %v1269 = vunpack.c.l.b16 %v721
    %v1270 = vunpack.c.h.b16 %v721
    %v1271 = vunpack.c.l.b16 %v722
    %v1272 = vunpack.c.h.b16 %v722
    %v1273 = vunpack.c.l.b16 %v723
    %v1274 = vunpack.c.h.b16 %v723
    %v1275 = vunpack.c.l.b16 %v724
    %v1276 = vunpack.c.h.b16 %v724
    %v1277 = vunpack.c.l.b16 %v725
    %v1278 = vunpack.c.h.b16 %v725
    %v1279 = vunpack.c.l.b16 %v726
    %v1280 = vunpack.c.h.b16 %v726
    %v1281 = vunpack.c.l.b16 %v727
    %v1282 = vunpack.c.h.b16 %v727
    %v1283 = vunpack.c.l.b16 %v728
    %v1284 = vunpack.c.h.b16 %v728
    %v1285 = vunpack.c.l.b16 %v729
    %v1286 = vunpack.c.h.b16 %v729
    %v1287 = vunpack.c.l.b16 %v730
    %v1288 = vunpack.c.h.b16 %v730
    %v1289 = vunpack.c.l.b16 %v731
    %v1290 = vunpack.c.h.b16 %v731
    %v1291 = vunpack.c.l.b16 %v732
    %v1292 = vunpack.c.h.b16 %v732
    %v1293 = vunpack.c.l.b16 %v733
    %v1294 = vunpack.c.h.b16 %v733
    %v1295 = vunpack.c.l.b16 %v734
    %v1296 = vunpack.c.h.b16 %v734
    %v1297 = vunpack.c.l.b16 %v735
    %v1298 = vunpack.c.h.b16 %v735
    %v1299 = vunpack.c.l.b16 %v736
    %v1300 = vunpack.c.h.b16 %v736
    %v1301 = vunpack.c.l.b16 %v737
    %v1302 = vunpack.c.h.b16 %v737
    %v1303 = vunpack.c.l.b16 %v738
    %v1304 = vunpack.c.h.b16 %v738
    %v1305 = vunpack.c.l.b16 %v739
    %v1306 = vunpack.c.h.b16 %v739
    %v1307 = vunpack.c.l.b16 %v740
    %v1308 = vunpack.c.h.b16 %v740
    %v1309 = vunpack.c.l.b16 %v741
    %v1310 = vunpack.c.h.b16 %v741
    %v1311 = vunpack.c.l.b16 %v742
    %v1312 = vunpack.c.h.b16 %v742
    %v1313 = vunpack.c.l.b16 %v743
    %v1314 = vunpack.c.h.b16 %v743
    %v1315 = vunpack.c.l.b16 %v744
    %v1316 = vunpack.c.h.b16 %v744
    %v1317 = vunpack.c.l.b16 %v745
    %v1318 = vunpack.c.h.b16 %v745
    %v1319 = vunpack.c.l.b16 %v746
    %v1320 = vunpack.c.h.b16 %v746
    %v1321 = vunpack.c.l.b16 %v747
    %v1322 = vunpack.c.h.b16 %v747
    %v1323 = vunpack.c.l.b16 %v748
    %v1324 = vunpack.c.h.b16 %v748
    %v1325 = vunpack.c.l.b16 %v749
    %v1326 = vunpack.c.h.b16 %v749
    %v1327 = vunpack.c.l.b16 %v750
    %v1328 = vunpack.c.h.b16 %v750
    %v1329 = vunpack.c.l.b16 %v751
    %v1330 = vunpack.c.h.b16 %v751
    %v1331 = vunpack.c.l.b16 %v752
    %v1332 = vunpack.c.h.b16 %v752
    %v1333 = vunpack.c.l.b16 %v753
    %v1334 = vunpack.c.h.b16 %v753
    %v1335 = vunpack.c.l.b16 %v754
    %v1336 = vunpack.c.h.b16 %v754
    %v1337 = vunpack.c.l.b16 %v755
    %v1338 = vunpack.c.h.b16 %v755
    %v1339 = vunpack.c.l.b16 %v756
    %v1340 = vunpack.c.h.b16 %v756
    %v1341 = vunpack.c.l.b16 %v757
    %v1342 = vunpack.c.h.b16 %v757
    %v1343 = vunpack.c.l.b16 %v758
    %v1344 = vunpack.c.h.b16 %v758
    %v1345 = vunpack.c.l.b16 %v759
    %v1346 = vunpack.c.h.b16 %v759
    %v1347 = vunpack.c.l.b16 %v760
    %v1348 = vunpack.c.h.b16 %v760
    %v1349 = vunpack.c.l.b16 %v761
    %v1350 = vunpack.c.h.b16 %v761
    %v1351 = vunpack.c.l.b16 %v762
    %v1352 = vunpack.c.h.b16 %v762
    %v1353 = vunpack.c.l.b16 %v763
    %v1354 = vunpack.c.h.b16 %v763
    %v1355 = vunpack.c.l.b16 %v764
    %v1356 = vunpack.c.h.b16 %v764
    %v1357 = vunpack.c.l.b16 %v765
    %v1358 = vunpack.c.h.b16 %v765
    %v1359 = vunpack.c.l.b16 %v766
    %v1360 = vunpack.c.h.b16 %v766
    %v1361 = vunpack.c.l.b16 %v767
    %v1362 = vunpack.c.h.b16 %v767
    %v1363 = vunpack.c.l.b16 %v768
    %v1364 = vunpack.c.h.b16 %v768
    %v1365 = vunpack.c.l.b16 %v769
    %v1366 = vunpack.c.h.b16 %v769
    %v1367 = vunpack.c.l.b16 %v770
    %v1368 = vunpack.c.h.b16 %v770
    %v1369 = vunpack.c.l.b16 %v771
    %v1370 = vunpack.c.h.b16 %v771
    %v1371 = vunpack.c.l.b16 %v772
    %v1372 = vunpack.c.h.b16 %v772
    %v1373 = vunpack.c.l.b16 %v773
    %v1374 = vunpack.c.h.b16 %v773
    %v1375 = vunpack.c.l.b16 %v774
    %v1376 = vunpack.c.h.b16 %v774
    %v1377 = vunpack.c.l.b16 %v775
    %v1378 = vunpack.c.h.b16 %v775
    %v1379 = vunpack.c.l.b16 %v776
    %v1380 = vunpack.c.h.b16 %v776
    %v1381 = vunpack.c.l.b16 %v777
    %v1382 = vunpack.c.h.b16 %v777
    %v1383 = vunpack.c.l.b16 %v778
    %v1384 = vunpack.c.h.b16 %v778
    %v1385 = vunpack.c.l.b16 %v779
    %v1386 = vunpack.c.h.b16 %v779
    %v1387 = vunpack.c.l.b16 %v780
    %v1388 = vunpack.c.h.b16 %v780
    %v1389 = vunpack.c.l.b16 %v781
    %v1390 = vunpack.c.h.b16 %v781
    %v1391 = vunpack.c.l.b16 %v782
    %v1392 = vunpack.c.h.b16 %v782
    %v1393 = vunpack.c.l.b16 %v783
    %v1394 = vunpack.c.h.b16 %v783
    %v1395 = vunpack.c.l.b16 %v784
    %v1396 = vunpack.c.h.b16 %v784
    %v1397 = vunpack.c.l.b16 %v785
    %v1398 = vunpack.c.h.b16 %v785
    %v1399 = vunpack.c.l.b16 %v786
    %v1400 = vunpack.c.h.b16 %v786
    %v1401 = vunpack.c.l.b16 %v787
    %v1402 = vunpack.c.h.b16 %v787
    %v1403 = vunpack.c.l.b16 %v788
    %v1404 = vunpack.c.h.b16 %v788
    %v1405 = vunpack.c.l.b16 %v789
    %v1406 = vunpack.c.h.b16 %v789
    %v1407 = vunpack.c.l.b16 %v790
    %v1408 = vunpack.c.h.b16 %v790
    %v1409 = vunpack.c.l.b16 %v791
    %v1410 = vunpack.c.h.b16 %v791
    %v1411 = vunpack.c.l.b16 %v792
    %v1412 = vunpack.c.h.b16 %v792
    %v1413 = vunpack.c.l.b16 %v793
    %v1414 = vunpack.c.h.b16 %v793
    %v1415 = vunpack.c.l.b16 %v794
    %v1416 = vunpack.c.h.b16 %v794
    %v1417 = vunpack.c.l.b16 %v795
    %v1418 = vunpack.c.h.b16 %v795
    %v1419 = vunpack.c.l.b16 %v796
    %v1420 = vunpack.c.h.b16 %v796
    %v1421 = vunpack.c.l.b16 %v797
    %v1422 = vunpack.c.h.b16 %v797
    %v1423 = vunpack.c.l.b16 %v798
    %v1424 = vunpack.c.h.b16 %v798
    %v1425 = vunpack.c.l.b16 %v799
    %v1426 = vunpack.c.h.b16 %v799
    %v1427 = vunpack.c.l.b16 %v800
    %v1428 = vunpack.c.h.b16 %v800
    %v1429 = vunpack.c.l.b16 %v801
    %v1430 = vunpack.c.h.b16 %v801
    %v1431 = vunpack.c.l.b16 %v802
    %v1432 = vunpack.c.h.b16 %v802
    %v1433 = vunpack.c.l.b16 %v803
    %v1434 = vunpack.c.h.b16 %v803
    %v1435 = vunpack.c.l.b16 %v804
    %v1436 = vunpack.c.h.b16 %v804
    %v1437 = vunpack.c.l.b16 %v805
    %v1438 = vunpack.c.h.b16 %v805
    %v1439 = vunpack.c.l.b16 %v806
    %v1440 = vunpack.c.h.b16 %v806
    %v1441 = vunpack.c.l.b16 %v807
    %v1442 = vunpack.c.h.b16 %v807
    %v1443 = vunpack.c.l.b16 %v808
    %v1444 = vunpack.c.h.b16 %v808
    %v1445 = vunpack.c.l.b16 %v809
    %v1446 = vunpack.c.h.b16 %v809
    %v1447 = vunpack.c.l.b16 %v810
    %v1448 = vunpack.c.h.b16 %v810
    %v1449 = vunpack.c.l.b16 %v811
    %v1450 = vunpack.c.h.b16 %v811
    %v1451 = vunpack.c.l.b16 %v812
    %v1452 = vunpack.c.h.b16 %v812
    %v1453 = vunpack.c.l.b16 %v813
    %v1454 = vunpack.c.h.b16 %v813
    %v1455 = vunpack.c.l.b16 %v814
    %v1456 = vunpack.c.h.b16 %v814
    %v1457 = vunpack.c.l.b16 %v815
    %v1458 = vunpack.c.h.b16 %v815
    %v1459 = vunpack.c.l.b16 %v816
    %v1460 = vunpack.c.h.b16 %v816
    %v1461 = vunpack.c.l.b16 %v817
    %v1462 = vunpack.c.h.b16 %v817
    %v1463 = vunpack.c.l.b16 %v818
    %v1464 = vunpack.c.h.b16 %v818
    %v1465 = vunpack.c.l.b16 %v819
    %v1466 = vunpack.c.h.b16 %v819
    %v1467 = vunpack.c.l.b16 %v820
    %v1468 = vunpack.c.h.b16 %v820
    %v1469 = vunpack.c.l.b16 %v821
    %v1470 = vunpack.c.h.b16 %v821
    %v1471 = vunpack.c.l.b16 %v822
    %v1472 = vunpack.c.h.b16 %v822
    %v1473 = vunpack.c.l.b16 %v823
    %v1474 = vunpack.c.h.b16 %v823
    %v1475 = vunpack.c.l.b16 %v824
    %v1476 = vunpack.c.h.b16 %v824
    %v1477 = vunpack.c.l.b16 %v825
    %v1478 = vunpack.c.h.b16 %v825
    %v1479 = vunpack.c.l.b16 %v826
    %v1480 = vunpack.c.h.b16 %v826
    %v1481 = vunpack.c.l.b16 %v827
    %v1482 = vunpack.c.h.b16 %v827
    %v1483 = vunpack.c.l.b16 %v828
    %v1484 = vunpack.c.h.b16 %v828
    %v1485 = vunpack.c.l.b16 %v829
    %v1486 = vunpack.c.h.b16 %v829
    %v1487 = vunpack.c.l.b16 %v830
    %v1488 = vunpack.c.h.b16 %v830
    %v1489 = vunpack.c.l.b16 %v831
    %v1490 = vunpack.c.h.b16 %v831
    %v1491 = vunpack.c.l.b16 %v832
    %v1492 = vunpack.c.h.b16 %v832
    %v1493 = vunpack.c.l.b16 %v833
    %v1494 = vunpack.c.h.b16 %v833
    %v1495 = vunpack.c.l.b16 %v834
    %v1496 = vunpack.c.h.b16 %v834
    %v1497 = vunpack.c.l.b16 %v835
    %v1498 = vunpack.c.h.b16 %v835
    %v1499 = vunpack.c.l.b16 %v836
    %v1500 = vunpack.c.h.b16 %v836
    %v1501 = vunpack.c.l.b16 %v837
    %v1502 = vunpack.c.h.b16 %v837
    %v1503 = vunpack.c.l.b16 %v838
    %v1504 = vunpack.c.h.b16 %v838
    %v1505 = vunpack.c.l.b16 %v839
    %v1506 = vunpack.c.h.b16 %v839
    %v1507 = vunpack.c.l.b16 %v840
    %v1508 = vunpack.c.h.b16 %v840
    %v1509 = vunpack.c.l.b16 %v841
    %v1510 = vunpack.c.h.b16 %v841
    %v1511 = vunpack.c.l.b16 %v842
    %v1512 = vunpack.c.h.b16 %v842
    %v1513 = vunpack.c.l.b16 %v843
    %v1514 = vunpack.c.h.b16 %v843
    %v1515 = vunpack.c.l.b16 %v844
    %v1516 = vunpack.c.h.b16 %v844
    %v1517 = vunpack.c.l.b16 %v845
    %v1518 = vunpack.c.h.b16 %v845
    %v1519 = vunpack.c.l.b16 %v846
    %v1520 = vunpack.c.h.b16 %v846
    %v1521 = vunpack.c.l.b16 %v847
    %v1522 = vunpack.c.h.b16 %v847
    %v1523 = vunpack.c.l.b16 %v848
    %v1524 = vunpack.c.h.b16 %v848
    %v1525 = vunpack.c.l.b16 %v849
    %v1526 = vunpack.c.h.b16 %v849
    %v1527 = vunpack.c.l.b16 %v850
    %v1528 = vunpack.c.h.b16 %v850
    %v1529 = vunpack.c.l.b16 %v851
    %v1530 = vunpack.c.h.b16 %v851
    %v1531 = vunpack.c.l.b16 %v852
    %v1532 = vunpack.c.h.b16 %v852
    %v1533 = vunpack.c.l.b16 %v853
    %v1534 = vunpack.c.h.b16 %v853
    %v1535 = vunpack.c.l.b16 %v854
    %v1536 = vunpack.c.h.b16 %v854
    %v1537 = vunpack.c.l.b16 %v855
    %v1538 = vunpack.c.h.b16 %v855
    %v1539 = vunpack.c.l.b16 %v856
    %v1540 = vunpack.c.h.b16 %v856
    %v1541 = vunpack.c.l.b16 %v857
    %v1542 = vunpack.c.h.b16 %v857
    %v1543 = vunpack.c.l.b16 %v858
    %v1544 = vunpack.c.h.b16 %v858
    %v1545 = vunpack.c.l.b16 %v859
    %v1546 = vunpack.c.h.b16 %v859
    %v1547 = vunpack.c.l.b16 %v860
    %v1548 = vunpack.c.h.b16 %v860
    %v1549 = vunpack.c.l.b16 %v861
    %v1550 = vunpack.c.h.b16 %v861
    %v1551 = vunpack.c.l.b16 %v862
    %v1552 = vunpack.c.h.b16 %v862
    %v1553 = vunpack.c.l.b16 %v863
    %v1554 = vunpack.c.h.b16 %v863
    %v1555 = vunpack.c.l.b16 %v864
    %v1556 = vunpack.c.h.b16 %v864
    %v1557 = vunpack.c.l.b16 %v865
    %v1558 = vunpack.c.h.b16 %v865
    %v1559 = vunpack.c.l.b16 %v866
    %v1560 = vunpack.c.h.b16 %v866
    %v1561 = vunpack.c.l.b16 %v867
    %v1562 = vunpack.c.h.b16 %v867
    %v1563 = vunpack.c.l.b16 %v868
    %v1564 = vunpack.c.h.b16 %v868
    %v1565 = vunpack.c.l.b16 %v869
    %v1566 = vunpack.c.h.b16 %v869
    %v1567 = vunpack.c.l.b16 %v870
    %v1568 = vunpack.c.h.b16 %v870
    %v1569 = vunpack.c.l.b16 %v871
    %v1570 = vunpack.c.h.b16 %v871
    %v1571 = vunpack.c.l.b16 %v872
    %v1572 = vunpack.c.h.b16 %v872
    %v1573 = vunpack.c.l.b16 %v873
    %v1574 = vunpack.c.h.b16 %v873
    %v1575 = vunpack.c.l.b16 %v874
    %v1576 = vunpack.c.h.b16 %v874
    %v1577 = vunpack.c.l.b16 %v875
    %v1578 = vunpack.c.h.b16 %v875
    %v1579 = vunpack.c.l.b16 %v876
    %v1580 = vunpack.c.h.b16 %v876
    %v1581 = vunpack.c.l.b16 %v877
    %v1582 = vunpack.c.h.b16 %v877
    %v1583 = vunpack.c.l.b16 %v878
    %v1584 = vunpack.c.h.b16 %v878
    %v1585 = vunpack.c.l.b16 %v879
    %v1586 = vunpack.c.h.b16 %v879
    %v1587 = vunpack.c.l.b16 %v880
    %v1588 = vunpack.c.h.b16 %v880
    %v1589 = vunpack.c.l.b16 %v881
    %v1590 = vunpack.c.h.b16 %v881
    %v1591 = vunpack.c.l.b16 %v882
    %v1592 = vunpack.c.h.b16 %v882
    %v1593 = vunpack.c.l.b16 %v883
    %v1594 = vunpack.c.h.b16 %v883
    %v1595 = vunpack.c.l.b16 %v884
    %v1596 = vunpack.c.h.b16 %v884
    %v1597 = vunpack.c.l.b16 %v885
    %v1598 = vunpack.c.h.b16 %v885
    %v1599 = vunpack.c.l.b16 %v886
    %v1600 = vunpack.c.h.b16 %v886
    %v1601 = vunpack.c.l.b16 %v887
    %v1602 = vunpack.c.h.b16 %v887
    %v1603 = vunpack.c.l.b16 %v888
    %v1604 = vunpack.c.h.b16 %v888
    %v1605 = vunpack.c.l.b16 %v889
    %v1606 = vunpack.c.h.b16 %v889
    %v1607 = vunpack.c.l.b16 %v890
    %v1608 = vunpack.c.h.b16 %v890
    %v1609 = vunpack.c.l.b16 %v891
    %v1610 = vunpack.c.h.b16 %v891
    %v1611 = vunpack.c.l.b16 %v892
    %v1612 = vunpack.c.h.b16 %v892
    %v1613 = vunpack.c.l.b16 %v893
    %v1614 = vunpack.c.h.b16 %v893
    %v1615 = vunpack.c.l.b16 %v894
    %v1616 = vunpack.c.h.b16 %v894
    %v1617 = vunpack.c.l.b16 %v895
    %v1618 = vunpack.c.h.b16 %v895
    %v1619 = vunpack.c.l.b16 %v896
    %v1620 = vunpack.c.h.b16 %v896
    %v1621 = vunpack.c.l.b16 %v897
    %v1622 = vunpack.c.h.b16 %v897
    %v1623 = vunpack.c.l.b16 %v898
    %v1624 = vunpack.c.h.b16 %v898
    %v1625 = vunpack.c.l.b16 %v899
    %v1626 = vunpack.c.h.b16 %v899
    %v1627 = vunpack.c.l.b16 %v900
    %v1628 = vunpack.c.h.b16 %v900
    %v1629 = vunpack.c.l.b16 %v901
    %v1630 = vunpack.c.h.b16 %v901
    %v1631 = vunpack.c.l.b16 %v902
    %v1632 = vunpack.c.h.b16 %v902
    %v1633 = vunpack.c.l.b16 %v903
    %v1634 = vunpack.c.h.b16 %v903
    %v1635 = vunpack.c.l.b16 %v904
    %v1636 = vunpack.c.h.b16 %v904
    %v1637 = vunpack.c.l.b16 %v905
    %v1638 = vunpack.c.h.b16 %v905
    %v1639 = vunpack.c.l.b16 %v906
    %v1640 = vunpack.c.h.b16 %v906
    %v1641 = vunpack.c.l.b16 %v907
    %v1642 = vunpack.c.h.b16 %v907
    %v1643 = vunpack.c.l.b16 %v908
    %v1644 = vunpack.c.h.b16 %v908
    %v1645 = vunpack.c.l.b16 %v909
    %v1646 = vunpack.c.h.b16 %v909
    %v1647 = vunpack.c.l.b16 %v910
    %v1648 = vunpack.c.h.b16 %v910
    %v1649 = vunpack.c.l.b16 %v911
    %v1650 = vunpack.c.h.b16 %v911
    %v1651 = vunpack.c.l.b16 %v912
    %v1652 = vunpack.c.h.b16 %v912
    %v1653 = vunpack.c.l.b16 %v913
    %v1654 = vunpack.c.h.b16 %v913
    %v1655 = vunpack.c.l.b16 %v914
    %v1656 = vunpack.c.h.b16 %v914
    %v1657 = vunpack.c.l.b16 %v915
    %v1658 = vunpack.c.h.b16 %v915
    %v1659 = vunpack.c.l.b16 %v916
    %v1660 = vunpack.c.h.b16 %v916
    %v1661 = vunpack.c.l.b16 %v917
    %v1662 = vunpack.c.h.b16 %v917
    %v1663 = vunpack.c.l.b16 %v918
    %v1664 = vunpack.c.h.b16 %v918
    %v1665 = vunpack.c.l.b16 %v919
    %v1666 = vunpack.c.h.b16 %v919
    %v1667 = vunpack.c.l.b16 %v920
    %v1668 = vunpack.c.h.b16 %v920
    %v1669 = vunpack.c.l.b16 %v921
    %v1670 = vunpack.c.h.b16 %v921
    %v1671 = vunpack.c.l.b16 %v922
    %v1672 = vunpack.c.h.b16 %v922
    %v1673 = vunpack.c.l.b16 %v923
    %v1674 = vunpack.c.h.b16 %v923
    %v1675 = vunpack.c.l.b16 %v924
    %v1676 = vunpack.c.h.b16 %v924
    %v1677 = vunpack.c.l.b16 %v925
    %v1678 = vunpack.c.h.b16 %v925
    %v1679 = vunpack.c.l.b16 %v926
    %v1680 = vunpack.c.h.b16 %v926
    %v1681 = vunpack.c.l.b16 %v927
    %v1682 = vunpack.c.h.b16 %v927
    %v1683 = vunpack.c.l.b16 %v928
    %v1684 = vunpack.c.h.b16 %v928
    %v1685 = vunpack.c.l.b16 %v929
    %v1686 = vunpack.c.h.b16 %v929
    %v1687 = vunpack.c.l.b16 %v930
    %v1688 = vunpack.c.h.b16 %v930
    %v1689 = vunpack.c.l.b16 %v931
    %v1690 = vunpack.c.h.b16 %v931
    %v1691 = vunpack.c.l.b16 %v932
    %v1692 = vunpack.c.h.b16 %v932
    %v1693 = vunpack.c.l.b16 %v933
    %v1694 = vunpack.c.h.b16 %v933
    %v1695 = vunpack.c.l.b16 %v934
    %v1696 = vunpack.c.h.b16 %v934
    %v1697 = vunpack.c.l.b16 %v935
    %v1698 = vunpack.c.h.b16 %v935
    %v1699 = vunpack.c.l.b16 %v936
    %v1700 = vunpack.c.h.b16 %v936
    %v1701 = vunpack.c.l.b16 %v937
    %v1702 = vunpack.c.h.b16 %v937
    %v1703 = vunpack.c.l.b16 %v938
    %v1704 = vunpack.c.h.b16 %v938
    %v1705 = vunpack.c.l.b16 %v939
    %v1706 = vunpack.c.h.b16 %v939
    %v1707 = vunpack.c.l.b16 %v940
    %v1708 = vunpack.c.h.b16 %v940
    %v1709 = vunpack.c.l.b16 %v941
    %v1710 = vunpack.c.h.b16 %v941
    %v1711 = vunpack.c.l.b16 %v942
    %v1712 = vunpack.c.h.b16 %v942
    %v1713 = vunpack.c.l.b16 %v943
    %v1714 = vunpack.c.h.b16 %v943
    %v1715 = vunpack.c.l.b16 %v944
    %v1716 = vunpack.c.h.b16 %v944
    %v1717 = vunpack.c.l.b16 %v945
    %v1718 = vunpack.c.h.b16 %v945
    %v1719 = vunpack.c.l.b16 %v946
    %v1720 = vunpack.c.h.b16 %v946
    %v1721 = vunpack.c.l.b16 %v947
    %v1722 = vunpack.c.h.b16 %v947
    %v1723 = vunpack.c.l.b16 %v948
    %v1724 = vunpack.c.h.b16 %v948
    %v1725 = vunpack.c.l.b16 %v949
    %v1726 = vunpack.c.h.b16 %v949
    %v1727 = vunpack.c.l.b16 %v950
    %v1728 = vunpack.c.h.b16 %v950
    %v1729 = vpack.c.b16 %v1221, %v1217
    %v1730 = vpack.c.b16 %v1222, %v1218
    %v1731 = vpack.c.b16 %v1223, %v1219
    %v1732 = vpack.c.b16 %v1224, %v1220
    %v1733 = vpack.c.b16 %v1229, %v1225
    %v1734 = vpack.c.b16 %v1230, %v1226
    %v1735 = vpack.c.b16 %v1231, %v1227
    %v1736 = vpack.c.b16 %v1232, %v1228
    %v1737 = vpack.c.b16 %v1237, %v1233
    %v1738 = vpack.c.b16 %v1238, %v1234
    %v1739 = vpack.c.b16 %v1239, %v1235
    %v1740 = vpack.c.b16 %v1240, %v1236
    %v1741 = vpack.c.b16 %v1245, %v1241
    %v1742 = vpack.c.b16 %v1246, %v1242
    %v1743 = vpack.c.b16 %v1247, %v1243
    %v1744 = vpack.c.b16 %v1248, %v1244
    %v1745 = vpack.c.b16 %v1253, %v1249
    %v1746 = vpack.c.b16 %v1254, %v1250
    %v1747 = vpack.c.b16 %v1255, %v1251
    %v1748 = vpack.c.b16 %v1256, %v1252
    %v1749 = vpack.c.b16 %v1261, %v1257
    %v1750 = vpack.c.b16 %v1262, %v1258
    %v1751 = vpack.c.b16 %v1263, %v1259
    %v1752 = vpack.c.b16 %v1264, %v1260
    %v1753 = vpack.c.b16 %v1269, %v1265
    %v1754 = vpack.c.b16 %v1270, %v1266
    %v1755 = vpack.c.b16 %v1271, %v1267
    %v1756 = vpack.c.b16 %v1272, %v1268
    %v1757 = vpack.c.b16 %v1277, %v1273
    %v1758 = vpack.c.b16 %v1278, %v1274
    %v1759 = vpack.c.b16 %v1279, %v1275
    %v1760 = vpack.c.b16 %v1280, %v1276
    %v1761 = vpack.c.b16 %v1285, %v1281
    %v1762 = vpack.c.b16 %v1286, %v1282
    %v1763 = vpack.c.b16 %v1287, %v1283
    %v1764 = vpack.c.b16 %v1288, %v1284
    %v1765 = vpack.c.b16 %v1293, %v1289
    %v1766 = vpack.c.b16 %v1294, %v1290
    %v1767 = vpack.c.b16 %v1295, %v1291
    %v1768 = vpack.c.b16 %v1296, %v1292
    %v1769 = vpack.c.b16 %v1301, %v1297
    %v1770 = vpack.c.b16 %v1302, %v1298
    %v1771 = vpack.c.b16 %v1303, %v1299
    %v1772 = vpack.c.b16 %v1304, %v1300
    %v1773 = vpack.c.b16 %v1309, %v1305
    %v1774 = vpack.c.b16 %v1310, %v1306
    %v1775 = vpack.c.b16 %v1311, %v1307
    %v1776 = vpack.c.b16 %v1312, %v1308
    %v1777 = vpack.c.b16 %v1317, %v1313
    %v1778 = vpack.c.b16 %v1318, %v1314
    %v1779 = vpack.c.b16 %v1319, %v1315
    %v1780 = vpack.c.b16 %v1320, %v1316
    %v1781 = vpack.c.b16 %v1325, %v1321
    %v1782 = vpack.c.b16 %v1326, %v1322
    %v1783 = vpack.c.b16 %v1327, %v1323
    %v1784 = vpack.c.b16 %v1328, %v1324
    %v1785 = vpack.c.b16 %v1333, %v1329
    %v1786 = vpack.c.b16 %v1334, %v1330
    %v1787 = vpack.c.b16 %v1335, %v1331
    %v1788 = vpack.c.b16 %v1336, %v1332
    %v1789 = vpack.c.b16 %v1341, %v1337
    %v1790 = vpack.c.b16 %v1342, %v1338
    %v1791 = vpack.c.b16 %v1343, %v1339
    %v1792 = vpack.c.b16 %v1344, %v1340
    %v1793 = vpack.c.b16 %v1349, %v1345
    %v1794 = vpack.c.b16 %v1350, %v1346
    %v1795 = vpack.c.b16 %v1351, %v1347
    %v1796 = vpack.c.b16 %v1352, %v1348
    %v1797 = vpack.c.b16 %v1357, %v1353
    %v1798 = vpack.c.b16 %v1358, %v1354
    %v1799 = vpack.c.b16 %v1359, %v1355
    %v1800 = vpack.c.b16 %v1360, %v1356
    %v1801 = vpack.c.b16 %v1365, %v1361
    %v1802 = vpack.c.b16 %v1366, %v1362
    %v1803 = vpack.c.b16 %v1367, %v1363
    %v1804 = vpack.c.b16 %v1368, %v1364
    %v1805 = vpack.c.b16 %v1373, %v1369
    %v1806 = vpack.c.b16 %v1374, %v1370
    %v1807 = vpack.c.b16 %v1375, %v1371
    %v1808 = vpack.c.b16 %v1376, %v1372
    %v1809 = vpack.c.b16 %v1381, %v1377
    %v1810 = vpack.c.b16 %v1382, %v1378
    %v1811 = vpack.c.b16 %v1383, %v1379
    %v1812 = vpack.c.b16 %v1384, %v1380
    %v1813 = vpack.c.b16 %v1389, %v1385
    %v1814 = vpack.c.b16 %v1390, %v1386
    %v1815 = vpack.c.b16 %v1391, %v1387
    %v1816 = vpack.c.b16 %v1392, %v1388
    %v1817 = vpack.c.b16 %v1397, %v1393
    %v1818 = vpack.c.b16 %v1398, %v1394
    %v1819 = vpack.c.b16 %v1399, %v1395
    %v1820 = vpack.c.b16 %v1400, %v1396
    %v1821 = vpack.c.b16 %v1405, %v1401
    %v1822 = vpack.c.b16 %v1406, %v1402
    %v1823 = vpack.c.b16 %v1407, %v1403
    %v1824 = vpack.c.b16 %v1408, %v1404
    %v1825 = vpack.c.b16 %v1413, %v1409
    %v1826 = vpack.c.b16 %v1414, %v1410
    %v1827 = vpack.c.b16 %v1415, %v1411
    %v1828 = vpack.c.b16 %v1416, %v1412
    %v1829 = vpack.c.b16 %v1421, %v1417
    %v1830 = vpack.c.b16 %v1422, %v1418
    %v1831 = vpack.c.b16 %v1423, %v1419
    %v1832 = vpack.c.b16 %v1424, %v1420
    %v1833 = vpack.c.b16 %v1429, %v1425
    %v1834 = vpack.c.b16 %v1430, %v1426
    %v1835 = vpack.c.b16 %v1431, %v1427
    %v1836 = vpack.c.b16 %v1432, %v1428
    %v1837 = vpack.c.b16 %v1437, %v1433
    %v1838 = vpack.c.b16 %v1438, %v1434
    %v1839 = vpack.c.b16 %v1439, %v1435
    %v1840 = vpack.c.b16 %v1440, %v1436
    %v1841 = vpack.c.b16 %v1445, %v1441
    %v1842 = vpack.c.b16 %v1446, %v1442
    %v1843 = vpack.c.b16 %v1447, %v1443
    %v1844 = vpack.c.b16 %v1448, %v1444
    %v1845 = vpack.c.b16 %v1453, %v1449
    %v1846 = vpack.c.b16 %v1454, %v1450
    %v1847 = vpack.c.b16 %v1455, %v1451
    %v1848 = vpack.c.b16 %v1456, %v1452
    %v1849 = vpack.c.b16 %v1461, %v1457
    %v1850 = vpack.c.b16 %v1462, %v1458
    %v1851 = vpack.c.b16 %v1463, %v1459
    %v1852 = vpack.c.b16 %v1464, %v1460
    %v1853 = vpack.c.b16 %v1469, %v1465
    %v1854 = vpack.c.b16 %v1470, %v1466
    %v1855 = vpack.c.b16 %v1471, %v1467
    %v1856 = vpack.c.b16 %v1472, %v1468
    %v1857 = vpack.c.b16 %v1477, %v1473
    %v1858 = vpack.c.b16 %v1478, %v1474
    %v1859 = vpack.c.b16 %v1479, %v1475
    %v1860 = vpack.c.b16 %v1480, %v1476
    %v1861 = vpack.c.b16 %v1485, %v1481
    %v1862 = vpack.c.b16 %v1486, %v1482
    %v1863 = vpack.c.b16 %v1487, %v1483
    %v1864 = vpack.c.b16 %v1488, %v1484
    %v1865 = vpack.c.b16 %v1493, %v1489
    %v1866 = vpack.c.b16 %v1494, %v1490
    %v1867 = vpack.c.b16 %v1495, %v1491
    %v1868 = vpack.c.b16 %v1496, %v1492
    %v1869 = vpack.c.b16 %v1501, %v1497
    %v1870 = vpack.c.b16 %v1502, %v1498
    %v1871 = vpack.c.b16 %v1503, %v1499
    %v1872 = vpack.c.b16 %v1504, %v1500
    %v1873 = vpack.c.b16 %v1509, %v1505
    %v1874 = vpack.c.b16 %v1510, %v1506
    %v1875 = vpack.c.b16 %v1511, %v1507
    %v1876 = vpack.c.b16 %v1512, %v1508
    %v1877 = vpack.c.b16 %v1517, %v1513
    %v1878 = vpack.c.b16 %v1518, %v1514
    %v1879 = vpack.c.b16 %v1519, %v1515
    %v1880 = vpack.c.b16 %v1520, %v1516
    %v1881 = vpack.c.b16 %v1525, %v1521
    %v1882 = vpack.c.b16 %v1526, %v1522
    %v1883 = vpack.c.b16 %v1527, %v1523
    %v1884 = vpack.c.b16 %v1528, %v1524
    %v1885 = vpack.c.b16 %v1533, %v1529
    %v1886 = vpack.c.b16 %v1534, %v1530
    %v1887 = vpack.c.b16 %v1535, %v1531
    %v1888 = vpack.c.b16 %v1536, %v1532
    %v1889 = vpack.c.b16 %v1541, %v1537
    %v1890 = vpack.c.b16 %v1542, %v1538
    %v1891 = vpack.c.b16 %v1543, %v1539
    %v1892 = vpack.c.b16 %v1544, %v1540
    %v1893 = vpack.c.b16 %v1549, %v1545
    %v1894 = vpack.c.b16 %v1550, %v1546
    %v1895 = vpack.c.b16 %v1551, %v1547
    %v1896 = vpack.c.b16 %v1552, %v1548
    %v1897 = vpack.c.b16 %v1557, %v1553
    %v1898 = vpack.c.b16 %v1558, %v1554
    %v1899 = vpack.c.b16 %v1559, %v1555
    %v1900 = vpack.c.b16 %v1560, %v1556
    %v1901 = vpack.c.b16 %v1565, %v1561
    %v1902 = vpack.c.b16 %v1566, %v1562
    %v1903 = vpack.c.b16 %v1567, %v1563
    %v1904 = vpack.c.b16 %v1568, %v1564
    %v1905 = vpack.c.b16 %v1573, %v1569
    %v1906 = vpack.c.b16 %v1574, %v1570
    %v1907 = vpack.c.b16 %v1575, %v1571
    %v1908 = vpack.c.b16 %v1576, %v1572
    %v1909 = vpack.c.b16 %v1581, %v1577
    %v1910 = vpack.c.b16 %v1582, %v1578
    %v1911 = vpack.c.b16 %v1583, %v1579
    %v1912 = vpack.c.b16 %v1584, %v1580
    %v1913 = vpack.c.b16 %v1589, %v1585
    %v1914 = vpack.c.b16 %v1590, %v1586
    %v1915 = vpack.c.b16 %v1591, %v1587
    %v1916 = vpack.c.b16 %v1592, %v1588
    %v1917 = vpack.c.b16 %v1597, %v1593
    %v1918 = vpack.c.b16 %v1598, %v1594
    %v1919 = vpack.c.b16 %v1599, %v1595
    %v1920 = vpack.c.b16 %v1600, %v1596
    %v1921 = vpack.c.b16 %v1605, %v1601
    %v1922 = vpack.c.b16 %v1606, %v1602
    %v1923 = vpack.c.b16 %v1607, %v1603
    %v1924 = vpack.c.b16 %v1608, %v1604
    %v1925 = vpack.c.b16 %v1613, %v1609
    %v1926 = vpack.c.b16 %v1614, %v1610
    %v1927 = vpack.c.b16 %v1615, %v1611
    %v1928 = vpack.c.b16 %v1616, %v1612
    %v1929 = vpack.c.b16 %v1621, %v1617
    %v1930 = vpack.c.b16 %v1622, %v1618
    %v1931 = vpack.c.b16 %v1623, %v1619
    %v1932 = vpack.c.b16 %v1624, %v1620
    %v1933 = vpack.c.b16 %v1629, %v1625
    %v1934 = vpack.c.b16 %v1630, %v1626
    %v1935 = vpack.c.b16 %v1631, %v1627
    %v1936 = vpack.c.b16 %v1632, %v1628
    %v1937 = vpack.c.b16 %v1637, %v1633
    %v1938 = vpack.c.b16 %v1638, %v1634
    %v1939 = vpack.c.b16 %v1639, %v1635
    %v1940 = vpack.c.b16 %v1640, %v1636
    %v1941 = vpack.c.b16 %v1645, %v1641
    %v1942 = vpack.c.b16 %v1646, %v1642
    %v1943 = vpack.c.b16 %v1647, %v1643
    %v1944 = vpack.c.b16 %v1648, %v1644
    %v1945 = vpack.c.b16 %v1653, %v1649
    %v1946 = vpack.c.b16 %v1654, %v1650
    %v1947 = vpack.c.b16 %v1655, %v1651
    %v1948 = vpack.c.b16 %v1656, %v1652
    %v1949 = vpack.c.b16 %v1661, %v1657
    %v1950 = vpack.c.b16 %v1662, %v1658
    %v1951 = vpack.c.b16 %v1663, %v1659
    %v1952 = vpack.c.b16 %v1664, %v1660
    %v1953 = vpack.c.b16 %v1669, %v1665
    %v1954 = vpack.c.b16 %v1670, %v1666
    %v1955 = vpack.c.b16 %v1671, %v1667
    %v1956 = vpack.c.b16 %v1672, %v1668
    %v1957 = vpack.c.b16 %v1677, %v1673
    %v1958 = vpack.c.b16 %v1678, %v1674
    %v1959 = vpack.c.b16 %v1679, %v1675
    %v1960 = vpack.c.b16 %v1680, %v1676
    %v1961 = vpack.c.b16 %v1685, %v1681
    %v1962 = vpack.c.b16 %v1686, %v1682
    %v1963 = vpack.c.b16 %v1687, %v1683
    %v1964 = vpack.c.b16 %v1688, %v1684
    %v1965 = vpack.c.b16 %v1693, %v1689
    %v1966 = vpack.c.b16 %v1694, %v1690
    %v1967 = vpack.c.b16 %v1695, %v1691
    %v1968 = vpack.c.b16 %v1696, %v1692
    %v1969 = vpack.c.b16 %v1701, %v1697
    %v1970 = vpack.c.b16 %v1702, %v1698
    %v1971 = vpack.c.b16 %v1703, %v1699
    %v1972 = vpack.c.b16 %v1704, %v1700
    %v1973 = vpack.c.b16 %v1709, %v1705
    %v1974 = vpack.c.b16 %v1710, %v1706
    %v1975 = vpack.c.b16 %v1711, %v1707
    %v1976 = vpack.c.b16 %v1712, %v1708
    %v1977 = vpack.c.b16 %v1717, %v1713
    %v1978 = vpack.c.b16 %v1718, %v1714
    %v1979 = vpack.c.b16 %v1719, %v1715
    %v1980 = vpack.c.b16 %v1720, %v1716
    %v1981 = vpack.c.b16 %v1725, %v1721
    %v1982 = vpack.c.b16 %v1726, %v1722
    %v1983 = vpack.c.b16 %v1727, %v1723
    %v1984 = vpack.c.b16 %v1728, %v1724
    %2241 = vmatpush.bf16.msra.mxu0 %v1757
    %2242 = vmatpush.bf16.msra.mxu0 %v1753
    %2243 = vmatpush.bf16.msra.mxu0 %v1749
    %2244 = vmatpush.bf16.msra.mxu0 %v1745
    %2245 = vmatpush.bf16.msra.mxu0 %v1741
    %2246 = vmatpush.bf16.msra.mxu0 %v1737
    %2247 = vmatpush.bf16.msra.mxu0 %v1733
    %2248 = vmatpush.bf16.msra.mxu0 %v1729
    %2249 = vmatmul.bf16.gmra.mxu0 %v687
    %v2250 = vpop.f32.mrf.mxu0
    %v2251 = vadd.f32 %v953, %v2250
    %v2252 = vpop.f32.mrf.mxu0
    %2253 = vdwg.mxu0
    %2254 = vmatpush.bf16.msra.mxu0 %v1789
    %2255 = vmatpush.bf16.msra.mxu0 %v1785
    %2256 = vmatpush.bf16.msra.mxu0 %v1781
    %2257 = vmatpush.bf16.msra.mxu0 %v1777
    %2258 = vmatpush.bf16.msra.mxu0 %v1773
    %2259 = vmatpush.bf16.msra.mxu0 %v1769
    %2260 = vmatpush.bf16.msra.mxu0 %v1765
    %2261 = vmatpush.bf16.msra.mxu0 %v1761
    %2262 = vmatmul.bf16.gmra.mxu0 %v688
    %v2263 = vpop.f32.mrf.mxu0
    %v2264 = vadd.f32 %v2251, %v2263
    %v2265 = vpop.f32.mrf.mxu0
    %2266 = vdwg.mxu0
    %2267 = vmatpush.bf16.msra.mxu0 %v1821
    %2268 = vmatpush.bf16.msra.mxu0 %v1817
    %2269 = vmatpush.bf16.msra.mxu0 %v1813
    %2270 = vmatpush.bf16.msra.mxu0 %v1809
    %2271 = vmatpush.bf16.msra.mxu0 %v1805
    %2272 = vmatpush.bf16.msra.mxu0 %v1801
    %2273 = vmatpush.bf16.msra.mxu0 %v1797
    %2274 = vmatpush.bf16.msra.mxu0 %v1793
    %2275 = vmatmul.bf16.gmra.mxu0 %v689
    %v2276 = vpop.f32.mrf.mxu0
    %v2277 = vadd.f32 %v2264, %v2276
    %v2278 = vpop.f32.mrf.mxu0
    %2279 = vdwg.mxu0
    %2280 = vmatpush.bf16.msra.mxu0 %v1853
    %2281 = vmatpush.bf16.msra.mxu0 %v1849
    %2282 = vmatpush.bf16.msra.mxu0 %v1845
    %2283 = vmatpush.bf16.msra.mxu0 %v1841
    %2284 = vmatpush.bf16.msra.mxu0 %v1837
    %2285 = vmatpush.bf16.msra.mxu0 %v1833
    %2286 = vmatpush.bf16.msra.mxu0 %v1829
    %2287 = vmatpush.bf16.msra.mxu0 %v1825
    %2288 = vmatmul.bf16.gmra.mxu0 %v690
    %v2289 = vpop.f32.mrf.mxu0
    %v2290 = vadd.f32 %v2277, %v2289
    %v2291 = vpop.f32.mrf.mxu0
    %2292 = vdwg.mxu0
    %2293 = vmatpush.bf16.msra.mxu0 %v1885
    %2294 = vmatpush.bf16.msra.mxu0 %v1881
    %2295 = vmatpush.bf16.msra.mxu0 %v1877
    %2296 = vmatpush.bf16.msra.mxu0 %v1873
    %2297 = vmatpush.bf16.msra.mxu0 %v1869
    %2298 = vmatpush.bf16.msra.mxu0 %v1865
    %2299 = vmatpush.bf16.msra.mxu0 %v1861
    %2300 = vmatpush.bf16.msra.mxu0 %v1857
    %2301 = vmatmul.bf16.gmra.mxu0 %v691
    %v2302 = vpop.f32.mrf.mxu0
    %v2303 = vadd.f32 %v2290, %v2302
    %v2304 = vpop.f32.mrf.mxu0
    %2305 = vdwg.mxu0
    %2306 = vmatpush.bf16.msra.mxu0 %v1917
    %2307 = vmatpush.bf16.msra.mxu0 %v1913
    %2308 = vmatpush.bf16.msra.mxu0 %v1909
    %2309 = vmatpush.bf16.msra.mxu0 %v1905
    %2310 = vmatpush.bf16.msra.mxu0 %v1901
    %2311 = vmatpush.bf16.msra.mxu0 %v1897
    %2312 = vmatpush.bf16.msra.mxu0 %v1893
    %2313 = vmatpush.bf16.msra.mxu0 %v1889
    %2314 = vmatmul.bf16.gmra.mxu0 %v692
    %v2315 = vpop.f32.mrf.mxu0
    %v2316 = vadd.f32 %v2303, %v2315
    %v2317 = vpop.f32.mrf.mxu0
    %2318 = vdwg.mxu0
    %2319 = vmatpush.bf16.msra.mxu0 %v1949
    %2320 = vmatpush.bf16.msra.mxu0 %v1945
    %2321 = vmatpush.bf16.msra.mxu0 %v1941
    %2322 = vmatpush.bf16.msra.mxu0 %v1937
    %2323 = vmatpush.bf16.msra.mxu0 %v1933
    %2324 = vmatpush.bf16.msra.mxu0 %v1929
    %2325 = vmatpush.bf16.msra.mxu0 %v1925
    %2326 = vmatpush.bf16.msra.mxu0 %v1921
    %2327 = vmatmul.bf16.gmra.mxu0 %v693
    %v2328 = vpop.f32.mrf.mxu0
    %v2329 = vadd.f32 %v2316, %v2328
    %v2330 = vpop.f32.mrf.mxu0
    %2331 = vdwg.mxu0
    %2332 = vmatpush.bf16.msra.mxu0 %v1981
    %2333 = vmatpush.bf16.msra.mxu0 %v1977
    %2334 = vmatpush.bf16.msra.mxu0 %v1973
    %2335 = vmatpush.bf16.msra.mxu0 %v1969
    %2336 = vmatpush.bf16.msra.mxu0 %v1965
    %2337 = vmatpush.bf16.msra.mxu0 %v1961
    %2338 = vmatpush.bf16.msra.mxu0 %v1957
    %2339 = vmatpush.bf16.msra.mxu0 %v1953
    %2340 = vmatmul.bf16.gmra.mxu0 %v694
    %v2341 = vpop.f32.mrf.mxu0
    %v2342 = vadd.f32 %v2329, %v2341
    %v2343 = vpop.f32.mrf.mxu0
    %2344 = vdwg.mxu0
    %2345 = vmatpush.bf16.msra.mxu0 %v1758
    %2346 = vmatpush.bf16.msra.mxu0 %v1754
    %2347 = vmatpush.bf16.msra.mxu0 %v1750
    %2348 = vmatpush.bf16.msra.mxu0 %v1746
    %2349 = vmatpush.bf16.msra.mxu0 %v1742
    %2350 = vmatpush.bf16.msra.mxu0 %v1738
    %2351 = vmatpush.bf16.msra.mxu0 %v1734
    %2352 = vmatpush.bf16.msra.mxu0 %v1730
    %2353 = vmatmul.bf16.gmra.mxu0 %v687
    %v2354 = vpop.f32.mrf.mxu0
    %v2355 = vadd.f32 %v954, %v2354
    %v2356 = vpop.f32.mrf.mxu0
    %2357 = vdwg.mxu0
    %2358 = vmatpush.bf16.msra.mxu0 %v1790
    %2359 = vmatpush.bf16.msra.mxu0 %v1786
    %2360 = vmatpush.bf16.msra.mxu0 %v1782
    %2361 = vmatpush.bf16.msra.mxu0 %v1778
    %2362 = vmatpush.bf16.msra.mxu0 %v1774
    %2363 = vmatpush.bf16.msra.mxu0 %v1770
    %2364 = vmatpush.bf16.msra.mxu0 %v1766
    %2365 = vmatpush.bf16.msra.mxu0 %v1762
    %2366 = vmatmul.bf16.gmra.mxu0 %v688
    %v2367 = vpop.f32.mrf.mxu0
    %v2368 = vadd.f32 %v2355, %v2367
    %v2369 = vpop.f32.mrf.mxu0
    %2370 = vdwg.mxu0
    %2371 = vmatpush.bf16.msra.mxu0 %v1822
    %2372 = vmatpush.bf16.msra.mxu0 %v1818
    %2373 = vmatpush.bf16.msra.mxu0 %v1814
    %2374 = vmatpush.bf16.msra.mxu0 %v1810
    %2375 = vmatpush.bf16.msra.mxu0 %v1806
    %2376 = vmatpush.bf16.msra.mxu0 %v1802
    %2377 = vmatpush.bf16.msra.mxu0 %v1798
    %2378 = vmatpush.bf16.msra.mxu0 %v1794
    %2379 = vmatmul.bf16.gmra.mxu0 %v689
    %v2380 = vpop.f32.mrf.mxu0
    %v2381 = vadd.f32 %v2368, %v2380
    %v2382 = vpop.f32.mrf.mxu0
    %2383 = vdwg.mxu0
    %2384 = vmatpush.bf16.msra.mxu0 %v1854
    %2385 = vmatpush.bf16.msra.mxu0 %v1850
    %2386 = vmatpush.bf16.msra.mxu0 %v1846
    %2387 = vmatpush.bf16.msra.mxu0 %v1842
    %2388 = vmatpush.bf16.msra.mxu0 %v1838
    %2389 = vmatpush.bf16.msra.mxu0 %v1834
    %2390 = vmatpush.bf16.msra.mxu0 %v1830
    %2391 = vmatpush.bf16.msra.mxu0 %v1826
    %2392 = vmatmul.bf16.gmra.mxu0 %v690
    %v2393 = vpop.f32.mrf.mxu0
    %v2394 = vadd.f32 %v2381, %v2393
    %v2395 = vpop.f32.mrf.mxu0
    %2396 = vdwg.mxu0
    %2397 = vmatpush.bf16.msra.mxu0 %v1886
    %2398 = vmatpush.bf16.msra.mxu0 %v1882
    %2399 = vmatpush.bf16.msra.mxu0 %v1878
    %2400 = vmatpush.bf16.msra.mxu0 %v1874
    %2401 = vmatpush.bf16.msra.mxu0 %v1870
    %2402 = vmatpush.bf16.msra.mxu0 %v1866
    %2403 = vmatpush.bf16.msra.mxu0 %v1862
    %2404 = vmatpush.bf16.msra.mxu0 %v1858
    %2405 = vmatmul.bf16.gmra.mxu0 %v691
    %v2406 = vpop.f32.mrf.mxu0
    %v2407 = vadd.f32 %v2394, %v2406
    %v2408 = vpop.f32.mrf.mxu0
    %2409 = vdwg.mxu0
    %2410 = vmatpush.bf16.msra.mxu0 %v1918
    %2411 = vmatpush.bf16.msra.mxu0 %v1914
    %2412 = vmatpush.bf16.msra.mxu0 %v1910
    %2413 = vmatpush.bf16.msra.mxu0 %v1906
    %2414 = vmatpush.bf16.msra.mxu0 %v1902
    %2415 = vmatpush.bf16.msra.mxu0 %v1898
    %2416 = vmatpush.bf16.msra.mxu0 %v1894
    %2417 = vmatpush.bf16.msra.mxu0 %v1890
    %2418 = vmatmul.bf16.gmra.mxu0 %v692
    %v2419 = vpop.f32.mrf.mxu0
    %v2420 = vadd.f32 %v2407, %v2419
    %v2421 = vpop.f32.mrf.mxu0
    %2422 = vdwg.mxu0
    %2423 = vmatpush.bf16.msra.mxu0 %v1950
    %2424 = vmatpush.bf16.msra.mxu0 %v1946
    %2425 = vmatpush.bf16.msra.mxu0 %v1942
    %2426 = vmatpush.bf16.msra.mxu0 %v1938
    %2427 = vmatpush.bf16.msra.mxu0 %v1934
    %2428 = vmatpush.bf16.msra.mxu0 %v1930
    %2429 = vmatpush.bf16.msra.mxu0 %v1926
    %2430 = vmatpush.bf16.msra.mxu0 %v1922
    %2431 = vmatmul.bf16.gmra.mxu0 %v693
    %v2432 = vpop.f32.mrf.mxu0
    %v2433 = vadd.f32 %v2420, %v2432
    %v2434 = vpop.f32.mrf.mxu0
    %2435 = vdwg.mxu0
    %2436 = vmatpush.bf16.msra.mxu0 %v1982
    %2437 = vmatpush.bf16.msra.mxu0 %v1978
    %2438 = vmatpush.bf16.msra.mxu0 %v1974
    %2439 = vmatpush.bf16.msra.mxu0 %v1970
    %2440 = vmatpush.bf16.msra.mxu0 %v1966
    %2441 = vmatpush.bf16.msra.mxu0 %v1962
    %2442 = vmatpush.bf16.msra.mxu0 %v1958
    %2443 = vmatpush.bf16.msra.mxu0 %v1954
    %2444 = vmatmul.bf16.gmra.mxu0 %v694
    %v2445 = vpop.f32.mrf.mxu0
    %v2446 = vadd.f32 %v2433, %v2445
    %v2447 = vpop.f32.mrf.mxu0
    %2448 = vdwg.mxu0
    %2449 = vmatpush.bf16.msra.mxu0 %v1759
    %2450 = vmatpush.bf16.msra.mxu0 %v1755
    %2451 = vmatpush.bf16.msra.mxu0 %v1751
    %2452 = vmatpush.bf16.msra.mxu0 %v1747
    %2453 = vmatpush.bf16.msra.mxu0 %v1743
    %2454 = vmatpush.bf16.msra.mxu0 %v1739
    %2455 = vmatpush.bf16.msra.mxu0 %v1735
    %2456 = vmatpush.bf16.msra.mxu0 %v1731
    %2457 = vmatmul.bf16.gmra.mxu0 %v687
    %v2458 = vpop.f32.mrf.mxu0
    %v2459 = vadd.f32 %v955, %v2458
    %v2460 = vpop.f32.mrf.mxu0
    %2461 = vdwg.mxu0
    %2462 = vmatpush.bf16.msra.mxu0 %v1791
    %2463 = vmatpush.bf16.msra.mxu0 %v1787
    %2464 = vmatpush.bf16.msra.mxu0 %v1783
    %2465 = vmatpush.bf16.msra.mxu0 %v1779
    %2466 = vmatpush.bf16.msra.mxu0 %v1775
    %2467 = vmatpush.bf16.msra.mxu0 %v1771
    %2468 = vmatpush.bf16.msra.mxu0 %v1767
    %2469 = vmatpush.bf16.msra.mxu0 %v1763
    %2470 = vmatmul.bf16.gmra.mxu0 %v688
    %v2471 = vpop.f32.mrf.mxu0
    %v2472 = vadd.f32 %v2459, %v2471
    %v2473 = vpop.f32.mrf.mxu0
    %2474 = vdwg.mxu0
    %2475 = vmatpush.bf16.msra.mxu0 %v1823
    %2476 = vmatpush.bf16.msra.mxu0 %v1819
    %2477 = vmatpush.bf16.msra.mxu0 %v1815
    %2478 = vmatpush.bf16.msra.mxu0 %v1811
    %2479 = vmatpush.bf16.msra.mxu0 %v1807
    %2480 = vmatpush.bf16.msra.mxu0 %v1803
    %2481 = vmatpush.bf16.msra.mxu0 %v1799
    %2482 = vmatpush.bf16.msra.mxu0 %v1795
    %2483 = vmatmul.bf16.gmra.mxu0 %v689
    %v2484 = vpop.f32.mrf.mxu0
    %v2485 = vadd.f32 %v2472, %v2484
    %v2486 = vpop.f32.mrf.mxu0
    %2487 = vdwg.mxu0
    %2488 = vmatpush.bf16.msra.mxu0 %v1855
    %2489 = vmatpush.bf16.msra.mxu0 %v1851
    %2490 = vmatpush.bf16.msra.mxu0 %v1847
    %2491 = vmatpush.bf16.msra.mxu0 %v1843
    %2492 = vmatpush.bf16.msra.mxu0 %v1839
    %2493 = vmatpush.bf16.msra.mxu0 %v1835
    %2494 = vmatpush.bf16.msra.mxu0 %v1831
    %2495 = vmatpush.bf16.msra.mxu0 %v1827
    %2496 = vmatmul.bf16.gmra.mxu0 %v690
    %v2497 = vpop.f32.mrf.mxu0
    %v2498 = vadd.f32 %v2485, %v2497
    %v2499 = vpop.f32.mrf.mxu0
    %2500 = vdwg.mxu0
    %2501 = vmatpush.bf16.msra.mxu0 %v1887
    %2502 = vmatpush.bf16.msra.mxu0 %v1883
    %2503 = vmatpush.bf16.msra.mxu0 %v1879
    %2504 = vmatpush.bf16.msra.mxu0 %v1875
    %2505 = vmatpush.bf16.msra.mxu0 %v1871
    %2506 = vmatpush.bf16.msra.mxu0 %v1867
    %2507 = vmatpush.bf16.msra.mxu0 %v1863
    %2508 = vmatpush.bf16.msra.mxu0 %v1859
    %2509 = vmatmul.bf16.gmra.mxu0 %v691
    %v2510 = vpop.f32.mrf.mxu0
    %v2511 = vadd.f32 %v2498, %v2510
    %v2512 = vpop.f32.mrf.mxu0
    %2513 = vdwg.mxu0
    %2514 = vmatpush.bf16.msra.mxu0 %v1919
    %2515 = vmatpush.bf16.msra.mxu0 %v1915
    %2516 = vmatpush.bf16.msra.mxu0 %v1911
    %2517 = vmatpush.bf16.msra.mxu0 %v1907
    %2518 = vmatpush.bf16.msra.mxu0 %v1903
    %2519 = vmatpush.bf16.msra.mxu0 %v1899
    %2520 = vmatpush.bf16.msra.mxu0 %v1895
    %2521 = vmatpush.bf16.msra.mxu0 %v1891
    %2522 = vmatmul.bf16.gmra.mxu0 %v692
    %v2523 = vpop.f32.mrf.mxu0
    %v2524 = vadd.f32 %v2511, %v2523
    %v2525 = vpop.f32.mrf.mxu0
    %2526 = vdwg.mxu0
    %2527 = vmatpush.bf16.msra.mxu0 %v1951
    %2528 = vmatpush.bf16.msra.mxu0 %v1947
    %2529 = vmatpush.bf16.msra.mxu0 %v1943
    %2530 = vmatpush.bf16.msra.mxu0 %v1939
    %2531 = vmatpush.bf16.msra.mxu0 %v1935
    %2532 = vmatpush.bf16.msra.mxu0 %v1931
    %2533 = vmatpush.bf16.msra.mxu0 %v1927
    %2534 = vmatpush.bf16.msra.mxu0 %v1923
    %2535 = vmatmul.bf16.gmra.mxu0 %v693
    %v2536 = vpop.f32.mrf.mxu0
    %v2537 = vadd.f32 %v2524, %v2536
    %v2538 = vpop.f32.mrf.mxu0
    %2539 = vdwg.mxu0
    %2540 = vmatpush.bf16.msra.mxu0 %v1983
    %2541 = vmatpush.bf16.msra.mxu0 %v1979
    %2542 = vmatpush.bf16.msra.mxu0 %v1975
    %2543 = vmatpush.bf16.msra.mxu0 %v1971
    %2544 = vmatpush.bf16.msra.mxu0 %v1967
    %2545 = vmatpush.bf16.msra.mxu0 %v1963
    %2546 = vmatpush.bf16.msra.mxu0 %v1959
    %2547 = vmatpush.bf16.msra.mxu0 %v1955
    %2548 = vmatmul.bf16.gmra.mxu0 %v694
    %v2549 = vpop.f32.mrf.mxu0
    %v2550 = vadd.f32 %v2537, %v2549
    %v2551 = vpop.f32.mrf.mxu0
    %2552 = vdwg.mxu0
    %2553 = vmatpush.bf16.msra.mxu0 %v1760
    %2554 = vmatpush.bf16.msra.mxu0 %v1756
    %2555 = vmatpush.bf16.msra.mxu0 %v1752
    %2556 = vmatpush.bf16.msra.mxu0 %v1748
    %2557 = vmatpush.bf16.msra.mxu0 %v1744
    %2558 = vmatpush.bf16.msra.mxu0 %v1740
    %2559 = vmatpush.bf16.msra.mxu0 %v1736
    %2560 = vmatpush.bf16.msra.mxu0 %v1732
    %2561 = vmatmul.bf16.gmra.mxu0 %v687
    %v2562 = vpop.f32.mrf.mxu0
    %v2563 = vadd.f32 %v956, %v2562
    %v2564 = vpop.f32.mrf.mxu0
    %2565 = vdwg.mxu0
    %2566 = vmatpush.bf16.msra.mxu0 %v1792
    %2567 = vmatpush.bf16.msra.mxu0 %v1788
    %2568 = vmatpush.bf16.msra.mxu0 %v1784
    %2569 = vmatpush.bf16.msra.mxu0 %v1780
    %2570 = vmatpush.bf16.msra.mxu0 %v1776
    %2571 = vmatpush.bf16.msra.mxu0 %v1772
    %2572 = vmatpush.bf16.msra.mxu0 %v1768
    %2573 = vmatpush.bf16.msra.mxu0 %v1764
    %2574 = vmatmul.bf16.gmra.mxu0 %v688
    %v2575 = vpop.f32.mrf.mxu0
    %v2576 = vadd.f32 %v2563, %v2575
    %v2577 = vpop.f32.mrf.mxu0
    %2578 = vdwg.mxu0
    %2579 = vmatpush.bf16.msra.mxu0 %v1824
    %2580 = vmatpush.bf16.msra.mxu0 %v1820
    %2581 = vmatpush.bf16.msra.mxu0 %v1816
    %2582 = vmatpush.bf16.msra.mxu0 %v1812
    %2583 = vmatpush.bf16.msra.mxu0 %v1808
    %2584 = vmatpush.bf16.msra.mxu0 %v1804
    %2585 = vmatpush.bf16.msra.mxu0 %v1800
    %2586 = vmatpush.bf16.msra.mxu0 %v1796
    %2587 = vmatmul.bf16.gmra.mxu0 %v689
    %v2588 = vpop.f32.mrf.mxu0
    %v2589 = vadd.f32 %v2576, %v2588
    %v2590 = vpop.f32.mrf.mxu0
    %2591 = vdwg.mxu0
    %2592 = vmatpush.bf16.msra.mxu0 %v1856
    %2593 = vmatpush.bf16.msra.mxu0 %v1852
    %2594 = vmatpush.bf16.msra.mxu0 %v1848
    %2595 = vmatpush.bf16.msra.mxu0 %v1844
    %2596 = vmatpush.bf16.msra.mxu0 %v1840
    %2597 = vmatpush.bf16.msra.mxu0 %v1836
    %2598 = vmatpush.bf16.msra.mxu0 %v1832
    %2599 = vmatpush.bf16.msra.mxu0 %v1828
    %2600 = vmatmul.bf16.gmra.mxu0 %v690
    %v2601 = vpop.f32.mrf.mxu0
    %v2602 = vadd.f32 %v2589, %v2601
    %v2603 = vpop.f32.mrf.mxu0
    %2604 = vdwg.mxu0
    %2605 = vmatpush.bf16.msra.mxu0 %v1888
    %2606 = vmatpush.bf16.msra.mxu0 %v1884
    %2607 = vmatpush.bf16.msra.mxu0 %v1880
    %2608 = vmatpush.bf16.msra.mxu0 %v1876
    %2609 = vmatpush.bf16.msra.mxu0 %v1872
    %2610 = vmatpush.bf16.msra.mxu0 %v1868
    %2611 = vmatpush.bf16.msra.mxu0 %v1864
    %2612 = vmatpush.bf16.msra.mxu0 %v1860
    %2613 = vmatmul.bf16.gmra.mxu0 %v691
    %v2614 = vpop.f32.mrf.mxu0
    %v2615 = vadd.f32 %v2602, %v2614
    %v2616 = vpop.f32.mrf.mxu0
    %2617 = vdwg.mxu0
    %2618 = vmatpush.bf16.msra.mxu0 %v1920
    %2619 = vmatpush.bf16.msra.mxu0 %v1916
    %2620 = vmatpush.bf16.msra.mxu0 %v1912
    %2621 = vmatpush.bf16.msra.mxu0 %v1908
    %2622 = vmatpush.bf16.msra.mxu0 %v1904
    %2623 = vmatpush.bf16.msra.mxu0 %v1900
    %2624 = vmatpush.bf16.msra.mxu0 %v1896
    %2625 = vmatpush.bf16.msra.mxu0 %v1892
    %2626 = vmatmul.bf16.gmra.mxu0 %v692
    %v2627 = vpop.f32.mrf.mxu0
    %v2628 = vadd.f32 %v2615, %v2627
    %v2629 = vpop.f32.mrf.mxu0
    %2630 = vdwg.mxu0
    %2631 = vmatpush.bf16.msra.mxu0 %v1952
    %2632 = vmatpush.bf16.msra.mxu0 %v1948
    %2633 = vmatpush.bf16.msra.mxu0 %v1944
    %2634 = vmatpush.bf16.msra.mxu0 %v1940
    %2635 = vmatpush.bf16.msra.mxu0 %v1936
    %2636 = vmatpush.bf16.msra.mxu0 %v1932
    %2637 = vmatpush.bf16.msra.mxu0 %v1928
    %2638 = vmatpush.bf16.msra.mxu0 %v1924
    %2639 = vmatmul.bf16.gmra.mxu0 %v693
    %v2640 = vpop.f32.mrf.mxu0
    %v2641 = vadd.f32 %v2628, %v2640
    %v2642 = vpop.f32.mrf.mxu0
    %2643 = vdwg.mxu0
    %2644 = vmatpush.bf16.msra.mxu0 %v1984
    %2645 = vmatpush.bf16.msra.mxu0 %v1980
    %2646 = vmatpush.bf16.msra.mxu0 %v1976
    %2647 = vmatpush.bf16.msra.mxu0 %v1972
    %2648 = vmatpush.bf16.msra.mxu0 %v1968
    %2649 = vmatpush.bf16.msra.mxu0 %v1964
    %2650 = vmatpush.bf16.msra.mxu0 %v1960
    %2651 = vmatpush.bf16.msra.mxu0 %v1956
    %2652 = vmatmul.bf16.gmra.mxu0 %v694
    %v2653 = vpop.f32.mrf.mxu0
    %v2654 = vadd.f32 %v2641, %v2653
    %v2655 = vpop.f32.mrf.mxu0
    %2656 = vdwg.mxu0
    %v2657 = vmax.f32 %v2342, 0.0
    %v2658 = vmax.f32 %v2446, 0.0
    %v2659 = vmax.f32 %v2550, 0.0
    %v2660 = vmax.f32 %v2654, 0.0
    %v2661 = vpack.c.bf16 %v2657, %v2657
    %v2662 = vpack.c.bf16 %v2658, %v2658
    %v2663 = vpack.c.bf16 %v2659, %v2659
    %v2664 = vpack.c.bf16 %v2660, %v2660
    %v2665 = vld [vmem:[#allocation11] sm:$0xff]
    %v2666 = vld [vmem:[#allocation11 + $0x8] sm:$0xff]
    %v2667 = vld [vmem:[#allocation11 + $0x10] sm:$0xff]
    %v2668 = vld [vmem:[#allocation11 + $0x18] sm:$0xff]
    %v2669 = vld [vmem:[#allocation11 + $0x20] sm:$0xff]
    %v2670 = vld [vmem:[#allocation11 + $0x28] sm:$0xff]
    %v2671 = vld [vmem:[#allocation11 + $0x30] sm:$0xff]
    %v2672 = vld [vmem:[#allocation11 + $0x38] sm:$0xff]
    %v2673 = vld [vmem:[#allocation11 + $0x40] sm:$0xff]
    %v2674 = vld [vmem:[#allocation11 + $0x48] sm:$0xff]
    %v2675 = vld [vmem:[#allocation11 + $0x50] sm:$0xff]
    %v2676 = vld [vmem:[#allocation11 + $0x58] sm:$0xff]
    %v2677 = vld [vmem:[#allocation11 + $0x60] sm:$0xff]
    %v2678 = vld [vmem:[#allocation11 + $0x68] sm:$0xff]
    %v2679 = vld [vmem:[#allocation11 + $0x70] sm:$0xff]
    %v2680 = vld [vmem:[#allocation11 + $0x78] sm:$0xff]
    %v2681 = vld [vmem:[#allocation11 + $0x80] sm:$0xff]
    %v2682 = vld [vmem:[#allocation11 + $0x88] sm:$0xff]
    %v2683 = vld [vmem:[#allocation11 + $0x90] sm:$0xff]
    %v2684 = vld [vmem:[#allocation11 + $0x98] sm:$0xff]
    %v2685 = vld [vmem:[#allocation11 + $0xa0] sm:$0xff]
    %v2686 = vld [vmem:[#allocation11 + $0xa8] sm:$0xff]
    %v2687 = vld [vmem:[#allocation11 + $0xb0] sm:$0xff]
    %v2688 = vld [vmem:[#allocation11 + $0xb8] sm:$0xff]
    %v2689 = vld [vmem:[#allocation11 + $0xc0] sm:$0xff]
    %v2690 = vld [vmem:[#allocation11 + $0xc8] sm:$0xff]
    %v2691 = vld [vmem:[#allocation11 + $0xd0] sm:$0xff]
    %v2692 = vld [vmem:[#allocation11 + $0xd8] sm:$0xff]
    %v2693 = vld [vmem:[#allocation11 + $0xe0] sm:$0xff]
    %v2694 = vld [vmem:[#allocation11 + $0xe8] sm:$0xff]
    %v2695 = vld [vmem:[#allocation11 + $0xf0] sm:$0xff]
    %v2696 = vld [vmem:[#allocation11 + $0xf8] sm:$0xff]
    %v2697 = vld [vmem:[#allocation11 + $0x100] sm:$0xff]
    %v2698 = vld [vmem:[#allocation11 + $0x108] sm:$0xff]
    %v2699 = vld [vmem:[#allocation11 + $0x110] sm:$0xff]
    %v2700 = vld [vmem:[#allocation11 + $0x118] sm:$0xff]
    %v2701 = vld [vmem:[#allocation11 + $0x120] sm:$0xff]
    %v2702 = vld [vmem:[#allocation11 + $0x128] sm:$0xff]
    %v2703 = vld [vmem:[#allocation11 + $0x130] sm:$0xff]
    %v2704 = vld [vmem:[#allocation11 + $0x138] sm:$0xff]
    %v2705 = vld [vmem:[#allocation11 + $0x140] sm:$0xff]
    %v2706 = vld [vmem:[#allocation11 + $0x148] sm:$0xff]
    %v2707 = vld [vmem:[#allocation11 + $0x150] sm:$0xff]
    %v2708 = vld [vmem:[#allocation11 + $0x158] sm:$0xff]
    %v2709 = vld [vmem:[#allocation11 + $0x160] sm:$0xff]
    %v2710 = vld [vmem:[#allocation11 + $0x168] sm:$0xff]
    %v2711 = vld [vmem:[#allocation11 + $0x170] sm:$0xff]
    %v2712 = vld [vmem:[#allocation11 + $0x178] sm:$0xff]
    %v2713 = vld [vmem:[#allocation11 + $0x180] sm:$0xff]
    %v2714 = vld [vmem:[#allocation11 + $0x188] sm:$0xff]
    %v2715 = vld [vmem:[#allocation11 + $0x190] sm:$0xff]
    %v2716 = vld [vmem:[#allocation11 + $0x198] sm:$0xff]
    %v2717 = vld [vmem:[#allocation11 + $0x1a0] sm:$0xff]
    %v2718 = vld [vmem:[#allocation11 + $0x1a8] sm:$0xff]
    %v2719 = vld [vmem:[#allocation11 + $0x1b0] sm:$0xff]
    %v2720 = vld [vmem:[#allocation11 + $0x1b8] sm:$0xff]
    %v2721 = vld [vmem:[#allocation11 + $0x1c0] sm:$0xff]
    %v2722 = vld [vmem:[#allocation11 + $0x1c8] sm:$0xff]
    %v2723 = vld [vmem:[#allocation11 + $0x1d0] sm:$0xff]
    %v2724 = vld [vmem:[#allocation11 + $0x1d8] sm:$0xff]
    %v2725 = vld [vmem:[#allocation11 + $0x1e0] sm:$0xff]
    %v2726 = vld [vmem:[#allocation11 + $0x1e8] sm:$0xff]
    %v2727 = vld [vmem:[#allocation11 + $0x1f0] sm:$0xff]
    %v2728 = vld [vmem:[#allocation11 + $0x1f8] sm:$0xff]
    %v2729 = vld [vmem:[%s6] sm:$0x3]
    %v2731 = vperm.slane %v2729, 0
    %v2732 = vperm.slane %v2729, 1
    %v2799 = vunpack.c.l.b16 %v2665
    %v2800 = vunpack.c.h.b16 %v2665
    %v2801 = vunpack.c.l.b16 %v2666
    %v2802 = vunpack.c.h.b16 %v2666
    %v2803 = vunpack.c.l.b16 %v2667
    %v2804 = vunpack.c.h.b16 %v2667
    %v2805 = vunpack.c.l.b16 %v2668
    %v2806 = vunpack.c.h.b16 %v2668
    %v2807 = vunpack.c.l.b16 %v2669
    %v2808 = vunpack.c.h.b16 %v2669
    %v2809 = vunpack.c.l.b16 %v2670
    %v2810 = vunpack.c.h.b16 %v2670
    %v2811 = vunpack.c.l.b16 %v2671
    %v2812 = vunpack.c.h.b16 %v2671
    %v2813 = vunpack.c.l.b16 %v2672
    %v2814 = vunpack.c.h.b16 %v2672
    %v2815 = vunpack.c.l.b16 %v2673
    %v2816 = vunpack.c.h.b16 %v2673
    %v2817 = vunpack.c.l.b16 %v2674
    %v2818 = vunpack.c.h.b16 %v2674
    %v2819 = vunpack.c.l.b16 %v2675
    %v2820 = vunpack.c.h.b16 %v2675
    %v2821 = vunpack.c.l.b16 %v2676
    %v2822 = vunpack.c.h.b16 %v2676
    %v2823 = vunpack.c.l.b16 %v2677
    %v2824 = vunpack.c.h.b16 %v2677
    %v2825 = vunpack.c.l.b16 %v2678
    %v2826 = vunpack.c.h.b16 %v2678
    %v2827 = vunpack.c.l.b16 %v2679
    %v2828 = vunpack.c.h.b16 %v2679
    %v2829 = vunpack.c.l.b16 %v2680
    %v2830 = vunpack.c.h.b16 %v2680
    %v2831 = vunpack.c.l.b16 %v2681
    %v2832 = vunpack.c.h.b16 %v2681
    %v2833 = vunpack.c.l.b16 %v2682
    %v2834 = vunpack.c.h.b16 %v2682
    %v2835 = vunpack.c.l.b16 %v2683
    %v2836 = vunpack.c.h.b16 %v2683
    %v2837 = vunpack.c.l.b16 %v2684
    %v2838 = vunpack.c.h.b16 %v2684
    %v2839 = vunpack.c.l.b16 %v2685
    %v2840 = vunpack.c.h.b16 %v2685
    %v2841 = vunpack.c.l.b16 %v2686
    %v2842 = vunpack.c.h.b16 %v2686
    %v2843 = vunpack.c.l.b16 %v2687
    %v2844 = vunpack.c.h.b16 %v2687
    %v2845 = vunpack.c.l.b16 %v2688
    %v2846 = vunpack.c.h.b16 %v2688
    %v2847 = vunpack.c.l.b16 %v2689
    %v2848 = vunpack.c.h.b16 %v2689
    %v2849 = vunpack.c.l.b16 %v2690
    %v2850 = vunpack.c.h.b16 %v2690
    %v2851 = vunpack.c.l.b16 %v2691
    %v2852 = vunpack.c.h.b16 %v2691
    %v2853 = vunpack.c.l.b16 %v2692
    %v2854 = vunpack.c.h.b16 %v2692
    %v2855 = vunpack.c.l.b16 %v2693
    %v2856 = vunpack.c.h.b16 %v2693
    %v2857 = vunpack.c.l.b16 %v2694
    %v2858 = vunpack.c.h.b16 %v2694
    %v2859 = vunpack.c.l.b16 %v2695
    %v2860 = vunpack.c.h.b16 %v2695
    %v2861 = vunpack.c.l.b16 %v2696
    %v2862 = vunpack.c.h.b16 %v2696
    %v2863 = vunpack.c.l.b16 %v2697
    %v2864 = vunpack.c.h.b16 %v2697
    %v2865 = vunpack.c.l.b16 %v2698
    %v2866 = vunpack.c.h.b16 %v2698
    %v2867 = vunpack.c.l.b16 %v2699
    %v2868 = vunpack.c.h.b16 %v2699
    %v2869 = vunpack.c.l.b16 %v2700
    %v2870 = vunpack.c.h.b16 %v2700
    %v2871 = vunpack.c.l.b16 %v2701
    %v2872 = vunpack.c.h.b16 %v2701
    %v2873 = vunpack.c.l.b16 %v2702
    %v2874 = vunpack.c.h.b16 %v2702
    %v2875 = vunpack.c.l.b16 %v2703
    %v2876 = vunpack.c.h.b16 %v2703
    %v2877 = vunpack.c.l.b16 %v2704
    %v2878 = vunpack.c.h.b16 %v2704
    %v2879 = vunpack.c.l.b16 %v2705
    %v2880 = vunpack.c.h.b16 %v2705
    %v2881 = vunpack.c.l.b16 %v2706
    %v2882 = vunpack.c.h.b16 %v2706
    %v2883 = vunpack.c.l.b16 %v2707
    %v2884 = vunpack.c.h.b16 %v2707
    %v2885 = vunpack.c.l.b16 %v2708
    %v2886 = vunpack.c.h.b16 %v2708
    %v2887 = vunpack.c.l.b16 %v2709
    %v2888 = vunpack.c.h.b16 %v2709
    %v2889 = vunpack.c.l.b16 %v2710
    %v2890 = vunpack.c.h.b16 %v2710
    %v2891 = vunpack.c.l.b16 %v2711
    %v2892 = vunpack.c.h.b16 %v2711
    %v2893 = vunpack.c.l.b16 %v2712
    %v2894 = vunpack.c.h.b16 %v2712
    %v2895 = vunpack.c.l.b16 %v2713
    %v2896 = vunpack.c.h.b16 %v2713
    %v2897 = vunpack.c.l.b16 %v2714
    %v2898 = vunpack.c.h.b16 %v2714
    %v2899 = vunpack.c.l.b16 %v2715
    %v2900 = vunpack.c.h.b16 %v2715
    %v2901 = vunpack.c.l.b16 %v2716
    %v2902 = vunpack.c.h.b16 %v2716
    %v2903 = vunpack.c.l.b16 %v2717
    %v2904 = vunpack.c.h.b16 %v2717
    %v2905 = vunpack.c.l.b16 %v2718
    %v2906 = vunpack.c.h.b16 %v2718
    %v2907 = vunpack.c.l.b16 %v2719
    %v2908 = vunpack.c.h.b16 %v2719
    %v2909 = vunpack.c.l.b16 %v2720
    %v2910 = vunpack.c.h.b16 %v2720
    %v2911 = vunpack.c.l.b16 %v2721
    %v2912 = vunpack.c.h.b16 %v2721
    %v2913 = vunpack.c.l.b16 %v2722
    %v2914 = vunpack.c.h.b16 %v2722
    %v2915 = vunpack.c.l.b16 %v2723
    %v2916 = vunpack.c.h.b16 %v2723
    %v2917 = vunpack.c.l.b16 %v2724
    %v2918 = vunpack.c.h.b16 %v2724
    %v2919 = vunpack.c.l.b16 %v2725
    %v2920 = vunpack.c.h.b16 %v2725
    %v2921 = vunpack.c.l.b16 %v2726
    %v2922 = vunpack.c.h.b16 %v2726
    %v2923 = vunpack.c.l.b16 %v2727
    %v2924 = vunpack.c.h.b16 %v2727
    %v2925 = vunpack.c.l.b16 %v2728
    %v2926 = vunpack.c.h.b16 %v2728
    %v2927 = vpack.c.b16 %v2801, %v2799
    %v2928 = vpack.c.b16 %v2802, %v2800
    %v2929 = vpack.c.b16 %v2805, %v2803
    %v2930 = vpack.c.b16 %v2806, %v2804
    %v2931 = vpack.c.b16 %v2809, %v2807
    %v2932 = vpack.c.b16 %v2810, %v2808
    %v2933 = vpack.c.b16 %v2813, %v2811
    %v2934 = vpack.c.b16 %v2814, %v2812
    %v2935 = vpack.c.b16 %v2817, %v2815
    %v2936 = vpack.c.b16 %v2818, %v2816
    %v2937 = vpack.c.b16 %v2821, %v2819
    %v2938 = vpack.c.b16 %v2822, %v2820
    %v2939 = vpack.c.b16 %v2825, %v2823
    %v2940 = vpack.c.b16 %v2826, %v2824
    %v2941 = vpack.c.b16 %v2829, %v2827
    %v2942 = vpack.c.b16 %v2830, %v2828
    %v2943 = vpack.c.b16 %v2833, %v2831
    %v2944 = vpack.c.b16 %v2834, %v2832
    %v2945 = vpack.c.b16 %v2837, %v2835
    %v2946 = vpack.c.b16 %v2838, %v2836
    %v2947 = vpack.c.b16 %v2841, %v2839
    %v2948 = vpack.c.b16 %v2842, %v2840
    %v2949 = vpack.c.b16 %v2845, %v2843
    %v2950 = vpack.c.b16 %v2846, %v2844
    %v2951 = vpack.c.b16 %v2849, %v2847
    %v2952 = vpack.c.b16 %v2850, %v2848
    %v2953 = vpack.c.b16 %v2853, %v2851
    %v2954 = vpack.c.b16 %v2854, %v2852
    %v2955 = vpack.c.b16 %v2857, %v2855
    %v2956 = vpack.c.b16 %v2858, %v2856
    %v2957 = vpack.c.b16 %v2861, %v2859
    %v2958 = vpack.c.b16 %v2862, %v2860
    %v2959 = vpack.c.b16 %v2865, %v2863
    %v2960 = vpack.c.b16 %v2866, %v2864
    %v2961 = vpack.c.b16 %v2869, %v2867
    %v2962 = vpack.c.b16 %v2870, %v2868
    %v2963 = vpack.c.b16 %v2873, %v2871
    %v2964 = vpack.c.b16 %v2874, %v2872
    %v2965 = vpack.c.b16 %v2877, %v2875
    %v2966 = vpack.c.b16 %v2878, %v2876
    %v2967 = vpack.c.b16 %v2881, %v2879
    %v2968 = vpack.c.b16 %v2882, %v2880
    %v2969 = vpack.c.b16 %v2885, %v2883
    %v2970 = vpack.c.b16 %v2886, %v2884
    %v2971 = vpack.c.b16 %v2889, %v2887
    %v2972 = vpack.c.b16 %v2890, %v2888
    %v2973 = vpack.c.b16 %v2893, %v2891
    %v2974 = vpack.c.b16 %v2894, %v2892
    %v2975 = vpack.c.b16 %v2897, %v2895
    %v2976 = vpack.c.b16 %v2898, %v2896
    %v2977 = vpack.c.b16 %v2901, %v2899
    %v2978 = vpack.c.b16 %v2902, %v2900
    %v2979 = vpack.c.b16 %v2905, %v2903
    %v2980 = vpack.c.b16 %v2906, %v2904
    %v2981 = vpack.c.b16 %v2909, %v2907
    %v2982 = vpack.c.b16 %v2910, %v2908
    %v2983 = vpack.c.b16 %v2913, %v2911
    %v2984 = vpack.c.b16 %v2914, %v2912
    %v2985 = vpack.c.b16 %v2917, %v2915
    %v2986 = vpack.c.b16 %v2918, %v2916
    %v2987 = vpack.c.b16 %v2921, %v2919
    %v2988 = vpack.c.b16 %v2922, %v2920
    %v2989 = vpack.c.b16 %v2925, %v2923
    %v2990 = vpack.c.b16 %v2926, %v2924
    %3055 = vmatpush.bf16.msra.mxu0 %v2941
    %3056 = vmatpush.bf16.msra.mxu0 %v2939
    %3057 = vmatpush.bf16.msra.mxu0 %v2937
    %3058 = vmatpush.bf16.msra.mxu0 %v2935
    %3059 = vmatpush.bf16.msra.mxu0 %v2933
    %3060 = vmatpush.bf16.msra.mxu0 %v2931
    %3061 = vmatpush.bf16.msra.mxu0 %v2929
    %3062 = vmatpush.bf16.msra.mxu0 %v2927
    %3063 = vmatmul.bf16.gmra.mxu0 %v2661
    %v3064 = vpop.f32.mrf.mxu0
    %v3065 = vadd.f32 %v2731, %v3064
    %v3066 = vpop.f32.mrf.mxu0
    %3067 = vdwg.mxu0
    %3068 = vmatpush.bf16.msra.mxu0 %v2957
    %3069 = vmatpush.bf16.msra.mxu0 %v2955
    %3070 = vmatpush.bf16.msra.mxu0 %v2953
    %3071 = vmatpush.bf16.msra.mxu0 %v2951
    %3072 = vmatpush.bf16.msra.mxu0 %v2949
    %3073 = vmatpush.bf16.msra.mxu0 %v2947
    %3074 = vmatpush.bf16.msra.mxu0 %v2945
    %3075 = vmatpush.bf16.msra.mxu0 %v2943
    %3076 = vmatmul.bf16.gmra.mxu0 %v2662
    %v3077 = vpop.f32.mrf.mxu0
    %v3078 = vadd.f32 %v3065, %v3077
    %v3079 = vpop.f32.mrf.mxu0
    %3080 = vdwg.mxu0
    %3081 = vmatpush.bf16.msra.mxu0 %v2973
    %3082 = vmatpush.bf16.msra.mxu0 %v2971
    %3083 = vmatpush.bf16.msra.mxu0 %v2969
    %3084 = vmatpush.bf16.msra.mxu0 %v2967
    %3085 = vmatpush.bf16.msra.mxu0 %v2965
    %3086 = vmatpush.bf16.msra.mxu0 %v2963
    %3087 = vmatpush.bf16.msra.mxu0 %v2961
    %3088 = vmatpush.bf16.msra.mxu0 %v2959
    %3089 = vmatmul.bf16.gmra.mxu0 %v2663
    %v3090 = vpop.f32.mrf.mxu0
    %v3091 = vadd.f32 %v3078, %v3090
    %v3092 = vpop.f32.mrf.mxu0
    %3093 = vdwg.mxu0
    %3094 = vmatpush.bf16.msra.mxu0 %v2989
    %3095 = vmatpush.bf16.msra.mxu0 %v2987
    %3096 = vmatpush.bf16.msra.mxu0 %v2985
    %3097 = vmatpush.bf16.msra.mxu0 %v2983
    %3098 = vmatpush.bf16.msra.mxu0 %v2981
    %3099 = vmatpush.bf16.msra.mxu0 %v2979
    %3100 = vmatpush.bf16.msra.mxu0 %v2977
    %3101 = vmatpush.bf16.msra.mxu0 %v2975
    %3102 = vmatmul.bf16.gmra.mxu0 %v2664
    %v3103 = vpop.f32.mrf.mxu0
    %v3104 = vadd.f32 %v3091, %v3103
    %v3105 = vpop.f32.mrf.mxu0
    %3106 = vdwg.mxu0
    %3107 = vmatpush.bf16.msra.mxu0 %v2942
    %3108 = vmatpush.bf16.msra.mxu0 %v2940
    %3109 = vmatpush.bf16.msra.mxu0 %v2938
    %3110 = vmatpush.bf16.msra.mxu0 %v2936
    %3111 = vmatpush.bf16.msra.mxu0 %v2934
    %3112 = vmatpush.bf16.msra.mxu0 %v2932
    %3113 = vmatpush.bf16.msra.mxu0 %v2930
    %3114 = vmatpush.bf16.msra.mxu0 %v2928
    %3115 = vmatmul.bf16.gmra.mxu0 %v2661
    %v3116 = vpop.f32.mrf.mxu0
    %v3117 = vadd.f32 %v2732, %v3116
    %v3118 = vpop.f32.mrf.mxu0
    %3119 = vdwg.mxu0
    %3120 = vmatpush.bf16.msra.mxu0 %v2958
    %3121 = vmatpush.bf16.msra.mxu0 %v2956
    %3122 = vmatpush.bf16.msra.mxu0 %v2954
    %3123 = vmatpush.bf16.msra.mxu0 %v2952
    %3124 = vmatpush.bf16.msra.mxu0 %v2950
    %3125 = vmatpush.bf16.msra.mxu0 %v2948
    %3126 = vmatpush.bf16.msra.mxu0 %v2946
    %3127 = vmatpush.bf16.msra.mxu0 %v2944
    %3128 = vmatmul.bf16.gmra.mxu0 %v2662
    %v3129 = vpop.f32.mrf.mxu0
    %v3130 = vadd.f32 %v3117, %v3129
    %v3131 = vpop.f32.mrf.mxu0
    %3132 = vdwg.mxu0
    %3133 = vmatpush.bf16.msra.mxu0 %v2974
    %3134 = vmatpush.bf16.msra.mxu0 %v2972
    %3135 = vmatpush.bf16.msra.mxu0 %v2970
    %3136 = vmatpush.bf16.msra.mxu0 %v2968
    %3137 = vmatpush.bf16.msra.mxu0 %v2966
    %3138 = vmatpush.bf16.msra.mxu0 %v2964
    %3139 = vmatpush.bf16.msra.mxu0 %v2962
    %3140 = vmatpush.bf16.msra.mxu0 %v2960
    %3141 = vmatmul.bf16.gmra.mxu0 %v2663
    %v3142 = vpop.f32.mrf.mxu0
    %v3143 = vadd.f32 %v3130, %v3142
    %v3144 = vpop.f32.mrf.mxu0
    %3145 = vdwg.mxu0
    %3146 = vmatpush.bf16.msra.mxu0 %v2990
    %3147 = vmatpush.bf16.msra.mxu0 %v2988
    %3148 = vmatpush.bf16.msra.mxu0 %v2986
    %3149 = vmatpush.bf16.msra.mxu0 %v2984
    %3150 = vmatpush.bf16.msra.mxu0 %v2982
    %3151 = vmatpush.bf16.msra.mxu0 %v2980
    %3152 = vmatpush.bf16.msra.mxu0 %v2978
    %3153 = vmatpush.bf16.msra.mxu0 %v2976
    %3154 = vmatmul.bf16.gmra.mxu0 %v2664
    %v3155 = vpop.f32.mrf.mxu0
    %v3156 = vadd.f32 %v3143, %v3155
    %v3157 = vpop.f32.mrf.mxu0
    %3158 = vdwg.mxu0
    %v3159 = vmax.f32 %v3104, 0.0
    %v3160 = vmax.f32 %v3156, 0.0
    %v3161 = vpack.c.bf16 %v3159, %v3159
    %v3162 = vpack.c.bf16 %v3160, %v3160
    %v3163 = vld [vmem:[#allocation13] sm:$0xf]
    %v3164 = vld [vmem:[#allocation13 + $0x4] sm:$0xf]
    %v3165 = vld [vmem:[#allocation13 + $0x8] sm:$0xf]
    %v3166 = vld [vmem:[#allocation13 + $0xc] sm:$0xf]
    %v3167 = vld [vmem:[#allocation13 + $0x10] sm:$0xf]
    %v3168 = vld [vmem:[#allocation13 + $0x14] sm:$0xf]
    %v3169 = vld [vmem:[#allocation13 + $0x18] sm:$0xf]
    %v3170 = vld [vmem:[#allocation13 + $0x1c] sm:$0xf]
    %v3171 = vld [vmem:[#allocation13 + $0x20] sm:$0xf]
    %v3172 = vld [vmem:[#allocation13 + $0x24] sm:$0xf]
    %v3173 = vld [vmem:[#allocation13 + $0x28] sm:$0xf]
    %v3174 = vld [vmem:[#allocation13 + $0x2c] sm:$0xf]
    %v3175 = vld [vmem:[#allocation13 + $0x30] sm:$0xf]
    %v3176 = vld [vmem:[#allocation13 + $0x34] sm:$0xf]
    %v3177 = vld [vmem:[#allocation13 + $0x38] sm:$0xf]
    %v3178 = vld [vmem:[#allocation13 + $0x3c] sm:$0xf]
    %v3179 = vld [vmem:[#allocation13 + $0x40] sm:$0xf]
    %v3180 = vld [vmem:[#allocation13 + $0x44] sm:$0xf]
    %v3181 = vld [vmem:[#allocation13 + $0x48] sm:$0xf]
    %v3182 = vld [vmem:[#allocation13 + $0x4c] sm:$0xf]
    %v3183 = vld [vmem:[#allocation13 + $0x50] sm:$0xf]
    %v3184 = vld [vmem:[#allocation13 + $0x54] sm:$0xf]
    %v3185 = vld [vmem:[#allocation13 + $0x58] sm:$0xf]
    %v3186 = vld [vmem:[#allocation13 + $0x5c] sm:$0xf]
    %v3187 = vld [vmem:[#allocation13 + $0x60] sm:$0xf]
    %v3188 = vld [vmem:[#allocation13 + $0x64] sm:$0xf]
    %v3189 = vld [vmem:[#allocation13 + $0x68] sm:$0xf]
    %v3190 = vld [vmem:[#allocation13 + $0x6c] sm:$0xf]
    %v3191 = vld [vmem:[#allocation13 + $0x70] sm:$0xf]
    %v3192 = vld [vmem:[#allocation13 + $0x74] sm:$0xf]
    %v3193 = vld [vmem:[#allocation13 + $0x78] sm:$0xf]
    %v3194 = vld [vmem:[#allocation13 + $0x7c] sm:$0xf]
    %v3195 = vld [vmem:[#allocation14] sm:$0x1]
    %v3197 = vperm.slane %v3195, 0
    %v3231 = vunpack.c.l.b16 %v3163
    %v3232 = vunpack.c.l.b16 %v3164
    %v3233 = vunpack.c.l.b16 %v3165
    %v3234 = vunpack.c.l.b16 %v3166
    %v3235 = vunpack.c.l.b16 %v3167
    %v3236 = vunpack.c.l.b16 %v3168
    %v3237 = vunpack.c.l.b16 %v3169
    %v3238 = vunpack.c.l.b16 %v3170
    %v3239 = vunpack.c.l.b16 %v3171
    %v3240 = vunpack.c.l.b16 %v3172
    %v3241 = vunpack.c.l.b16 %v3173
    %v3242 = vunpack.c.l.b16 %v3174
    %v3243 = vunpack.c.l.b16 %v3175
    %v3244 = vunpack.c.l.b16 %v3176
    %v3245 = vunpack.c.l.b16 %v3177
    %v3246 = vunpack.c.l.b16 %v3178
    %v3247 = vunpack.c.l.b16 %v3179
    %v3248 = vunpack.c.l.b16 %v3180
    %v3249 = vunpack.c.l.b16 %v3181
    %v3250 = vunpack.c.l.b16 %v3182
    %v3251 = vunpack.c.l.b16 %v3183
    %v3252 = vunpack.c.l.b16 %v3184
    %v3253 = vunpack.c.l.b16 %v3185
    %v3254 = vunpack.c.l.b16 %v3186
    %v3255 = vunpack.c.l.b16 %v3187
    %v3256 = vunpack.c.l.b16 %v3188
    %v3257 = vunpack.c.l.b16 %v3189
    %v3258 = vunpack.c.l.b16 %v3190
    %v3259 = vunpack.c.l.b16 %v3191
    %v3260 = vunpack.c.l.b16 %v3192
    %v3261 = vunpack.c.l.b16 %v3193
    %v3262 = vunpack.c.l.b16 %v3194
    %v3263 = vpack.c.b16 %v3232, %v3231
    %v3264 = vpack.c.b16 %v3234, %v3233
    %v3265 = vpack.c.b16 %v3236, %v3235
    %v3266 = vpack.c.b16 %v3238, %v3237
    %v3267 = vpack.c.b16 %v3240, %v3239
    %v3268 = vpack.c.b16 %v3242, %v3241
    %v3269 = vpack.c.b16 %v3244, %v3243
    %v3270 = vpack.c.b16 %v3246, %v3245
    %v3271 = vpack.c.b16 %v3248, %v3247
    %v3272 = vpack.c.b16 %v3250, %v3249
    %v3273 = vpack.c.b16 %v3252, %v3251
    %v3274 = vpack.c.b16 %v3254, %v3253
    %v3275 = vpack.c.b16 %v3256, %v3255
    %v3276 = vpack.c.b16 %v3258, %v3257
    %v3277 = vpack.c.b16 %v3260, %v3259
    %v3278 = vpack.c.b16 %v3262, %v3261
    %3295 = vmatpush.bf16.msra.mxu0 %v3270
    %3296 = vmatpush.bf16.msra.mxu0 %v3269
    %3297 = vmatpush.bf16.msra.mxu0 %v3268
    %3298 = vmatpush.bf16.msra.mxu0 %v3267
    %3299 = vmatpush.bf16.msra.mxu0 %v3266
    %3300 = vmatpush.bf16.msra.mxu0 %v3265
    %3301 = vmatpush.bf16.msra.mxu0 %v3264
    %3302 = vmatpush.bf16.msra.mxu0 %v3263
    %3303 = vmatmul.bf16.gmra.mxu0 %v3161
    %v3304 = vpop.f32.mrf.mxu0
    %v3305 = vadd.f32 %v3197, %v3304
    %v3306 = vpop.f32.mrf.mxu0
    %3307 = vdwg.mxu0
    %3308 = vmatpush.bf16.msra.mxu0 %v3278
    %3309 = vmatpush.bf16.msra.mxu0 %v3277
    %3310 = vmatpush.bf16.msra.mxu0 %v3276
    %3311 = vmatpush.bf16.msra.mxu0 %v3275
    %3312 = vmatpush.bf16.msra.mxu0 %v3274
    %3313 = vmatpush.bf16.msra.mxu0 %v3273
    %3314 = vmatpush.bf16.msra.mxu0 %v3272
    %3315 = vmatpush.bf16.msra.mxu0 %v3271
    %3316 = vmatmul.bf16.gmra.mxu0 %v3162
    %v3317 = vpop.f32.mrf.mxu0
    %v3318 = vadd.f32 %v3305, %v3317
    %v3319 = vpop.f32.mrf.mxu0
    %3320 = vdwg.mxu0
    %v3321 = vpack.c.bf16 %v3318, %v3318
    %v3322 = vld [vmem:[#allocation16] sm:$0xff]
    %v3323 = vld [vmem:[#allocation16 + $0x8] sm:$0xff]
    %v3324 = vld [vmem:[#allocation16 + $0x10] sm:$0xff]
    %v3325 = vld [vmem:[#allocation16 + $0x18] sm:$0xf]
    %v3326 = vld [vmem:[#allocation16 + $0x1c] sm:$0xff]
    %v3327 = vld [vmem:[#allocation16 + $0x24] sm:$0xff]
    %v3328 = vld [vmem:[#allocation16 + $0x2c] sm:$0xff]
    %v3329 = vld [vmem:[#allocation16 + $0x34] sm:$0xf]
    %v3330 = vld [vmem:[#allocation16 + $0x38] sm:$0xff]
    %v3331 = vld [vmem:[#allocation16 + $0x40] sm:$0xff]
    %v3332 = vld [vmem:[#allocation16 + $0x48] sm:$0xff]
    %v3333 = vld [vmem:[#allocation16 + $0x50] sm:$0xf]
    %v3334 = vld [vmem:[#allocation16 + $0x54] sm:$0xff]
    %v3335 = vld [vmem:[#allocation16 + $0x5c] sm:$0xff]
    %v3336 = vld [vmem:[#allocation16 + $0x64] sm:$0xff]
    %v3337 = vld [vmem:[#allocation16 + $0x6c] sm:$0xf]
    %v3338 = vld [vmem:[#allocation16 + $0x70] sm:$0xff]
    %v3339 = vld [vmem:[#allocation16 + $0x78] sm:$0xff]
    %v3340 = vld [vmem:[#allocation16 + $0x80] sm:$0xff]
    %v3341 = vld [vmem:[#allocation16 + $0x88] sm:$0xf]
    %v3342 = vld [vmem:[#allocation16 + $0x8c] sm:$0xff]
    %v3343 = vld [vmem:[#allocation16 + $0x94] sm:$0xff]
    %v3344 = vld [vmem:[#allocation16 + $0x9c] sm:$0xff]
    %v3345 = vld [vmem:[#allocation16 + $0xa4] sm:$0xf]
    %v3346 = vld [vmem:[#allocation16 + $0xa8] sm:$0xff]
    %v3347 = vld [vmem:[#allocation16 + $0xb0] sm:$0xff]
    %v3348 = vld [vmem:[#allocation16 + $0xb8] sm:$0xff]
    %v3349 = vld [vmem:[#allocation16 + $0xc0] sm:$0xf]
    %v3350 = vld [vmem:[#allocation16 + $0xc4] sm:$0xff]
    %v3351 = vld [vmem:[#allocation16 + $0xcc] sm:$0xff]
    %v3352 = vld [vmem:[#allocation16 + $0xd4] sm:$0xff]
    %v3353 = vld [vmem:[#allocation16 + $0xdc] sm:$0xf]
    %v3354 = vld [vmem:[#allocation16 + $0xe0] sm:$0xff]
    %v3355 = vld [vmem:[#allocation16 + $0xe8] sm:$0xff]
    %v3356 = vld [vmem:[#allocation16 + $0xf0] sm:$0xff]
    %v3357 = vld [vmem:[#allocation16 + $0xf8] sm:$0xf]
    %v3358 = vld [vmem:[#allocation16 + $0xfc] sm:$0xff]
    %v3359 = vld [vmem:[#allocation16 + $0x104] sm:$0xff]
    %v3360 = vld [vmem:[#allocation16 + $0x10c] sm:$0xff]
    %v3361 = vld [vmem:[#allocation16 + $0x114] sm:$0xf]
    %v3362 = vld [vmem:[#allocation16 + $0x118] sm:$0xff]
    %v3363 = vld [vmem:[#allocation16 + $0x120] sm:$0xff]
    %v3364 = vld [vmem:[#allocation16 + $0x128] sm:$0xff]
    %v3365 = vld [vmem:[#allocation16 + $0x130] sm:$0xf]
    %v3366 = vld [vmem:[#allocation16 + $0x134] sm:$0xff]
    %v3367 = vld [vmem:[#allocation16 + $0x13c] sm:$0xff]
    %v3368 = vld [vmem:[#allocation16 + $0x144] sm:$0xff]
    %v3369 = vld [vmem:[#allocation16 + $0x14c] sm:$0xf]
    %v3370 = vld [vmem:[#allocation16 + $0x150] sm:$0xff]
    %v3371 = vld [vmem:[#allocation16 + $0x158] sm:$0xff]
    %v3372 = vld [vmem:[#allocation16 + $0x160] sm:$0xff]
    %v3373 = vld [vmem:[#allocation16 + $0x168] sm:$0xf]
    %v3374 = vld [vmem:[#allocation16 + $0x16c] sm:$0xff]
    %v3375 = vld [vmem:[#allocation16 + $0x174] sm:$0xff]
    %v3376 = vld [vmem:[#allocation16 + $0x17c] sm:$0xff]
    %v3377 = vld [vmem:[#allocation16 + $0x184] sm:$0xf]
    %v3378 = vld [vmem:[#allocation16 + $0x188] sm:$0xff]
    %v3379 = vld [vmem:[#allocation16 + $0x190] sm:$0xff]
    %v3380 = vld [vmem:[#allocation16 + $0x198] sm:$0xff]
    %v3381 = vld [vmem:[#allocation16 + $0x1a0] sm:$0xf]
    %v3382 = vld [vmem:[#allocation16 + $0x1a4] sm:$0xff]
    %v3383 = vld [vmem:[#allocation16 + $0x1ac] sm:$0xff]
    %v3384 = vld [vmem:[#allocation16 + $0x1b4] sm:$0xff]
    %v3385 = vld [vmem:[#allocation16 + $0x1bc] sm:$0xf]
    %v3386 = vld [vmem:[%s10] sm:$0xff]
    %v3388 = vperm.slane %v3386, 0
    %v3389 = vperm.slane %v3386, 1
    %v3390 = vperm.slane %v3386, 2
    %v3391 = vperm.slane %v3386, 3
    %v3392 = vperm.slane %v3386, 4
    %v3393 = vperm.slane %v3386, 5
    %v3394 = vperm.slane %v3386, 6
    %v3466 = vunpack.c.l.b16 %v3322
    %v3467 = vunpack.c.h.b16 %v3322
    %v3468 = vunpack.c.l.b16 %v3323
    %v3469 = vunpack.c.h.b16 %v3323
    %v3470 = vunpack.c.l.b16 %v3324
    %v3471 = vunpack.c.h.b16 %v3324
    %v3472 = vunpack.c.l.b16 %v3325
    %v3473 = vunpack.c.l.b16 %v3326
    %v3474 = vunpack.c.h.b16 %v3326
    %v3475 = vunpack.c.l.b16 %v3327
    %v3476 = vunpack.c.h.b16 %v3327
    %v3477 = vunpack.c.l.b16 %v3328
    %v3478 = vunpack.c.h.b16 %v3328
    %v3479 = vunpack.c.l.b16 %v3329
    %v3480 = vunpack.c.l.b16 %v3330
    %v3481 = vunpack.c.h.b16 %v3330
    %v3482 = vunpack.c.l.b16 %v3331
    %v3483 = vunpack.c.h.b16 %v3331
    %v3484 = vunpack.c.l.b16 %v3332
    %v3485 = vunpack.c.h.b16 %v3332
    %v3486 = vunpack.c.l.b16 %v3333
    %v3487 = vunpack.c.l.b16 %v3334
    %v3488 = vunpack.c.h.b16 %v3334
    %v3489 = vunpack.c.l.b16 %v3335
    %v3490 = vunpack.c.h.b16 %v3335
    %v3491 = vunpack.c.l.b16 %v3336
    %v3492 = vunpack.c.h.b16 %v3336
    %v3493 = vunpack.c.l.b16 %v3337
    %v3494 = vunpack.c.l.b16 %v3338
    %v3495 = vunpack.c.h.b16 %v3338
    %v3496 = vunpack.c.l.b16 %v3339
    %v3497 = vunpack.c.h.b16 %v3339
    %v3498 = vunpack.c.l.b16 %v3340
    %v3499 = vunpack.c.h.b16 %v3340
    %v3500 = vunpack.c.l.b16 %v3341
    %v3501 = vunpack.c.l.b16 %v3342
    %v3502 = vunpack.c.h.b16 %v3342
    %v3503 = vunpack.c.l.b16 %v3343
    %v3504 = vunpack.c.h.b16 %v3343
    %v3505 = vunpack.c.l.b16 %v3344
    %v3506 = vunpack.c.h.b16 %v3344
    %v3507 = vunpack.c.l.b16 %v3345
    %v3508 = vunpack.c.l.b16 %v3346
    %v3509 = vunpack.c.h.b16 %v3346
    %v3510 = vunpack.c.l.b16 %v3347
    %v3511 = vunpack.c.h.b16 %v3347
    %v3512 = vunpack.c.l.b16 %v3348
    %v3513 = vunpack.c.h.b16 %v3348
    %v3514 = vunpack.c.l.b16 %v3349
    %v3515 = vunpack.c.l.b16 %v3350
    %v3516 = vunpack.c.h.b16 %v3350
    %v3517 = vunpack.c.l.b16 %v3351
    %v3518 = vunpack.c.h.b16 %v3351
    %v3519 = vunpack.c.l.b16 %v3352
    %v3520 = vunpack.c.h.b16 %v3352
    %v3521 = vunpack.c.l.b16 %v3353
    %v3522 = vunpack.c.l.b16 %v3354
    %v3523 = vunpack.c.h.b16 %v3354
    %v3524 = vunpack.c.l.b16 %v3355
    %v3525 = vunpack.c.h.b16 %v3355
    %v3526 = vunpack.c.l.b16 %v3356
    %v3527 = vunpack.c.h.b16 %v3356
    %v3528 = vunpack.c.l.b16 %v3357
    %v3529 = vunpack.c.l.b16 %v3358
    %v3530 = vunpack.c.h.b16 %v3358
    %v3531 = vunpack.c.l.b16 %v3359
    %v3532 = vunpack.c.h.b16 %v3359
    %v3533 = vunpack.c.l.b16 %v3360
    %v3534 = vunpack.c.h.b16 %v3360
    %v3535 = vunpack.c.l.b16 %v3361
    %v3536 = vunpack.c.l.b16 %v3362
    %v3537 = vunpack.c.h.b16 %v3362
    %v3538 = vunpack.c.l.b16 %v3363
    %v3539 = vunpack.c.h.b16 %v3363
    %v3540 = vunpack.c.l.b16 %v3364
    %v3541 = vunpack.c.h.b16 %v3364
    %v3542 = vunpack.c.l.b16 %v3365
    %v3543 = vunpack.c.l.b16 %v3366
    %v3544 = vunpack.c.h.b16 %v3366
    %v3545 = vunpack.c.l.b16 %v3367
    %v3546 = vunpack.c.h.b16 %v3367
    %v3547 = vunpack.c.l.b16 %v3368
    %v3548 = vunpack.c.h.b16 %v3368
    %v3549 = vunpack.c.l.b16 %v3369
    %v3550 = vunpack.c.l.b16 %v3370
    %v3551 = vunpack.c.h.b16 %v3370
    %v3552 = vunpack.c.l.b16 %v3371
    %v3553 = vunpack.c.h.b16 %v3371
    %v3554 = vunpack.c.l.b16 %v3372
    %v3555 = vunpack.c.h.b16 %v3372
    %v3556 = vunpack.c.l.b16 %v3373
    %v3557 = vunpack.c.l.b16 %v3374
    %v3558 = vunpack.c.h.b16 %v3374
    %v3559 = vunpack.c.l.b16 %v3375
    %v3560 = vunpack.c.h.b16 %v3375
    %v3561 = vunpack.c.l.b16 %v3376
    %v3562 = vunpack.c.h.b16 %v3376
    %v3563 = vunpack.c.l.b16 %v3377
    %v3564 = vunpack.c.l.b16 %v3378
    %v3565 = vunpack.c.h.b16 %v3378
    %v3566 = vunpack.c.l.b16 %v3379
    %v3567 = vunpack.c.h.b16 %v3379
    %v3568 = vunpack.c.l.b16 %v3380
    %v3569 = vunpack.c.h.b16 %v3380
    %v3570 = vunpack.c.l.b16 %v3381
    %v3571 = vunpack.c.l.b16 %v3382
    %v3572 = vunpack.c.h.b16 %v3382
    %v3573 = vunpack.c.l.b16 %v3383
    %v3574 = vunpack.c.h.b16 %v3383
    %v3575 = vunpack.c.l.b16 %v3384
    %v3576 = vunpack.c.h.b16 %v3384
    %v3577 = vunpack.c.l.b16 %v3385
    %v3578 = vpack.c.b16 %v3473, %v3466
    %v3579 = vpack.c.b16 %v3474, %v3467
    %v3580 = vpack.c.b16 %v3475, %v3468
    %v3581 = vpack.c.b16 %v3476, %v3469
    %v3582 = vpack.c.b16 %v3477, %v3470
    %v3583 = vpack.c.b16 %v3478, %v3471
    %v3584 = vpack.c.b16 %v3479, %v3472
    %v3585 = vpack.c.b16 %v3487, %v3480
    %v3586 = vpack.c.b16 %v3488, %v3481
    %v3587 = vpack.c.b16 %v3489, %v3482
    %v3588 = vpack.c.b16 %v3490, %v3483
    %v3589 = vpack.c.b16 %v3491, %v3484
    %v3590 = vpack.c.b16 %v3492, %v3485
    %v3591 = vpack.c.b16 %v3493, %v3486
    %v3592 = vpack.c.b16 %v3501, %v3494
    %v3593 = vpack.c.b16 %v3502, %v3495
    %v3594 = vpack.c.b16 %v3503, %v3496
    %v3595 = vpack.c.b16 %v3504, %v3497
    %v3596 = vpack.c.b16 %v3505, %v3498
    %v3597 = vpack.c.b16 %v3506, %v3499
    %v3598 = vpack.c.b16 %v3507, %v3500
    %v3599 = vpack.c.b16 %v3515, %v3508
    %v3600 = vpack.c.b16 %v3516, %v3509
    %v3601 = vpack.c.b16 %v3517, %v3510
    %v3602 = vpack.c.b16 %v3518, %v3511
    %v3603 = vpack.c.b16 %v3519, %v3512
    %v3604 = vpack.c.b16 %v3520, %v3513
    %v3605 = vpack.c.b16 %v3521, %v3514
    %v3606 = vpack.c.b16 %v3529, %v3522
    %v3607 = vpack.c.b16 %v3530, %v3523
    %v3608 = vpack.c.b16 %v3531, %v3524
    %v3609 = vpack.c.b16 %v3532, %v3525
    %v3610 = vpack.c.b16 %v3533, %v3526
    %v3611 = vpack.c.b16 %v3534, %v3527
    %v3612 = vpack.c.b16 %v3535, %v3528
    %v3613 = vpack.c.b16 %v3543, %v3536
    %v3614 = vpack.c.b16 %v3544, %v3537
    %v3615 = vpack.c.b16 %v3545, %v3538
    %v3616 = vpack.c.b16 %v3546, %v3539
    %v3617 = vpack.c.b16 %v3547, %v3540
    %v3618 = vpack.c.b16 %v3548, %v3541
    %v3619 = vpack.c.b16 %v3549, %v3542
    %v3620 = vpack.c.b16 %v3557, %v3550
    %v3621 = vpack.c.b16 %v3558, %v3551
    %v3622 = vpack.c.b16 %v3559, %v3552
    %v3623 = vpack.c.b16 %v3560, %v3553
    %v3624 = vpack.c.b16 %v3561, %v3554
    %v3625 = vpack.c.b16 %v3562, %v3555
    %v3626 = vpack.c.b16 %v3563, %v3556
    %v3627 = vpack.c.b16 %v3571, %v3564
    %v3628 = vpack.c.b16 %v3572, %v3565
    %v3629 = vpack.c.b16 %v3573, %v3566
    %v3630 = vpack.c.b16 %v3574, %v3567
    %v3631 = vpack.c.b16 %v3575, %v3568
    %v3632 = vpack.c.b16 %v3576, %v3569
    %v3633 = vpack.c.b16 %v3577, %v3570
    %3690 = vmatpush.bf16.msra.mxu0 %v3627
    %3691 = vmatpush.bf16.msra.mxu0 %v3620
    %3692 = vmatpush.bf16.msra.mxu0 %v3613
    %3693 = vmatpush.bf16.msra.mxu0 %v3606
    %3694 = vmatpush.bf16.msra.mxu0 %v3599
    %3695 = vmatpush.bf16.msra.mxu0 %v3592
    %3696 = vmatpush.bf16.msra.mxu0 %v3585
    %3697 = vmatpush.bf16.msra.mxu0 %v3578
    %3698 = vmatmul.bf16.gmra.mxu0 %v3321
    %v3699 = vpop.f32.mrf.mxu0
    %v3700 = vadd.f32 %v3388, %v3699
    %v3701 = vpop.f32.mrf.mxu0
    %3702 = vdwg.mxu0
    %3703 = vmatpush.bf16.msra.mxu0 %v3628
    %3704 = vmatpush.bf16.msra.mxu0 %v3621
    %3705 = vmatpush.bf16.msra.mxu0 %v3614
    %3706 = vmatpush.bf16.msra.mxu0 %v3607
    %3707 = vmatpush.bf16.msra.mxu0 %v3600
    %3708 = vmatpush.bf16.msra.mxu0 %v3593
    %3709 = vmatpush.bf16.msra.mxu0 %v3586
    %3710 = vmatpush.bf16.msra.mxu0 %v3579
    %3711 = vmatmul.bf16.gmra.mxu0 %v3321
    %v3712 = vpop.f32.mrf.mxu0
    %v3713 = vadd.f32 %v3389, %v3712
    %v3714 = vpop.f32.mrf.mxu0
    %3715 = vdwg.mxu0
    %3716 = vmatpush.bf16.msra.mxu0 %v3629
    %3717 = vmatpush.bf16.msra.mxu0 %v3622
    %3718 = vmatpush.bf16.msra.mxu0 %v3615
    %3719 = vmatpush.bf16.msra.mxu0 %v3608
    %3720 = vmatpush.bf16.msra.mxu0 %v3601
    %3721 = vmatpush.bf16.msra.mxu0 %v3594
    %3722 = vmatpush.bf16.msra.mxu0 %v3587
    %3723 = vmatpush.bf16.msra.mxu0 %v3580
    %3724 = vmatmul.bf16.gmra.mxu0 %v3321
    %v3725 = vpop.f32.mrf.mxu0
    %v3726 = vadd.f32 %v3390, %v3725
    %v3727 = vpop.f32.mrf.mxu0
    %3728 = vdwg.mxu0
    %3729 = vmatpush.bf16.msra.mxu0 %v3630
    %3730 = vmatpush.bf16.msra.mxu0 %v3623
    %3731 = vmatpush.bf16.msra.mxu0 %v3616
    %3732 = vmatpush.bf16.msra.mxu0 %v3609
    %3733 = vmatpush.bf16.msra.mxu0 %v3602
    %3734 = vmatpush.bf16.msra.mxu0 %v3595
    %3735 = vmatpush.bf16.msra.mxu0 %v3588
    %3736 = vmatpush.bf16.msra.mxu0 %v3581
    %3737 = vmatmul.bf16.gmra.mxu0 %v3321
    %v3738 = vpop.f32.mrf.mxu0
    %v3739 = vadd.f32 %v3391, %v3738
    %v3740 = vpop.f32.mrf.mxu0
    %3741 = vdwg.mxu0
    %3742 = vmatpush.bf16.msra.mxu0 %v3631
    %3743 = vmatpush.bf16.msra.mxu0 %v3624
    %3744 = vmatpush.bf16.msra.mxu0 %v3617
    %3745 = vmatpush.bf16.msra.mxu0 %v3610
    %3746 = vmatpush.bf16.msra.mxu0 %v3603
    %3747 = vmatpush.bf16.msra.mxu0 %v3596
    %3748 = vmatpush.bf16.msra.mxu0 %v3589
    %3749 = vmatpush.bf16.msra.mxu0 %v3582
    %3750 = vmatmul.bf16.gmra.mxu0 %v3321
    %v3751 = vpop.f32.mrf.mxu0
    %v3752 = vadd.f32 %v3392, %v3751
    %v3753 = vpop.f32.mrf.mxu0
    %3754 = vdwg.mxu0
    %3755 = vmatpush.bf16.msra.mxu0 %v3632
    %3756 = vmatpush.bf16.msra.mxu0 %v3625
    %3757 = vmatpush.bf16.msra.mxu0 %v3618
    %3758 = vmatpush.bf16.msra.mxu0 %v3611
    %3759 = vmatpush.bf16.msra.mxu0 %v3604
    %3760 = vmatpush.bf16.msra.mxu0 %v3597
    %3761 = vmatpush.bf16.msra.mxu0 %v3590
    %3762 = vmatpush.bf16.msra.mxu0 %v3583
    %3763 = vmatmul.bf16.gmra.mxu0 %v3321
    %v3764 = vpop.f32.mrf.mxu0
    %v3765 = vadd.f32 %v3393, %v3764
    %v3766 = vpop.f32.mrf.mxu0
    %3767 = vdwg.mxu0
    %3768 = vmatpush.bf16.msra.mxu0 %v3633
    %3769 = vmatpush.bf16.msra.mxu0 %v3626
    %3770 = vmatpush.bf16.msra.mxu0 %v3619
    %3771 = vmatpush.bf16.msra.mxu0 %v3612
    %3772 = vmatpush.bf16.msra.mxu0 %v3605
    %3773 = vmatpush.bf16.msra.mxu0 %v3598
    %3774 = vmatpush.bf16.msra.mxu0 %v3591
    %3775 = vmatpush.bf16.msra.mxu0 %v3584
    %3776 = vmatmul.bf16.gmra.mxu0 %v3321
    %v3777 = vpop.f32.mrf.mxu0
    %v3778 = vadd.f32 %v3394, %v3777
    %v3779 = vpop.f32.mrf.mxu0
    %3780 = vdwg.mxu0
    %v3781 = vtanh.pop %v3700
    %v3782 = vtanh.pop %v3713
    %v3783 = vtanh.pop %v3726
    %v3784 = vtanh.pop %v3739
    %v3785 = vtanh.pop %v3752
    %v3786 = vtanh.pop %v3765
    %v3787 = vtanh.pop %v3778
    %3788 = vst [vmem:[#allocation17] sm:$0xff] %v3781
    %3789 = vst [vmem:[#allocation17 + $0x8] sm:$0xff] %v3782
    %3790 = vst [vmem:[#allocation17 + $0x10] sm:$0xff] %v3783
    %3791 = vst [vmem:[#allocation17 + $0x18] sm:$0xff] %v3784
    %3792 = vst [vmem:[#allocation17 + $0x20] sm:$0xff] %v3785
    %3793 = vst [vmem:[#allocation17 + $0x28] sm:$0xff] %v3786
    %vm3794 = vcmask 130048
    %3795 = vst.msk [vmem:[#allocation17 + $0x30] sm:$0xff] %vm3794, %v3787
    // Predicated region
    $region82: #{tpu_custom_call.1} parent=1 // pred_check
      _
    $region83: #{tpu_custom_call.1} parent=1 // pred_check_branch
      %3797 = sbr.rel (0) target = $region85
    $region84: #{tpu_custom_call.1} parent=1 // pred_region
      %3799 = vsyncadd [#allocation4], 0
      %s3801 = sshll.u32 [#allocation17], 4
      %s3802 = int_to_ptr.vmem [resolvable:$true] %s3801
      %s3803 = sshll.u32 %s11, 4
      %s3804 = int_to_ptr.hbm [resolvable:$true] %s3803
      %3806 = dma.vmem_to_hbm [thread:$0]  %s3802, 896, %s3804, [#allocation4]
    $region85: #{tpu_custom_call.1} parent=1 // pred_fallthru
      _
    // Predicated region
    $region86: #{tpu_custom_call.1} parent=1 // pred_check
      _
    $region87: #{tpu_custom_call.1} parent=1 // pred_check_branch
      %3808 = sbr.rel (0) target = $region89
    $region88: #{tpu_custom_call.1} parent=1 // pred_region
      %3810 = dma.done [#allocation4], 896
    $region89: #{tpu_custom_call.1} parent=1 // pred_fallthru
      _
    %3811 = vsyncpa [#allocation3], 1
    %3812 = vsyncpa [#allocation6], 1
    %3813 = vsyncpa [#allocation9], 1
    %3814 = vsyncpa [#allocation12], 1
    %3815 = vsyncpa [#allocation15], 1
    %3816 = vsyncpa [#allocation4], 1

</llo_original>
